<compile_context>
chip_gen: v7x
topology: tpu7x:2x2x1
jax: 0.10.0
libtpu: 0.0.40
codegen_flags: <defaults>
</compile_context>

<pallas_src>
import jax
import jax.numpy as jnp
from jax.experimental import pallas as pl
from jax.experimental.pallas import tpu as pltpu

NUM_CLASSES = 10
HIDDEN = 128


def _round_up(x, m):
    return ((x + m - 1) // m) * m


# ----------------------------------------------------------------------------
# Conv stage: NHWC im2col (XLA) + Pallas matmul + bias + ReLU (bf16 operands)
# ----------------------------------------------------------------------------
def _mm_bias_relu_kernel(p_ref, w_ref, b_ref, o_ref):
    acc = jnp.dot(p_ref[...], w_ref[...], preferred_element_type=jnp.float32)
    o_ref[...] = jnp.maximum(acc + b_ref[...], 0.0).astype(o_ref.dtype)


def _im2col_nhwc_s2_p1(x):
    """x: (N, H, W, C) -> patches (N*OH*OW, 9*C), columns in (kh, kw, c) order."""
    n, h, w, c = x.shape
    oh, ow = h // 2, w // 2
    xp = jnp.pad(x, ((0, 0), (1, 1), (1, 1), (0, 0)))
    cols = [xp[:, kh:kh + 2 * oh:2, kw:kw + 2 * ow:2, :]
            for kh in range(3) for kw in range(3)]
    patches = jnp.concatenate(cols, axis=-1)              # (N, OH, OW, 9*C)
    return patches.reshape(n * oh * ow, 9 * c), oh, ow


def conv3x3_s2_relu_nhwc(x, wmat, bias, tile_m=512):
    """x: (N,H,W,C) bf16, wmat: (9*C, OC) bf16, bias: (1, OC) f32 -> (N,H/2,W/2,OC) bf16."""
    n = x.shape[0]
    patches, oh, ow = _im2col_nhwc_s2_p1(x)
    m, k = patches.shape
    oc = wmat.shape[1]
    tm = min(tile_m, _round_up(m, 8))
    out = pl.pallas_call(
        _mm_bias_relu_kernel,
        out_shape=jax.ShapeDtypeStruct((m, oc), jnp.bfloat16),
        grid=(pl.cdiv(m, tm),),
        in_specs=[
            pl.BlockSpec((tm, k), lambda i: (i, 0)),
            pl.BlockSpec((k, oc), lambda i: (0, 0)),
            pl.BlockSpec((1, oc), lambda i: (0, 0)),
        ],
        out_specs=pl.BlockSpec((tm, oc), lambda i: (i, 0)),
        compiler_params=pltpu.CompilerParams(dimension_semantics=("parallel",)),
    )(patches, wmat, bias)
    return out.reshape(n, oh, ow, oc)


# ----------------------------------------------------------------------------
# Hoisted GRU layer-1 input projection: gi1 = x @ W_ih1 + b_ih1 over all rows
# ----------------------------------------------------------------------------
def _proj_kernel(x_ref, w_ref, b_ref, o_ref, acc_ref):
    @pl.when(pl.program_id(1) == 0)
    def _():
        acc_ref[...] = jnp.zeros_like(acc_ref)

    acc_ref[...] += jnp.dot(x_ref[...], w_ref[...],
                            preferred_element_type=jnp.float32)

    @pl.when(pl.program_id(1) == pl.num_programs(1) - 1)
    def _():
        o_ref[...] = acc_ref[...] + b_ref[...]


def gru_input_projection(x_flat, wih1, bih1, tile_m=128, tile_k=512):
    """x_flat: (M, K) bf16, wih1: (K, 3H) bf16, bih1: (1, 3H) f32 -> (M, 3H) f32."""
    m, k = x_flat.shape
    n3h = wih1.shape[1]
    tk = min(tile_k, _round_up(k, 128))
    kp = _round_up(k, tk)
    if kp != k:  # zero-pad the reduction dim so no tail masking is needed
        x_flat = jnp.pad(x_flat, ((0, 0), (0, kp - k)))
        wih1 = jnp.pad(wih1, ((0, kp - k), (0, 0)))
    tm = min(tile_m, _round_up(m, 8))
    return pl.pallas_call(
        _proj_kernel,
        out_shape=jax.ShapeDtypeStruct((m, n3h), jnp.float32),
        grid=(pl.cdiv(m, tm), kp // tk),
        in_specs=[
            pl.BlockSpec((tm, tk), lambda i, kk: (i, kk)),
            pl.BlockSpec((tk, n3h), lambda i, kk: (kk, 0)),
            pl.BlockSpec((1, n3h), lambda i, kk: (0, 0)),
        ],
        out_specs=pl.BlockSpec((tm, n3h), lambda i, kk: (i, 0)),
        scratch_shapes=[pltpu.VMEM((tm, n3h), jnp.float32)],
        compiler_params=pltpu.CompilerParams(
            dimension_semantics=("parallel", "arbitrary")),
    )(x_flat, wih1, bih1)


# ----------------------------------------------------------------------------
# Recurrent kernel: 2-layer GRU (layer-1 gi precomputed) + fused FC head
# ----------------------------------------------------------------------------
def _gru2_head_kernel(gi_ref, whh1_ref, bhh1_ref, wih2_ref, bih2_ref,
                      whh2_ref, bhh2_ref,
                      w1_ref, b1_ref, w2_ref, b2_ref, w3_ref, b3_ref,
                      o_ref, h1_ref, h2_ref):
    t = pl.program_id(0)

    @pl.when(t == 0)
    def _():
        h1_ref[...] = jnp.zeros_like(h1_ref)
        h2_ref[...] = jnp.zeros_like(h2_ref)

    hd = h1_ref.shape[-1]

    def cell(gi, h, whh_ref, bhh_ref):
        gh = jnp.dot(h.astype(jnp.bfloat16), whh_ref[...],
                     preferred_element_type=jnp.float32) + bhh_ref[...]
        r = jax.nn.sigmoid(gi[:, 0:hd] + gh[:, 0:hd])
        z = jax.nn.sigmoid(gi[:, hd:2 * hd] + gh[:, hd:2 * hd])
        n = jnp.tanh(gi[:, 2 * hd:3 * hd] + r * gh[:, 2 * hd:3 * hd])
        return (1.0 - z) * n + z * h

    gi1 = gi_ref[0]                                        # (B, 3H) f32, precomputed
    h1_new = cell(gi1, h1_ref[...], whh1_ref, bhh1_ref)
    gi2 = jnp.dot(h1_new.astype(jnp.bfloat16), wih2_ref[...],
                  preferred_element_type=jnp.float32) + bih2_ref[...]
    h2_new = cell(gi2, h2_ref[...], whh2_ref, bhh2_ref)
    h1_ref[...] = h1_new
    h2_ref[...] = h2_new

    @pl.when(t == pl.num_programs(0) - 1)
    def _():
        # fc1 + ReLU -> fc2 + ReLU -> fc_out (dropouts are identity in eval mode)
        f = jnp.maximum(
            jnp.dot(h2_new.astype(jnp.bfloat16), w1_ref[...],
                    preferred_element_type=jnp.float32) + b1_ref[...], 0.0)
        f = jnp.maximum(
            jnp.dot(f.astype(jnp.bfloat16), w2_ref[...],
                    preferred_element_type=jnp.float32) + b2_ref[...], 0.0)
        o_ref[...] = (jnp.dot(f.astype(jnp.bfloat16), w3_ref[...],
                              preferred_element_type=jnp.float32) + b3_ref[...])


def gru2_head(gi_tbg, gp, hp):
    """gi_tbg: (T, B, 3H) f32 precomputed layer-1 gates -> (B, NUM_CLASSES) f32."""
    t, b, g3 = gi_tbg.shape
    full = lambda a: pl.BlockSpec(a.shape, lambda s, _nd=a.ndim: (0,) * _nd)
    ws = (gp["whh1"], gp["bhh1"], gp["wih2"], gp["bih2"], gp["whh2"], gp["bhh2"],
          hp["w1"], hp["b1"], hp["w2"], hp["b2"], hp["w3"], hp["b3"])
    return pl.pallas_call(
        _gru2_head_kernel,
        out_shape=jax.ShapeDtypeStruct((b, NUM_CLASSES), jnp.float32),
        grid=(t,),
        in_specs=[pl.BlockSpec((1, b, g3), lambda s: (s, 0, 0))]
                 + [full(w) for w in ws],
        out_specs=pl.BlockSpec((b, NUM_CLASSES), lambda s: (0, 0)),
        scratch_shapes=[pltpu.VMEM((b, HIDDEN), jnp.float32),
                        pltpu.VMEM((b, HIDDEN), jnp.float32)],
        compiler_params=pltpu.CompilerParams(dimension_semantics=("arbitrary",)),
    )(gi_tbg, *ws)


# ----------------------------------------------------------------------------
# Full forward
# ----------------------------------------------------------------------------
def cortical_column_net_v4(x, params):
    """x: (T, B, C, H, W) float32 -> (B, NUM_CLASSES) float32."""
    t, b, c, h, w = x.shape
    # Frames are processed in (t, b) order: convs are per-frame, so any frame
    # order is valid as long as the GRU sees frame (t, b) at time t for batch
    # element b -- which the (T, B, 3H) reshape below guarantees.
    c_in = x.astype(jnp.bfloat16).reshape(t * b, c, h, w).transpose(0, 2, 3, 1)
    c1 = conv3x3_s2_relu_nhwc(c_in, params["conv1_w"], params["conv1_b"])
    c2 = conv3x3_s2_relu_nhwc(c1, params["conv2_w"], params["conv2_b"])
    feat = c2.reshape(t * b, -1)                           # NHWC-order flatten
    gi = gru_input_projection(feat, params["gru"]["wih1"], params["gru"]["bih1"])
    gi = gi.reshape(t, b, 3 * HIDDEN)                      # per-timestep gate pre-acts
    # TODO(synk): dropout1/dropout2 implemented as identity (eval-mode semantics).
    return gru2_head(gi, params["gru"], params["head"])


# ----------------------------------------------------------------------------
# Parameters: deterministic init in native PyTorch layouts, then a one-time
# conversion to the kernel-friendly layouts.
# ----------------------------------------------------------------------------
def init_params_torch_layout(key, spatial_hw):
    h, w = spatial_hw
    f_in = 32 * (h // 4) * (w // 4)
    ks = list(jax.random.split(key, 24))
    nrm = lambda k, shp, s=0.05: (s * jax.random.normal(k, shp)).astype(jnp.float32)
    return {
        "conv1_w": nrm(ks[0], (16, 1, 3, 3)), "conv1_b": nrm(ks[1], (16,)),
        "conv2_w": nrm(ks[2], (32, 16, 3, 3)), "conv2_b": nrm(ks[3], (32,)),
        # GRU (PyTorch layout): weight_[ih|hh]_l{0,1} are (3H, in), gates [r, z, n].
        "wih_l0": nrm(ks[4], (3 * HIDDEN, f_in)),
        "whh_l0": nrm(ks[5], (3 * HIDDEN, HIDDEN)),
        "bih_l0": nrm(ks[6], (3 * HIDDEN,)), "bhh_l0": nrm(ks[7], (3 * HIDDEN,)),
        "wih_l1": nrm(ks[8], (3 * HIDDEN, HIDDEN)),
        "whh_l1": nrm(ks[9], (3 * HIDDEN, HIDDEN)),
        "bih_l1": nrm(ks[10], (3 * HIDDEN,)), "bhh_l1": nrm(ks[11], (3 * HIDDEN,)),
        "fc1_w": nrm(ks[12], (64, HIDDEN)), "fc1_b": nrm(ks[13], (64,)),
        "fc2_w": nrm(ks[14], (32, 64)), "fc2_b": nrm(ks[15], (32,)),
        "fco_w": nrm(ks[16], (NUM_CLASSES, 32)), "fco_b": nrm(ks[17], (NUM_CLASSES,)),
    }


def prepare_params(tp, spatial_hw):
    """One-time layout conversion: conv weights -> (kh,kw,c)-ordered im2col
    matrices; GRU/FC weights pre-transposed to (in, out); W_ih_l0 rows permuted
    from PyTorch's channel-major (c, oh, ow) flatten to the NHWC (oh, ow, c)
    flatten produced by the conv path; matmul operands cast to bf16."""
    h, w = spatial_hw
    oh2, ow2 = h // 4, w // 4
    bf = jnp.bfloat16
    conv_mat = lambda cw: cw.transpose(2, 3, 1, 0).reshape(-1, cw.shape[0]).astype(bf)
    row2 = lambda bias: bias.reshape(1, -1).astype(jnp.float32)

    wih1 = tp["wih_l0"].T                                   # (F, 3H), rows = (c, oh, ow)
    wih1 = (wih1.reshape(32, oh2, ow2, 3 * HIDDEN)
                .transpose(1, 2, 0, 3)                      # rows -> (oh, ow, c)
                .reshape(oh2 * ow2 * 32, 3 * HIDDEN)).astype(bf)
    return {
        "conv1_w": conv_mat(tp["conv1_w"]), "conv1_b": row2(tp["conv1_b"]),
        "conv2_w": conv_mat(tp["conv2_w"]), "conv2_b": row2(tp["conv2_b"]),
        "gru": {
            "wih1": wih1, "bih1": row2(tp["bih_l0"]),
            "whh1": tp["whh_l0"].T.astype(bf), "bhh1": row2(tp["bhh_l0"]),
            "wih2": tp["wih_l1"].T.astype(bf), "bih2": row2(tp["bih_l1"]),
            "whh2": tp["whh_l1"].T.astype(bf), "bhh2": row2(tp["bhh_l1"]),
        },
        "head": {
            "w1": tp["fc1_w"].T.astype(bf), "b1": row2(tp["fc1_b"]),
            "w2": tp["fc2_w"].T.astype(bf), "b2": row2(tp["fc2_b"]),
            "w3": tp["fco_w"].T.astype(bf), "b3": row2(tp["fco_b"]),
        },
    }


if __name__ == "__main__":
    # Small shapes consistent with the module: (timesteps, batch, C, H, W).
    T, B, C, H, W = 4, 2, 1, 16, 16

    key = jax.random.PRNGKey(0)
    kx, kp = jax.random.split(key)
    x = jax.random.normal(kx, (T, B, C, H, W), dtype=jnp.float32)
    params = prepare_params(init_params_torch_layout(kp, (H, W)), (H, W))

    fwd = jax.jit(cortical_column_net_v4)
    out = jax.block_until_ready(fwd(x, params))
    assert out.shape == (B, NUM_CLASSES), out.shape
    assert bool(jnp.all(jnp.isfinite(out)))
    print("KERNEL_OK")
</pallas_src>

<mosaic_0001>
module attributes {stable_mosaic.version = 11 : i64} {
  func.func @_mm_bias_relu_kernel(%arg0: i32, %arg1: memref<512x9xbf16, #tpu.memory_space<vmem>>, %arg2: memref<9x16xbf16, #tpu.memory_space<vmem>>, %arg3: memref<1x16xf32, #tpu.memory_space<vmem>>, %arg4: memref<512x16xbf16, #tpu.memory_space<vmem>>) attributes {dimension_semantics = [#tpu.dimension_semantics<parallel>], iteration_bounds = array<i64: 1>, scalar_prefetch = 0 : i64, scratch_operands = 0 : i64, tpu.core_type = #tpu.core_type<tc>, window_params = [{transform_indices = @transform_0, window_bounds = array<i64: 512, 9>}, {pipeline_mode = #tpu.pipeline_mode<synchronous>, transform_indices = @transform_1, window_bounds = array<i64: 9, 16>}, {pipeline_mode = #tpu.pipeline_mode<synchronous>, transform_indices = @transform_2, window_bounds = array<i64: 1, 16>}, {transform_indices = @transform_3, window_bounds = array<i64: 512, 16>}]} {
    %c0 = arith.constant 0 : index
    %c0_0 = arith.constant 0 : index
    %0 = vector.load %arg1[%c0, %c0_0] : memref<512x9xbf16, #tpu.memory_space<vmem>>, vector<512x9xbf16>
    %c0_1 = arith.constant 0 : index
    %c0_2 = arith.constant 0 : index
    %1 = vector.load %arg2[%c0_1, %c0_2] : memref<9x16xbf16, #tpu.memory_space<vmem>>, vector<9x16xbf16>
    %cst = arith.constant dense<0.000000e+00> : vector<512x16xf32>
    %2 = tpu.matmul %0, %1, %cst {dimension_numbers = #tpu.dot_dimension_numbers<[1], [0], [0], [1], [0, 0, 1, 1], [], []>} : vector<512x9xbf16>, vector<9x16xbf16>, vector<512x16xf32> -> vector<512x16xf32>
    %c0_3 = arith.constant 0 : index
    %c0_4 = arith.constant 0 : index
    %3 = vector.load %arg3[%c0_3, %c0_4] : memref<1x16xf32, #tpu.memory_space<vmem>>, vector<1x16xf32>
    %4 = vector.broadcast %3 : vector<1x16xf32> to vector<512x16xf32>
    %5 = arith.addf %2, %4 : vector<512x16xf32>
    %cst_5 = arith.constant 0.000000e+00 : f32
    %6 = vector.broadcast %cst_5 : f32 to vector<512x16xf32>
    %7 = arith.maximumf %5, %6 : vector<512x16xf32>
    %8 = arith.truncf %7 : vector<512x16xf32> to vector<512x16xbf16>
    %c0_6 = arith.constant 0 : index
    %c0_7 = arith.constant 0 : index
    %9 = vector.load %arg4[%c0_6, %c0_7] : memref<512x16xbf16, #tpu.memory_space<vmem>>, vector<512x16xbf16>
    tpu.vector_store %arg4[%c0_6, %c0_7], %8 {strides = array<i32>} : memref<512x16xbf16, #tpu.memory_space<vmem>>, vector<512x16xbf16>,
    return
  }
  func.func @transform_0(%arg0: i32) -> (i32, i32) {
    %c0_i32 = arith.constant 0 : i32
    %c0_i32_0 = arith.constant 0 : i32
    return %arg0, %c0_i32 : i32, i32
  }
  func.func @transform_1(%arg0: i32) -> (i32, i32) {
    %c0_i32 = arith.constant 0 : i32
    %c0_i32_0 = arith.constant 0 : i32
    %c0_i32_1 = arith.constant 0 : i32
    return %c0_i32, %c0_i32_0 : i32, i32
  }
  func.func @transform_2(%arg0: i32) -> (i32, i32) {
    %c0_i32 = arith.constant 0 : i32
    %c0_i32_0 = arith.constant 0 : i32
    %c0_i32_1 = arith.constant 0 : i32
    return %c0_i32, %c0_i32_0 : i32, i32
  }
  func.func @transform_3(%arg0: i32) -> (i32, i32) {
    %c0_i32 = arith.constant 0 : i32
    %c0_i32_0 = arith.constant 0 : i32
    return %arg0, %c0_i32 : i32, i32
  }
}

module attributes {stable_mosaic.version = 11 : i64} {
  func.func @_mm_bias_relu_kernel(%arg0: i32, %arg1: memref<128x144xbf16, #tpu.memory_space<vmem>>, %arg2: memref<144x32xbf16, #tpu.memory_space<vmem>>, %arg3: memref<1x32xf32, #tpu.memory_space<vmem>>, %arg4: memref<128x32xbf16, #tpu.memory_space<vmem>>) attributes {dimension_semantics = [#tpu.dimension_semantics<parallel>], iteration_bounds = array<i64: 1>, scalar_prefetch = 0 : i64, scratch_operands = 0 : i64, tpu.core_type = #tpu.core_type<tc>, window_params = [{transform_indices = @transform_0, window_bounds = array<i64: 128, 144>}, {pipeline_mode = #tpu.pipeline_mode<synchronous>, transform_indices = @transform_1, window_bounds = array<i64: 144, 32>}, {pipeline_mode = #tpu.pipeline_mode<synchronous>, transform_indices = @transform_2, window_bounds = array<i64: 1, 32>}, {transform_indices = @transform_3, window_bounds = array<i64: 128, 32>}]} {
    %c0 = arith.constant 0 : index
    %c0_0 = arith.constant 0 : index
    %0 = vector.load %arg1[%c0, %c0_0] : memref<128x144xbf16, #tpu.memory_space<vmem>>, vector<128x144xbf16>
    %c0_1 = arith.constant 0 : index
    %c0_2 = arith.constant 0 : index
    %1 = vector.load %arg2[%c0_1, %c0_2] : memref<144x32xbf16, #tpu.memory_space<vmem>>, vector<144x32xbf16>
    %cst = arith.constant dense<0.000000e+00> : vector<128x32xf32>
    %2 = tpu.matmul %0, %1, %cst {dimension_numbers = #tpu.dot_dimension_numbers<[1], [0], [0], [1], [0, 0, 1, 1], [], []>} : vector<128x144xbf16>, vector<144x32xbf16>, vector<128x32xf32> -> vector<128x32xf32>
    %c0_3 = arith.constant 0 : index
    %c0_4 = arith.constant 0 : index
    %3 = vector.load %arg3[%c0_3, %c0_4] : memref<1x32xf32, #tpu.memory_space<vmem>>, vector<1x32xf32>
    %4 = vector.broadcast %3 : vector<1x32xf32> to vector<128x32xf32>
    %5 = arith.addf %2, %4 : vector<128x32xf32>
    %cst_5 = arith.constant 0.000000e+00 : f32
    %6 = vector.broadcast %cst_5 : f32 to vector<128x32xf32>
    %7 = arith.maximumf %5, %6 : vector<128x32xf32>
    %8 = arith.truncf %7 : vector<128x32xf32> to vector<128x32xbf16>
    %c0_6 = arith.constant 0 : index
    %c0_7 = arith.constant 0 : index
    %9 = vector.load %arg4[%c0_6, %c0_7] : memref<128x32xbf16, #tpu.memory_space<vmem>>, vector<128x32xbf16>
    tpu.vector_store %arg4[%c0_6, %c0_7], %8 {strides = array<i32>} : memref<128x32xbf16, #tpu.memory_space<vmem>>, vector<128x32xbf16>,
    return
  }
  func.func @transform_0(%arg0: i32) -> (i32, i32) {
    %c0_i32 = arith.constant 0 : i32
    %c0_i32_0 = arith.constant 0 : i32
    return %arg0, %c0_i32 : i32, i32
  }
  func.func @transform_1(%arg0: i32) -> (i32, i32) {
    %c0_i32 = arith.constant 0 : i32
    %c0_i32_0 = arith.constant 0 : i32
    %c0_i32_1 = arith.constant 0 : i32
    return %c0_i32, %c0_i32_0 : i32, i32
  }
  func.func @transform_2(%arg0: i32) -> (i32, i32) {
    %c0_i32 = arith.constant 0 : i32
    %c0_i32_0 = arith.constant 0 : i32
    %c0_i32_1 = arith.constant 0 : i32
    return %c0_i32, %c0_i32_0 : i32, i32
  }
  func.func @transform_3(%arg0: i32) -> (i32, i32) {
    %c0_i32 = arith.constant 0 : i32
    %c0_i32_0 = arith.constant 0 : i32
    return %arg0, %c0_i32 : i32, i32
  }
}

module attributes {stable_mosaic.version = 11 : i64} {
  func.func @_proj_kernel(%arg0: i32, %arg1: i32, %arg2: memref<8x512xbf16, #tpu.memory_space<vmem>>, %arg3: memref<512x384xbf16, #tpu.memory_space<vmem>>, %arg4: memref<1x384xf32, #tpu.memory_space<vmem>>, %arg5: memref<8x384xf32, #tpu.memory_space<vmem>>, %arg6: memref<8x384xf32, #tpu.memory_space<vmem>>) attributes {dimension_semantics = [#tpu.dimension_semantics<parallel>, #tpu.dimension_semantics<arbitrary>], iteration_bounds = array<i64: 1, 1>, scalar_prefetch = 0 : i64, scratch_operands = 1 : i64, tpu.core_type = #tpu.core_type<tc>, window_params = [{transform_indices = @transform_0, window_bounds = array<i64: 8, 512>}, {transform_indices = @transform_1, window_bounds = array<i64: 512, 384>}, {pipeline_mode = #tpu.pipeline_mode<synchronous>, transform_indices = @transform_2, window_bounds = array<i64: 1, 384>}, {transform_indices = @transform_3, window_bounds = array<i64: 8, 384>}]} {
    %c0_i32 = arith.constant 0 : i32
    %0 = arith.cmpi eq, %arg1, %c0_i32 : i32
    %1 = arith.extui %0 : i1 to i32
    %c0_i32_0 = arith.constant 0 : i32
    %2 = arith.cmpi ne, %1, %c0_i32_0 : i32
    scf.if %2 {
      %cst_10 = arith.constant 0.000000e+00 : f32
      %12 = vector.broadcast %cst_10 : f32 to vector<8x384xf32>
      %c0_11 = arith.constant 0 : index
      %c0_12 = arith.constant 0 : index
      %13 = vector.load %arg6[%c0_11, %c0_12] : memref<8x384xf32, #tpu.memory_space<vmem>>, vector<8x384xf32>
      tpu.vector_store %arg6[%c0_11, %c0_12], %12 {strides = array<i32>} : memref<8x384xf32, #tpu.memory_space<vmem>>, vector<8x384xf32>,
    } else {
    }
    %c0 = arith.constant 0 : index
    %c0_1 = arith.constant 0 : index
    %3 = vector.load %arg6[%c0, %c0_1] : memref<8x384xf32, #tpu.memory_space<vmem>>, vector<8x384xf32>
    %c0_2 = arith.constant 0 : index
    %c0_3 = arith.constant 0 : index
    %4 = vector.load %arg2[%c0_2, %c0_3] : memref<8x512xbf16, #tpu.memory_space<vmem>>, vector<8x512xbf16>
    %c0_4 = arith.constant 0 : index
    %c0_5 = arith.constant 0 : index
    %5 = vector.load %arg3[%c0_4, %c0_5] : memref<512x384xbf16, #tpu.memory_space<vmem>>, vector<512x384xbf16>
    %cst = arith.constant dense<0.000000e+00> : vector<8x384xf32>
    %6 = tpu.matmul %4, %5, %cst {dimension_numbers = #tpu.dot_dimension_numbers<[1], [0], [0], [1], [0, 0, 1, 1], [], []>} : vector<8x512xbf16>, vector<512x384xbf16>, vector<8x384xf32> -> vector<8x384xf32>
    %7 = arith.addf %3, %6 : vector<8x384xf32>
    %c0_6 = arith.constant 0 : index
    %c0_7 = arith.constant 0 : index
    %8 = vector.load %arg6[%c0_6, %c0_7] : memref<8x384xf32, #tpu.memory_space<vmem>>, vector<8x384xf32>
    tpu.vector_store %arg6[%c0_6, %c0_7], %7 {strides = array<i32>} : memref<8x384xf32, #tpu.memory_space<vmem>>, vector<8x384xf32>,
    %c0_i32_8 = arith.constant 0 : i32
    %9 = arith.cmpi eq, %arg1, %c0_i32_8 : i32
    %10 = arith.extui %9 : i1 to i32
    %c0_i32_9 = arith.constant 0 : i32
    %11 = arith.cmpi ne, %10, %c0_i32_9 : i32
    scf.if %11 {
      %c0_10 = arith.constant 0 : index
      %c0_11 = arith.constant 0 : index
      %12 = vector.load %arg6[%c0_10, %c0_11] : memref<8x384xf32, #tpu.memory_space<vmem>>, vector<8x384xf32>
      %c0_12 = arith.constant 0 : index
      %c0_13 = arith.constant 0 : index
      %13 = vector.load %arg4[%c0_12, %c0_13] : memref<1x384xf32, #tpu.memory_space<vmem>>, vector<1x384xf32>
      %14 = vector.broadcast %13 : vector<1x384xf32> to vector<8x384xf32>
      %15 = arith.addf %12, %14 : vector<8x384xf32>
      %c0_14 = arith.constant 0 : index
      %c0_15 = arith.constant 0 : index
      %16 = vector.load %arg5[%c0_14, %c0_15] : memref<8x384xf32, #tpu.memory_space<vmem>>, vector<8x384xf32>
      tpu.vector_store %arg5[%c0_14, %c0_15], %15 {strides = array<i32>} : memref<8x384xf32, #tpu.memory_space<vmem>>, vector<8x384xf32>,
    } else {
    }
    return
  }
  func.func @transform_0(%arg0: i32, %arg1: i32) -> (i32, i32) {
    %c0_i32 = arith.constant 0 : i32
    return %arg0, %arg1 : i32, i32
  }
  func.func @transform_1(%arg0: i32, %arg1: i32) -> (i32, i32) {
    %c0_i32 = arith.constant 0 : i32
    %c0_i32_0 = arith.constant 0 : i32
    return %arg1, %c0_i32 : i32, i32
  }
  func.func @transform_2(%arg0: i32, %arg1: i32) -> (i32, i32) {
    %c0_i32 = arith.constant 0 : i32
    %c0_i32_0 = arith.constant 0 : i32
    %c0_i32_1 = arith.constant 0 : i32
    return %c0_i32, %c0_i32_0 : i32, i32
  }
  func.func @transform_3(%arg0: i32, %arg1: i32) -> (i32, i32) {
    %c0_i32 = arith.constant 0 : i32
    %c0_i32_0 = arith.constant 0 : i32
    return %arg0, %c0_i32 : i32, i32
  }
}

module attributes {stable_mosaic.version = 11 : i64} {
  func.func @_gru2_head_kernel(%arg0: i32, %arg1: memref<1x2x384xf32, #tpu.memory_space<vmem>>, %arg2: memref<128x384xbf16, #tpu.memory_space<vmem>>, %arg3: memref<1x384xf32, #tpu.memory_space<vmem>>, %arg4: memref<128x384xbf16, #tpu.memory_space<vmem>>, %arg5: memref<1x384xf32, #tpu.memory_space<vmem>>, %arg6: memref<128x384xbf16, #tpu.memory_space<vmem>>, %arg7: memref<1x384xf32, #tpu.memory_space<vmem>>, %arg8: memref<128x64xbf16, #tpu.memory_space<vmem>>, %arg9: memref<1x64xf32, #tpu.memory_space<vmem>>, %arg10: memref<64x32xbf16, #tpu.memory_space<vmem>>, %arg11: memref<1x32xf32, #tpu.memory_space<vmem>>, %arg12: memref<32x10xbf16, #tpu.memory_space<vmem>>, %arg13: memref<1x10xf32, #tpu.memory_space<vmem>>, %arg14: memref<2x10xf32, #tpu.memory_space<vmem>>, %arg15: memref<2x128xf32, #tpu.memory_space<vmem>>, %arg16: memref<2x128xf32, #tpu.memory_space<vmem>>) attributes {dimension_semantics = [#tpu.dimension_semantics<arbitrary>], iteration_bounds = array<i64: 4>, scalar_prefetch = 0 : i64, scratch_operands = 2 : i64, tpu.core_type = #tpu.core_type<tc>, window_params = [{transform_indices = @transform_0, window_bounds = array<i64: 1, 2, 384>}, {pipeline_mode = #tpu.pipeline_mode<synchronous>, transform_indices = @transform_1, window_bounds = array<i64: 128, 384>}, {pipeline_mode = #tpu.pipeline_mode<synchronous>, transform_indices = @transform_2, window_bounds = array<i64: 1, 384>}, {pipeline_mode = #tpu.pipeline_mode<synchronous>, transform_indices = @transform_3, window_bounds = array<i64: 128, 384>}, {pipeline_mode = #tpu.pipeline_mode<synchronous>, transform_indices = @transform_4, window_bounds = array<i64: 1, 384>}, {pipeline_mode = #tpu.pipeline_mode<synchronous>, transform_indices = @transform_5, window_bounds = array<i64: 128, 384>}, {pipeline_mode = #tpu.pipeline_mode<synchronous>, transform_indices = @transform_6, window_bounds = array<i64: 1, 384>}, {pipeline_mode = #tpu.pipeline_mode<synchronous>, transform_indices = @transform_7, window_bounds = array<i64: 128, 64>}, {pipeline_mode = #tpu.pipeline_mode<synchronous>, transform_indices = @transform_8, window_bounds = array<i64: 1, 64>}, {pipeline_mode = #tpu.pipeline_mode<synchronous>, transform_indices = @transform_9, window_bounds = array<i64: 64, 32>}, {pipeline_mode = #tpu.pipeline_mode<synchronous>, transform_indices = @transform_10, window_bounds = array<i64: 1, 32>}, {pipeline_mode = #tpu.pipeline_mode<synchronous>, transform_indices = @transform_11, window_bounds = array<i64: 32, 10>}, {pipeline_mode = #tpu.pipeline_mode<synchronous>, transform_indices = @transform_12, window_bounds = array<i64: 1, 10>}, {pipeline_mode = #tpu.pipeline_mode<synchronous>, transform_indices = @transform_13, window_bounds = array<i64: 2, 10>}]} {
    %c0_i32 = arith.constant 0 : i32
    %0 = arith.cmpi eq, %arg0, %c0_i32 : i32
    %1 = arith.extui %0 : i1 to i32
    %c0_i32_0 = arith.constant 0 : i32
    %2 = arith.cmpi ne, %1, %c0_i32_0 : i32
    scf.if %2 {
      %cst_32 = arith.constant 0.000000e+00 : f32
      %82 = vector.broadcast %cst_32 : f32 to vector<2x128xf32>
      %c0_33 = arith.constant 0 : index
      %c0_34 = arith.constant 0 : index
      %83 = vector.load %arg15[%c0_33, %c0_34] : memref<2x128xf32, #tpu.memory_space<vmem>>, vector<2x128xf32>
      tpu.vector_store %arg15[%c0_33, %c0_34], %82 {strides = array<i32>} : memref<2x128xf32, #tpu.memory_space<vmem>>, vector<2x128xf32>,
      %cst_35 = arith.constant 0.000000e+00 : f32
      %84 = vector.broadcast %cst_35 : f32 to vector<2x128xf32>
      %c0_36 = arith.constant 0 : index
      %c0_37 = arith.constant 0 : index
      %85 = vector.load %arg16[%c0_36, %c0_37] : memref<2x128xf32, #tpu.memory_space<vmem>>, vector<2x128xf32>
      tpu.vector_store %arg16[%c0_36, %c0_37], %84 {strides = array<i32>} : memref<2x128xf32, #tpu.memory_space<vmem>>, vector<2x128xf32>,
    } else {
    }
    %c0 = arith.constant 0 : index
    %c0_1 = arith.constant 0 : index
    %c0_2 = arith.constant 0 : index
    %3 = vector.load %arg1[%c0, %c0_1, %c0_2] : memref<1x2x384xf32, #tpu.memory_space<vmem>>, vector<1x2x384xf32>
    %4 = vector.shape_cast %3 : vector<1x2x384xf32> to vector<2x384xf32>
    %c0_3 = arith.constant 0 : index
    %c0_4 = arith.constant 0 : index
    %5 = vector.load %arg15[%c0_3, %c0_4] : memref<2x128xf32, #tpu.memory_space<vmem>>, vector<2x128xf32>
    %6 = arith.truncf %5 : vector<2x128xf32> to vector<2x128xbf16>
    %c0_5 = arith.constant 0 : index
    %c0_6 = arith.constant 0 : index
    %7 = vector.load %arg2[%c0_5, %c0_6] : memref<128x384xbf16, #tpu.memory_space<vmem>>, vector<128x384xbf16>
    %cst = arith.constant dense<0.000000e+00> : vector<2x384xf32>
    %8 = tpu.matmul %6, %7, %cst {dimension_numbers = #tpu.dot_dimension_numbers<[1], [0], [0], [1], [0, 0, 1, 1], [], []>} : vector<2x128xbf16>, vector<128x384xbf16>, vector<2x384xf32> -> vector<2x384xf32>
    %c0_7 = arith.constant 0 : index
    %c0_8 = arith.constant 0 : index
    %9 = vector.load %arg3[%c0_7, %c0_8] : memref<1x384xf32, #tpu.memory_space<vmem>>, vector<1x384xf32>
    %10 = vector.broadcast %9 : vector<1x384xf32> to vector<2x384xf32>
    %11 = arith.addf %8, %10 : vector<2x384xf32>
    %12 = vector.extract_strided_slice %4 {offsets = [0, 0], sizes = [2, 128], strides = [1, 1]} : vector<2x384xf32> to vector<2x128xf32>
    %13 = vector.extract_strided_slice %11 {offsets = [0, 0], sizes = [2, 128], strides = [1, 1]} : vector<2x384xf32> to vector<2x128xf32>
    %14 = arith.addf %12, %13 : vector<2x128xf32>
    %15 = arith.negf %14 : vector<2x128xf32>
    %16 = math.exp %15 : vector<2x128xf32>
    %cst_9 = arith.constant 1.000000e+00 : f32
    %17 = vector.broadcast %cst_9 : f32 to vector<2x128xf32>
    %18 = arith.addf %17, %16 : vector<2x128xf32>
    %19 = arith.divf %17, %18 : vector<2x128xf32>
    %20 = vector.extract_strided_slice %4 {offsets = [0, 128], sizes = [2, 128], strides = [1, 1]} : vector<2x384xf32> to vector<2x128xf32>
    %21 = vector.extract_strided_slice %11 {offsets = [0, 128], sizes = [2, 128], strides = [1, 1]} : vector<2x384xf32> to vector<2x128xf32>
    %22 = arith.addf %20, %21 : vector<2x128xf32>
    %23 = arith.negf %22 : vector<2x128xf32>
    %24 = math.exp %23 : vector<2x128xf32>
    %cst_10 = arith.constant 1.000000e+00 : f32
    %25 = vector.broadcast %cst_10 : f32 to vector<2x128xf32>
    %26 = arith.addf %25, %24 : vector<2x128xf32>
    %27 = arith.divf %25, %26 : vector<2x128xf32>
    %28 = vector.extract_strided_slice %4 {offsets = [0, 256], sizes = [2, 128], strides = [1, 1]} : vector<2x384xf32> to vector<2x128xf32>
    %29 = vector.extract_strided_slice %11 {offsets = [0, 256], sizes = [2, 128], strides = [1, 1]} : vector<2x384xf32> to vector<2x128xf32>
    %30 = arith.mulf %19, %29 : vector<2x128xf32>
    %31 = arith.addf %28, %30 : vector<2x128xf32>
    %32 = math.tanh %31 : vector<2x128xf32>
    %cst_11 = arith.constant 1.000000e+00 : f32
    %33 = vector.broadcast %cst_11 : f32 to vector<2x128xf32>
    %34 = arith.subf %33, %27 : vector<2x128xf32>
    %35 = arith.mulf %34, %32 : vector<2x128xf32>
    %36 = arith.mulf %27, %5 : vector<2x128xf32>
    %37 = arith.addf %35, %36 : vector<2x128xf32>
    %38 = arith.truncf %37 : vector<2x128xf32> to vector<2x128xbf16>
    %c0_12 = arith.constant 0 : index
    %c0_13 = arith.constant 0 : index
    %39 = vector.load %arg4[%c0_12, %c0_13] : memref<128x384xbf16, #tpu.memory_space<vmem>>, vector<128x384xbf16>
    %cst_14 = arith.constant dense<0.000000e+00> : vector<2x384xf32>
    %40 = tpu.matmul %38, %39, %cst_14 {dimension_numbers = #tpu.dot_dimension_numbers<[1], [0], [0], [1], [0, 0, 1, 1], [], []>} : vector<2x128xbf16>, vector<128x384xbf16>, vector<2x384xf32> -> vector<2x384xf32>
    %c0_15 = arith.constant 0 : index
    %c0_16 = arith.constant 0 : index
    %41 = vector.load %arg5[%c0_15, %c0_16] : memref<1x384xf32, #tpu.memory_space<vmem>>, vector<1x384xf32>
    %42 = vector.broadcast %41 : vector<1x384xf32> to vector<2x384xf32>
    %43 = arith.addf %40, %42 : vector<2x384xf32>
    %c0_17 = arith.constant 0 : index
    %c0_18 = arith.constant 0 : index
    %44 = vector.load %arg16[%c0_17, %c0_18] : memref<2x128xf32, #tpu.memory_space<vmem>>, vector<2x128xf32>
    %45 = arith.truncf %44 : vector<2x128xf32> to vector<2x128xbf16>
    %c0_19 = arith.constant 0 : index
    %c0_20 = arith.constant 0 : index
    %46 = vector.load %arg6[%c0_19, %c0_20] : memref<128x384xbf16, #tpu.memory_space<vmem>>, vector<128x384xbf16>
    %cst_21 = arith.constant dense<0.000000e+00> : vector<2x384xf32>
    %47 = tpu.matmul %45, %46, %cst_21 {dimension_numbers = #tpu.dot_dimension_numbers<[1], [0], [0], [1], [0, 0, 1, 1], [], []>} : vector<2x128xbf16>, vector<128x384xbf16>, vector<2x384xf32> -> vector<2x384xf32>
    %c0_22 = arith.constant 0 : index
    %c0_23 = arith.constant 0 : index
    %48 = vector.load %arg7[%c0_22, %c0_23] : memref<1x384xf32, #tpu.memory_space<vmem>>, vector<1x384xf32>
    %49 = vector.broadcast %48 : vector<1x384xf32> to vector<2x384xf32>
    %50 = arith.addf %47, %49 : vector<2x384xf32>
    %51 = vector.extract_strided_slice %43 {offsets = [0, 0], sizes = [2, 128], strides = [1, 1]} : vector<2x384xf32> to vector<2x128xf32>
    %52 = vector.extract_strided_slice %50 {offsets = [0, 0], sizes = [2, 128], strides = [1, 1]} : vector<2x384xf32> to vector<2x128xf32>
    %53 = arith.addf %51, %52 : vector<2x128xf32>
    %54 = arith.negf %53 : vector<2x128xf32>
    %55 = math.exp %54 : vector<2x128xf32>
    %cst_24 = arith.constant 1.000000e+00 : f32
    %56 = vector.broadcast %cst_24 : f32 to vector<2x128xf32>
    %57 = arith.addf %56, %55 : vector<2x128xf32>
    %58 = arith.divf %56, %57 : vector<2x128xf32>
    %59 = vector.extract_strided_slice %43 {offsets = [0, 128], sizes = [2, 128], strides = [1, 1]} : vector<2x384xf32> to vector<2x128xf32>
    %60 = vector.extract_strided_slice %50 {offsets = [0, 128], sizes = [2, 128], strides = [1, 1]} : vector<2x384xf32> to vector<2x128xf32>
    %61 = arith.addf %59, %60 : vector<2x128xf32>
    %62 = arith.negf %61 : vector<2x128xf32>
    %63 = math.exp %62 : vector<2x128xf32>
    %cst_25 = arith.constant 1.000000e+00 : f32
    %64 = vector.broadcast %cst_25 : f32 to vector<2x128xf32>
    %65 = arith.addf %64, %63 : vector<2x128xf32>
    %66 = arith.divf %64, %65 : vector<2x128xf32>
    %67 = vector.extract_strided_slice %43 {offsets = [0, 256], sizes = [2, 128], strides = [1, 1]} : vector<2x384xf32> to vector<2x128xf32>
    %68 = vector.extract_strided_slice %50 {offsets = [0, 256], sizes = [2, 128], strides = [1, 1]} : vector<2x384xf32> to vector<2x128xf32>
    %69 = arith.mulf %58, %68 : vector<2x128xf32>
    %70 = arith.addf %67, %69 : vector<2x128xf32>
    %71 = math.tanh %70 : vector<2x128xf32>
    %cst_26 = arith.constant 1.000000e+00 : f32
    %72 = vector.broadcast %cst_26 : f32 to vector<2x128xf32>
    %73 = arith.subf %72, %66 : vector<2x128xf32>
    %74 = arith.mulf %73, %71 : vector<2x128xf32>
    %75 = arith.mulf %66, %44 : vector<2x128xf32>
    %76 = arith.addf %74, %75 : vector<2x128xf32>
    %c0_27 = arith.constant 0 : index
    %c0_28 = arith.constant 0 : index
    %77 = vector.load %arg15[%c0_27, %c0_28] : memref<2x128xf32, #tpu.memory_space<vmem>>, vector<2x128xf32>
    tpu.vector_store %arg15[%c0_27, %c0_28], %37 {strides = array<i32>} : memref<2x128xf32, #tpu.memory_space<vmem>>, vector<2x128xf32>,
    %c0_29 = arith.constant 0 : index
    %c0_30 = arith.constant 0 : index
    %78 = vector.load %arg16[%c0_29, %c0_30] : memref<2x128xf32, #tpu.memory_space<vmem>>, vector<2x128xf32>
    tpu.vector_store %arg16[%c0_29, %c0_30], %76 {strides = array<i32>} : memref<2x128xf32, #tpu.memory_space<vmem>>, vector<2x128xf32>,
    %c3_i32 = arith.constant 3 : i32
    %79 = arith.cmpi eq, %arg0, %c3_i32 : i32
    %80 = arith.extui %79 : i1 to i32
    %c0_i32_31 = arith.constant 0 : i32
    %81 = arith.cmpi ne, %80, %c0_i32_31 : i32
    scf.if %81 {
      %82 = arith.truncf %76 : vector<2x128xf32> to vector<2x128xbf16>
      %c0_32 = arith.constant 0 : index
      %c0_33 = arith.constant 0 : index
      %83 = vector.load %arg8[%c0_32, %c0_33] : memref<128x64xbf16, #tpu.memory_space<vmem>>, vector<128x64xbf16>
      %cst_34 = arith.constant dense<0.000000e+00> : vector<2x64xf32>
      %84 = tpu.matmul %82, %83, %cst_34 {dimension_numbers = #tpu.dot_dimension_numbers<[1], [0], [0], [1], [0, 0, 1, 1], [], []>} : vector<2x128xbf16>, vector<128x64xbf16>, vector<2x64xf32> -> vector<2x64xf32>
      %c0_35 = arith.constant 0 : index
      %c0_36 = arith.constant 0 : index
      %85 = vector.load %arg9[%c0_35, %c0_36] : memref<1x64xf32, #tpu.memory_space<vmem>>, vector<1x64xf32>
      %86 = vector.broadcast %85 : vector<1x64xf32> to vector<2x64xf32>
      %87 = arith.addf %84, %86 : vector<2x64xf32>
      %cst_37 = arith.constant 0.000000e+00 : f32
      %88 = vector.broadcast %cst_37 : f32 to vector<2x64xf32>
      %89 = arith.maximumf %87, %88 : vector<2x64xf32>
      %90 = arith.truncf %89 : vector<2x64xf32> to vector<2x64xbf16>
      %c0_38 = arith.constant 0 : index
      %c0_39 = arith.constant 0 : index
      %91 = vector.load %arg10[%c0_38, %c0_39] : memref<64x32xbf16, #tpu.memory_space<vmem>>, vector<64x32xbf16>
      %cst_40 = arith.constant dense<0.000000e+00> : vector<2x32xf32>
      %92 = tpu.matmul %90, %91, %cst_40 {dimension_numbers = #tpu.dot_dimension_numbers<[1], [0], [0], [1], [0, 0, 1, 1], [], []>} : vector<2x64xbf16>, vector<64x32xbf16>, vector<2x32xf32> -> vector<2x32xf32>
      %c0_41 = arith.constant 0 : index
      %c0_42 = arith.constant 0 : index
      %93 = vector.load %arg11[%c0_41, %c0_42] : memref<1x32xf32, #tpu.memory_space<vmem>>, vector<1x32xf32>
      %94 = vector.broadcast %93 : vector<1x32xf32> to vector<2x32xf32>
      %95 = arith.addf %92, %94 : vector<2x32xf32>
      %cst_43 = arith.constant 0.000000e+00 : f32
      %96 = vector.broadcast %cst_43 : f32 to vector<2x32xf32>
      %97 = arith.maximumf %95, %96 : vector<2x32xf32>
      %98 = arith.truncf %97 : vector<2x32xf32> to vector<2x32xbf16>
      %c0_44 = arith.constant 0 : index
      %c0_45 = arith.constant 0 : index
      %99 = vector.load %arg12[%c0_44, %c0_45] : memref<32x10xbf16, #tpu.memory_space<vmem>>, vector<32x10xbf16>
      %cst_46 = arith.constant dense<0.000000e+00> : vector<2x10xf32>
      %100 = tpu.matmul %98, %99, %cst_46 {dimension_numbers = #tpu.dot_dimension_numbers<[1], [0], [0], [1], [0, 0, 1, 1], [], []>} : vector<2x32xbf16>, vector<32x10xbf16>, vector<2x10xf32> -> vector<2x10xf32>
      %c0_47 = arith.constant 0 : index
      %c0_48 = arith.constant 0 : index
      %101 = vector.load %arg13[%c0_47, %c0_48] : memref<1x10xf32, #tpu.memory_space<vmem>>, vector<1x10xf32>
      %102 = vector.broadcast %101 : vector<1x10xf32> to vector<2x10xf32>
      %103 = arith.addf %100, %102 : vector<2x10xf32>
      %c0_49 = arith.constant 0 : index
      %c0_50 = arith.constant 0 : index
      %104 = vector.load %arg14[%c0_49, %c0_50] : memref<2x10xf32, #tpu.memory_space<vmem>>, vector<2x10xf32>
      tpu.vector_store %arg14[%c0_49, %c0_50], %103 {strides = array<i32>} : memref<2x10xf32, #tpu.memory_space<vmem>>, vector<2x10xf32>,
    } else {
    }
    return
  }
  func.func @transform_0(%arg0: i32) -> (i32, i32, i32) {
    %c0_i32 = arith.constant 0 : i32
    %c0_i32_0 = arith.constant 0 : i32
    %c0_i32_1 = arith.constant 0 : i32
    return %arg0, %c0_i32, %c0_i32_0 : i32, i32, i32
  }
  func.func @transform_1(%arg0: i32) -> (i32, i32) {
    %c0_i32 = arith.constant 0 : i32
    %c0_i32_0 = arith.constant 0 : i32
    %c0_i32_1 = arith.constant 0 : i32
    return %c0_i32, %c0_i32_0 : i32, i32
  }
  func.func @transform_2(%arg0: i32) -> (i32, i32) {
    %c0_i32 = arith.constant 0 : i32
    %c0_i32_0 = arith.constant 0 : i32
    %c0_i32_1 = arith.constant 0 : i32
    return %c0_i32, %c0_i32_0 : i32, i32
  }
  func.func @transform_3(%arg0: i32) -> (i32, i32) {
    %c0_i32 = arith.constant 0 : i32
    %c0_i32_0 = arith.constant 0 : i32
    %c0_i32_1 = arith.constant 0 : i32
    return %c0_i32, %c0_i32_0 : i32, i32
  }
  func.func @transform_4(%arg0: i32) -> (i32, i32) {
    %c0_i32 = arith.constant 0 : i32
    %c0_i32_0 = arith.constant 0 : i32
    %c0_i32_1 = arith.constant 0 : i32
    return %c0_i32, %c0_i32_0 : i32, i32
  }
  func.func @transform_5(%arg0: i32) -> (i32, i32) {
    %c0_i32 = arith.constant 0 : i32
    %c0_i32_0 = arith.constant 0 : i32
    %c0_i32_1 = arith.constant 0 : i32
    return %c0_i32, %c0_i32_0 : i32, i32
  }
  func.func @transform_6(%arg0: i32) -> (i32, i32) {
    %c0_i32 = arith.constant 0 : i32
    %c0_i32_0 = arith.constant 0 : i32
    %c0_i32_1 = arith.constant 0 : i32
    return %c0_i32, %c0_i32_0 : i32, i32
  }
  func.func @transform_7(%arg0: i32) -> (i32, i32) {
    %c0_i32 = arith.constant 0 : i32
    %c0_i32_0 = arith.constant 0 : i32
    %c0_i32_1 = arith.constant 0 : i32
    return %c0_i32, %c0_i32_0 : i32, i32
  }
  func.func @transform_8(%arg0: i32) -> (i32, i32) {
    %c0_i32 = arith.constant 0 : i32
    %c0_i32_0 = arith.constant 0 : i32
    %c0_i32_1 = arith.constant 0 : i32
    return %c0_i32, %c0_i32_0 : i32, i32
  }
  func.func @transform_9(%arg0: i32) -> (i32, i32) {
    %c0_i32 = arith.constant 0 : i32
    %c0_i32_0 = arith.constant 0 : i32
    %c0_i32_1 = arith.constant 0 : i32
    return %c0_i32, %c0_i32_0 : i32, i32
  }
  func.func @transform_10(%arg0: i32) -> (i32, i32) {
    %c0_i32 = arith.constant 0 : i32
    %c0_i32_0 = arith.constant 0 : i32
    %c0_i32_1 = arith.constant 0 : i32
    return %c0_i32, %c0_i32_0 : i32, i32
  }
  func.func @transform_11(%arg0: i32) -> (i32, i32) {
    %c0_i32 = arith.constant 0 : i32
    %c0_i32_0 = arith.constant 0 : i32
    %c0_i32_1 = arith.constant 0 : i32
    return %c0_i32, %c0_i32_0 : i32, i32
  }
  func.func @transform_12(%arg0: i32) -> (i32, i32) {
    %c0_i32 = arith.constant 0 : i32
    %c0_i32_0 = arith.constant 0 : i32
    %c0_i32_1 = arith.constant 0 : i32
    return %c0_i32, %c0_i32_0 : i32, i32
  }
  func.func @transform_13(%arg0: i32) -> (i32, i32) {
    %c0_i32 = arith.constant 0 : i32
    %c0_i32_0 = arith.constant 0 : i32
    %c0_i32_1 = arith.constant 0 : i32
    return %c0_i32, %c0_i32_0 : i32, i32
  }
}

</mosaic_0001>

<llo_original>
// kernel: cortical_column_net_v4.4
$region0: #{cortical_column_net_v4.4}
  #allocation0 [shape = 'u32[]', space=smem, size = 0x4, offset = 0x4, fixed_abs, tag = 'smem constant byte address 0x4 - core index']
  #allocation1 [shape = 'u32[144,128]{1,0:T(1,128)}', space=vmem, size = 0x12000, scoped, tag = 'internal scratch']
  %s0 = inlined_call_operand.vmem [shape: bf16[512,9], index: 0, kind: input, shape index: {}]
  %s1 = inlined_call_operand.vmem [shape: bf16[9,16], index: 1, kind: input, shape index: {}]
  %s2 = inlined_call_operand.vmem [shape: f32[1,16], index: 2, kind: input, shape index: {}]
  %s3 = inlined_call_operand.vmem [shape: bf16[512,16], index: 3, kind: output, shape index: {}]
  %s4 = sld [smem:[#allocation0]]
  $region22: #{cortical_column_net_v4.4} parent=0
    _
  %s6 = ssub.s32 1, %s4
  %s7 = scalar_select 0, %s6, %s4
  // Predicated region
  $region2: #{cortical_column_net_v4.4} parent=0 // pred_check
    _
  $region3: #{cortical_column_net_v4.4} parent=0 // pred_check_branch
    %9 = sbr.rel (0) target = $region5
  $region4: #{cortical_column_net_v4.4} parent=0 // pred_region
    _
  $region5: #{cortical_column_net_v4.4} parent=0 // pred_fallthru
    _
  // Predicated region
  $region6: #{cortical_column_net_v4.4} parent=0 // pred_check
    _
  $region7: #{cortical_column_net_v4.4} parent=0 // pred_check_branch
    %11 = sbr.rel (0) target = $region9
  $region8: #{cortical_column_net_v4.4} parent=0 // pred_region
    _
  $region9: #{cortical_column_net_v4.4} parent=0 // pred_fallthru
    _
  // Predicated region
  $region10: #{cortical_column_net_v4.4} parent=0 // pred_check
    _
  $region11: #{cortical_column_net_v4.4} parent=0 // pred_check_branch
    %13 = sbr.rel (0) target = $region13
  $region12: #{cortical_column_net_v4.4} parent=0 // pred_region
    _
  $region13: #{cortical_column_net_v4.4} parent=0 // pred_fallthru
    _
  %v15 = vld [vmem:[%s0] sm:$0xf]
  %v16 = vld [vmem:[%s0 + $0x4] sm:$0xf]
  %v17 = vld [vmem:[%s0 + $0x8] sm:$0xf]
  %v18 = vld [vmem:[%s0 + $0xc] sm:$0xf]
  %v19 = vld [vmem:[%s0 + $0x10] sm:$0xf]
  %v20 = vld [vmem:[%s0 + $0x14] sm:$0xf]
  %v21 = vld [vmem:[%s0 + $0x18] sm:$0xf]
  %v22 = vld [vmem:[%s0 + $0x1c] sm:$0xf]
  %v23 = vld [vmem:[%s0 + $0x20] sm:$0xf]
  %v24 = vld [vmem:[%s0 + $0x24] sm:$0xf]
  %v25 = vld [vmem:[%s0 + $0x28] sm:$0xf]
  %v26 = vld [vmem:[%s0 + $0x2c] sm:$0xf]
  %v27 = vld [vmem:[%s0 + $0x30] sm:$0xf]
  %v28 = vld [vmem:[%s0 + $0x34] sm:$0xf]
  %v29 = vld [vmem:[%s0 + $0x38] sm:$0xf]
  %v30 = vld [vmem:[%s0 + $0x3c] sm:$0xf]
  %v31 = vld [vmem:[%s0 + $0x40] sm:$0xf]
  %v32 = vld [vmem:[%s0 + $0x44] sm:$0xf]
  %v33 = vld [vmem:[%s0 + $0x48] sm:$0xf]
  %v34 = vld [vmem:[%s0 + $0x4c] sm:$0xf]
  %v35 = vld [vmem:[%s0 + $0x50] sm:$0xf]
  %v36 = vld [vmem:[%s0 + $0x54] sm:$0xf]
  %v37 = vld [vmem:[%s0 + $0x58] sm:$0xf]
  %v38 = vld [vmem:[%s0 + $0x5c] sm:$0xf]
  %v39 = vld [vmem:[%s0 + $0x60] sm:$0xf]
  %v40 = vld [vmem:[%s0 + $0x64] sm:$0xf]
  %v41 = vld [vmem:[%s0 + $0x68] sm:$0xf]
  %v42 = vld [vmem:[%s0 + $0x6c] sm:$0xf]
  %v43 = vld [vmem:[%s0 + $0x70] sm:$0xf]
  %v44 = vld [vmem:[%s0 + $0x74] sm:$0xf]
  %v45 = vld [vmem:[%s0 + $0x78] sm:$0xf]
  %v46 = vld [vmem:[%s0 + $0x7c] sm:$0xf]
  %v47 = vld [vmem:[%s0 + $0x80] sm:$0xf]
  %v48 = vld [vmem:[%s0 + $0x84] sm:$0xf]
  %v49 = vld [vmem:[%s0 + $0x88] sm:$0xf]
  %v50 = vld [vmem:[%s0 + $0x8c] sm:$0xf]
  %v51 = vld [vmem:[%s0 + $0x90] sm:$0xf]
  %v52 = vld [vmem:[%s0 + $0x94] sm:$0xf]
  %v53 = vld [vmem:[%s0 + $0x98] sm:$0xf]
  %v54 = vld [vmem:[%s0 + $0x9c] sm:$0xf]
  %v55 = vld [vmem:[%s0 + $0xa0] sm:$0xf]
  %v56 = vld [vmem:[%s0 + $0xa4] sm:$0xf]
  %v57 = vld [vmem:[%s0 + $0xa8] sm:$0xf]
  %v58 = vld [vmem:[%s0 + $0xac] sm:$0xf]
  %v59 = vld [vmem:[%s0 + $0xb0] sm:$0xf]
  %v60 = vld [vmem:[%s0 + $0xb4] sm:$0xf]
  %v61 = vld [vmem:[%s0 + $0xb8] sm:$0xf]
  %v62 = vld [vmem:[%s0 + $0xbc] sm:$0xf]
  %v63 = vld [vmem:[%s0 + $0xc0] sm:$0xf]
  %v64 = vld [vmem:[%s0 + $0xc4] sm:$0xf]
  %v65 = vld [vmem:[%s0 + $0xc8] sm:$0xf]
  %v66 = vld [vmem:[%s0 + $0xcc] sm:$0xf]
  %v67 = vld [vmem:[%s0 + $0xd0] sm:$0xf]
  %v68 = vld [vmem:[%s0 + $0xd4] sm:$0xf]
  %v69 = vld [vmem:[%s0 + $0xd8] sm:$0xf]
  %v70 = vld [vmem:[%s0 + $0xdc] sm:$0xf]
  %v71 = vld [vmem:[%s0 + $0xe0] sm:$0xf]
  %v72 = vld [vmem:[%s0 + $0xe4] sm:$0xf]
  %v73 = vld [vmem:[%s0 + $0xe8] sm:$0xf]
  %v74 = vld [vmem:[%s0 + $0xec] sm:$0xf]
  %v75 = vld [vmem:[%s0 + $0xf0] sm:$0xf]
  %v76 = vld [vmem:[%s0 + $0xf4] sm:$0xf]
  %v77 = vld [vmem:[%s0 + $0xf8] sm:$0xf]
  %v78 = vld [vmem:[%s0 + $0xfc] sm:$0xf]
  %v79 = vld [vmem:[%s1] sm:$0xf]
  %v80 = vld [vmem:[%s1 + $0x4] sm:$0x1]
  %v81 = vld [vmem:[%s2] sm:$0x1]
  %v83 = vlaneseq
  %v84 = vshrl.u32 %v83, 7
  %v85 = vsub.s32 0, %v84
  %v86 = vrot.slane %v81, %v85
  %v152 = vunpack.c.l.b16 %v15
  %v153 = vunpack.c.l.b16 %v16
  %v154 = vunpack.c.l.b16 %v17
  %v155 = vunpack.c.l.b16 %v18
  %v156 = vunpack.c.l.b16 %v19
  %v157 = vunpack.c.l.b16 %v20
  %v158 = vunpack.c.l.b16 %v21
  %v159 = vunpack.c.l.b16 %v22
  %v160 = vunpack.c.l.b16 %v23
  %v161 = vunpack.c.l.b16 %v24
  %v162 = vunpack.c.l.b16 %v25
  %v163 = vunpack.c.l.b16 %v26
  %v164 = vunpack.c.l.b16 %v27
  %v165 = vunpack.c.l.b16 %v28
  %v166 = vunpack.c.l.b16 %v29
  %v167 = vunpack.c.l.b16 %v30
  %v168 = vunpack.c.l.b16 %v31
  %v169 = vunpack.c.l.b16 %v32
  %v170 = vunpack.c.l.b16 %v33
  %v171 = vunpack.c.l.b16 %v34
  %v172 = vunpack.c.l.b16 %v35
  %v173 = vunpack.c.l.b16 %v36
  %v174 = vunpack.c.l.b16 %v37
  %v175 = vunpack.c.l.b16 %v38
  %v176 = vunpack.c.l.b16 %v39
  %v177 = vunpack.c.l.b16 %v40
  %v178 = vunpack.c.l.b16 %v41
  %v179 = vunpack.c.l.b16 %v42
  %v180 = vunpack.c.l.b16 %v43
  %v181 = vunpack.c.l.b16 %v44
  %v182 = vunpack.c.l.b16 %v45
  %v183 = vunpack.c.l.b16 %v46
  %v184 = vunpack.c.l.b16 %v47
  %v185 = vunpack.c.l.b16 %v48
  %v186 = vunpack.c.l.b16 %v49
  %v187 = vunpack.c.l.b16 %v50
  %v188 = vunpack.c.l.b16 %v51
  %v189 = vunpack.c.l.b16 %v52
  %v190 = vunpack.c.l.b16 %v53
  %v191 = vunpack.c.l.b16 %v54
  %v192 = vunpack.c.l.b16 %v55
  %v193 = vunpack.c.l.b16 %v56
  %v194 = vunpack.c.l.b16 %v57
  %v195 = vunpack.c.l.b16 %v58
  %v196 = vunpack.c.l.b16 %v59
  %v197 = vunpack.c.l.b16 %v60
  %v198 = vunpack.c.l.b16 %v61
  %v199 = vunpack.c.l.b16 %v62
  %v200 = vunpack.c.l.b16 %v63
  %v201 = vunpack.c.l.b16 %v64
  %v202 = vunpack.c.l.b16 %v65
  %v203 = vunpack.c.l.b16 %v66
  %v204 = vunpack.c.l.b16 %v67
  %v205 = vunpack.c.l.b16 %v68
  %v206 = vunpack.c.l.b16 %v69
  %v207 = vunpack.c.l.b16 %v70
  %v208 = vunpack.c.l.b16 %v71
  %v209 = vunpack.c.l.b16 %v72
  %v210 = vunpack.c.l.b16 %v73
  %v211 = vunpack.c.l.b16 %v74
  %v212 = vunpack.c.l.b16 %v75
  %v213 = vunpack.c.l.b16 %v76
  %v214 = vunpack.c.l.b16 %v77
  %v215 = vunpack.c.l.b16 %v78
  %v216 = vpack.c.b16 %v153, %v152
  %v217 = vpack.c.b16 %v155, %v154
  %v218 = vpack.c.b16 %v157, %v156
  %v219 = vpack.c.b16 %v159, %v158
  %v220 = vpack.c.b16 %v161, %v160
  %v221 = vpack.c.b16 %v163, %v162
  %v222 = vpack.c.b16 %v165, %v164
  %v223 = vpack.c.b16 %v167, %v166
  %v224 = vpack.c.b16 %v169, %v168
  %v225 = vpack.c.b16 %v171, %v170
  %v226 = vpack.c.b16 %v173, %v172
  %v227 = vpack.c.b16 %v175, %v174
  %v228 = vpack.c.b16 %v177, %v176
  %v229 = vpack.c.b16 %v179, %v178
  %v230 = vpack.c.b16 %v181, %v180
  %v231 = vpack.c.b16 %v183, %v182
  %v232 = vpack.c.b16 %v185, %v184
  %v233 = vpack.c.b16 %v187, %v186
  %v234 = vpack.c.b16 %v189, %v188
  %v235 = vpack.c.b16 %v191, %v190
  %v236 = vpack.c.b16 %v193, %v192
  %v237 = vpack.c.b16 %v195, %v194
  %v238 = vpack.c.b16 %v197, %v196
  %v239 = vpack.c.b16 %v199, %v198
  %v240 = vpack.c.b16 %v201, %v200
  %v241 = vpack.c.b16 %v203, %v202
  %v242 = vpack.c.b16 %v205, %v204
  %v243 = vpack.c.b16 %v207, %v206
  %v244 = vpack.c.b16 %v209, %v208
  %v245 = vpack.c.b16 %v211, %v210
  %v246 = vpack.c.b16 %v213, %v212
  %v247 = vpack.c.b16 %v215, %v214
  %v250 = vunpack.c.l.b16 %v79
  %v251 = vunpack.c.l.b16 %v80
  %v252 = vpack.c.b16 %v251, %v250
  %vm253 = vcmask 72704
  %v255 = vsel %vm253, %v216, 0
  %v258 = vsel %vm253, %v217, 0
  %v261 = vsel %vm253, %v218, 0
  %v264 = vsel %vm253, %v219, 0
  %v267 = vsel %vm253, %v220, 0
  %v270 = vsel %vm253, %v221, 0
  %v273 = vsel %vm253, %v222, 0
  %v276 = vsel %vm253, %v223, 0
  %v279 = vsel %vm253, %v224, 0
  %v282 = vsel %vm253, %v225, 0
  %v285 = vsel %vm253, %v226, 0
  %v288 = vsel %vm253, %v227, 0
  %v291 = vsel %vm253, %v228, 0
  %v294 = vsel %vm253, %v229, 0
  %v297 = vsel %vm253, %v230, 0
  %v300 = vsel %vm253, %v231, 0
  %v303 = vsel %vm253, %v232, 0
  %v306 = vsel %vm253, %v233, 0
  %v309 = vsel %vm253, %v234, 0
  %v312 = vsel %vm253, %v235, 0
  %v315 = vsel %vm253, %v236, 0
  %v318 = vsel %vm253, %v237, 0
  %v321 = vsel %vm253, %v238, 0
  %v324 = vsel %vm253, %v239, 0
  %v327 = vsel %vm253, %v240, 0
  %v330 = vsel %vm253, %v241, 0
  %v333 = vsel %vm253, %v242, 0
  %v336 = vsel %vm253, %v243, 0
  %v339 = vsel %vm253, %v244, 0
  %v342 = vsel %vm253, %v245, 0
  %v345 = vsel %vm253, %v246, 0
  %v348 = vsel %vm253, %v247, 0
  %vm350 = vcmask 1043456
  %vm351 = vcmask 1044480
  %v352 = vsel %vm350, 4294967295, 65535
  %v353 = vsel %vm351, %v352, 0
  %v355 = vand.u32 %v252, %v353
  %357 = vmatprep.subr.bf16.mxu0 0
  %358 = vmatpush1.bf16.msra.mxu0 %v355
  %359 = vmatprep.subr.bf16.mxu0 0
  %360 = vmatpush1.bf16.msra.mxu0 0
  %361 = vmatprep.subr.bf16.mxu0 0
  %362 = vmatpush1.bf16.msra.mxu0 0
  %363 = vmatprep.subr.bf16.mxu0 0
  %364 = vmatpush1.bf16.msra.mxu0 0
  %365 = vmatprep.subr.bf16.mxu0 0
  %366 = vmatpush1.bf16.msra.mxu0 0
  %367 = vmatprep.subr.bf16.mxu0 0
  %368 = vmatpush1.bf16.msra.mxu0 0
  %369 = vmatprep.subr.bf16.mxu0 0
  %370 = vmatpush1.bf16.msra.mxu0 0
  %371 = vmatprep.subr.bf16.mxu0 0
  %372 = vmatpush1.bf16.msra.mxu0 0
  %373 = vmatprep.subr.bf16.mxu0 0
  %374 = vmatpush1.bf16.msra.mxu0 0
  %375 = vmatprep.subr.bf16.mxu0 0
  %376 = vmatpush1.bf16.msra.mxu0 0
  %377 = vmatprep.subr.bf16.mxu0 0
  %378 = vmatpush1.bf16.msra.mxu0 0
  %379 = vmatprep.subr.bf16.mxu0 0
  %380 = vmatpush1.bf16.msra.mxu0 0
  %381 = vmatprep.subr.bf16.mxu0 0
  %382 = vmatpush1.bf16.msra.mxu0 0
  %383 = vmatprep.subr.bf16.mxu0 0
  %384 = vmatpush1.bf16.msra.mxu0 0
  %385 = vmatprep.subr.bf16.mxu0 0
  %386 = vmatpush1.bf16.msra.mxu0 0
  %387 = vmatprep.subr.bf16.mxu0 0
  %388 = vmatpush1.bf16.msra.mxu0 0
  %389 = vmatprep.mubr.bf16.mxu0 0
  %390 = vmatmul.mubr.bf16.gmra.mrb[0].mxu0 %v255
  %v391 = vpop.f32.mrb[0].mxu0
  %v392 = vadd.f32 %v86, %v391
  %v393 = vpop.f32.mrb[0].mxu0
  %v394 = vpop.f32.mrb[0].mxu0
  %v395 = vadd.f32 %v86, %v394
  %v396 = vpop.f32.mrb[0].mxu0
  %397 = vmatprep.mubr.bf16.mxu0 0
  %398 = vmatmul.mubr.bf16.gmra.mrb[0].mxu0 %v258
  %v399 = vpop.f32.mrb[0].mxu0
  %v400 = vadd.f32 %v86, %v399
  %v401 = vpop.f32.mrb[0].mxu0
  %v402 = vpop.f32.mrb[0].mxu0
  %v403 = vadd.f32 %v86, %v402
  %v404 = vpop.f32.mrb[0].mxu0
  %405 = vmatprep.mubr.bf16.mxu0 0
  %406 = vmatmul.mubr.bf16.gmra.mrb[0].mxu0 %v261
  %v407 = vpop.f32.mrb[0].mxu0
  %v408 = vadd.f32 %v86, %v407
  %v409 = vpop.f32.mrb[0].mxu0
  %v410 = vpop.f32.mrb[0].mxu0
  %v411 = vadd.f32 %v86, %v410
  %v412 = vpop.f32.mrb[0].mxu0
  %413 = vmatprep.mubr.bf16.mxu0 0
  %414 = vmatmul.mubr.bf16.gmra.mrb[0].mxu0 %v264
  %v415 = vpop.f32.mrb[0].mxu0
  %v416 = vadd.f32 %v86, %v415
  %v417 = vpop.f32.mrb[0].mxu0
  %v418 = vpop.f32.mrb[0].mxu0
  %v419 = vadd.f32 %v86, %v418
  %v420 = vpop.f32.mrb[0].mxu0
  %421 = vmatprep.mubr.bf16.mxu0 0
  %422 = vmatmul.mubr.bf16.gmra.mrb[0].mxu0 %v267
  %v423 = vpop.f32.mrb[0].mxu0
  %v424 = vadd.f32 %v86, %v423
  %v425 = vpop.f32.mrb[0].mxu0
  %v426 = vpop.f32.mrb[0].mxu0
  %v427 = vadd.f32 %v86, %v426
  %v428 = vpop.f32.mrb[0].mxu0
  %429 = vmatprep.mubr.bf16.mxu0 0
  %430 = vmatmul.mubr.bf16.gmra.mrb[0].mxu0 %v270
  %v431 = vpop.f32.mrb[0].mxu0
  %v432 = vadd.f32 %v86, %v431
  %v433 = vpop.f32.mrb[0].mxu0
  %v434 = vpop.f32.mrb[0].mxu0
  %v435 = vadd.f32 %v86, %v434
  %v436 = vpop.f32.mrb[0].mxu0
  %437 = vmatprep.mubr.bf16.mxu0 0
  %438 = vmatmul.mubr.bf16.gmra.mrb[0].mxu0 %v273
  %v439 = vpop.f32.mrb[0].mxu0
  %v440 = vadd.f32 %v86, %v439
  %v441 = vpop.f32.mrb[0].mxu0
  %v442 = vpop.f32.mrb[0].mxu0
  %v443 = vadd.f32 %v86, %v442
  %v444 = vpop.f32.mrb[0].mxu0
  %445 = vmatprep.mubr.bf16.mxu0 0
  %446 = vmatmul.mubr.bf16.gmra.mrb[0].mxu0 %v276
  %v447 = vpop.f32.mrb[0].mxu0
  %v448 = vadd.f32 %v86, %v447
  %v449 = vpop.f32.mrb[0].mxu0
  %v450 = vpop.f32.mrb[0].mxu0
  %v451 = vadd.f32 %v86, %v450
  %v452 = vpop.f32.mrb[0].mxu0
  %453 = vmatprep.mubr.bf16.mxu0 0
  %454 = vmatmul.mubr.bf16.gmra.mrb[0].mxu0 %v279
  %v455 = vpop.f32.mrb[0].mxu0
  %v456 = vadd.f32 %v86, %v455
  %v457 = vpop.f32.mrb[0].mxu0
  %v458 = vpop.f32.mrb[0].mxu0
  %v459 = vadd.f32 %v86, %v458
  %v460 = vpop.f32.mrb[0].mxu0
  %461 = vmatprep.mubr.bf16.mxu0 0
  %462 = vmatmul.mubr.bf16.gmra.mrb[0].mxu0 %v282
  %v463 = vpop.f32.mrb[0].mxu0
  %v464 = vadd.f32 %v86, %v463
  %v465 = vpop.f32.mrb[0].mxu0
  %v466 = vpop.f32.mrb[0].mxu0
  %v467 = vadd.f32 %v86, %v466
  %v468 = vpop.f32.mrb[0].mxu0
  %469 = vmatprep.mubr.bf16.mxu0 0
  %470 = vmatmul.mubr.bf16.gmra.mrb[0].mxu0 %v285
  %v471 = vpop.f32.mrb[0].mxu0
  %v472 = vadd.f32 %v86, %v471
  %v473 = vpop.f32.mrb[0].mxu0
  %v474 = vpop.f32.mrb[0].mxu0
  %v475 = vadd.f32 %v86, %v474
  %v476 = vpop.f32.mrb[0].mxu0
  %477 = vmatprep.mubr.bf16.mxu0 0
  %478 = vmatmul.mubr.bf16.gmra.mrb[0].mxu0 %v288
  %v479 = vpop.f32.mrb[0].mxu0
  %v480 = vadd.f32 %v86, %v479
  %v481 = vpop.f32.mrb[0].mxu0
  %v482 = vpop.f32.mrb[0].mxu0
  %v483 = vadd.f32 %v86, %v482
  %v484 = vpop.f32.mrb[0].mxu0
  %485 = vmatprep.mubr.bf16.mxu0 0
  %486 = vmatmul.mubr.bf16.gmra.mrb[0].mxu0 %v291
  %v487 = vpop.f32.mrb[0].mxu0
  %v488 = vadd.f32 %v86, %v487
  %v489 = vpop.f32.mrb[0].mxu0
  %v490 = vpop.f32.mrb[0].mxu0
  %v491 = vadd.f32 %v86, %v490
  %v492 = vpop.f32.mrb[0].mxu0
  %493 = vmatprep.mubr.bf16.mxu0 0
  %494 = vmatmul.mubr.bf16.gmra.mrb[0].mxu0 %v294
  %v495 = vpop.f32.mrb[0].mxu0
  %v496 = vadd.f32 %v86, %v495
  %v497 = vpop.f32.mrb[0].mxu0
  %v498 = vpop.f32.mrb[0].mxu0
  %v499 = vadd.f32 %v86, %v498
  %v500 = vpop.f32.mrb[0].mxu0
  %501 = vmatprep.mubr.bf16.mxu0 0
  %502 = vmatmul.mubr.bf16.gmra.mrb[0].mxu0 %v297
  %v503 = vpop.f32.mrb[0].mxu0
  %v504 = vadd.f32 %v86, %v503
  %v505 = vpop.f32.mrb[0].mxu0
  %v506 = vpop.f32.mrb[0].mxu0
  %v507 = vadd.f32 %v86, %v506
  %v508 = vpop.f32.mrb[0].mxu0
  %509 = vmatprep.mubr.bf16.mxu0 0
  %510 = vmatmul.mubr.bf16.gmra.mrb[0].mxu0 %v300
  %v511 = vpop.f32.mrb[0].mxu0
  %v512 = vadd.f32 %v86, %v511
  %v513 = vpop.f32.mrb[0].mxu0
  %v514 = vpop.f32.mrb[0].mxu0
  %v515 = vadd.f32 %v86, %v514
  %v516 = vpop.f32.mrb[0].mxu0
  %517 = vmatprep.mubr.bf16.mxu0 0
  %518 = vmatmul.mubr.bf16.gmra.mrb[0].mxu0 %v303
  %v519 = vpop.f32.mrb[0].mxu0
  %v520 = vadd.f32 %v86, %v519
  %v521 = vpop.f32.mrb[0].mxu0
  %v522 = vpop.f32.mrb[0].mxu0
  %v523 = vadd.f32 %v86, %v522
  %v524 = vpop.f32.mrb[0].mxu0
  %525 = vmatprep.mubr.bf16.mxu0 0
  %526 = vmatmul.mubr.bf16.gmra.mrb[0].mxu0 %v306
  %v527 = vpop.f32.mrb[0].mxu0
  %v528 = vadd.f32 %v86, %v527
  %v529 = vpop.f32.mrb[0].mxu0
  %v530 = vpop.f32.mrb[0].mxu0
  %v531 = vadd.f32 %v86, %v530
  %v532 = vpop.f32.mrb[0].mxu0
  %533 = vmatprep.mubr.bf16.mxu0 0
  %534 = vmatmul.mubr.bf16.gmra.mrb[0].mxu0 %v309
  %v535 = vpop.f32.mrb[0].mxu0
  %v536 = vadd.f32 %v86, %v535
  %v537 = vpop.f32.mrb[0].mxu0
  %v538 = vpop.f32.mrb[0].mxu0
  %v539 = vadd.f32 %v86, %v538
  %v540 = vpop.f32.mrb[0].mxu0
  %541 = vmatprep.mubr.bf16.mxu0 0
  %542 = vmatmul.mubr.bf16.gmra.mrb[0].mxu0 %v312
  %v543 = vpop.f32.mrb[0].mxu0
  %v544 = vadd.f32 %v86, %v543
  %v545 = vpop.f32.mrb[0].mxu0
  %v546 = vpop.f32.mrb[0].mxu0
  %v547 = vadd.f32 %v86, %v546
  %v548 = vpop.f32.mrb[0].mxu0
  %549 = vmatprep.mubr.bf16.mxu0 0
  %550 = vmatmul.mubr.bf16.gmra.mrb[0].mxu0 %v315
  %v551 = vpop.f32.mrb[0].mxu0
  %v552 = vadd.f32 %v86, %v551
  %v553 = vpop.f32.mrb[0].mxu0
  %v554 = vpop.f32.mrb[0].mxu0
  %v555 = vadd.f32 %v86, %v554
  %v556 = vpop.f32.mrb[0].mxu0
  %557 = vmatprep.mubr.bf16.mxu0 0
  %558 = vmatmul.mubr.bf16.gmra.mrb[0].mxu0 %v318
  %v559 = vpop.f32.mrb[0].mxu0
  %v560 = vadd.f32 %v86, %v559
  %v561 = vpop.f32.mrb[0].mxu0
  %v562 = vpop.f32.mrb[0].mxu0
  %v563 = vadd.f32 %v86, %v562
  %v564 = vpop.f32.mrb[0].mxu0
  %565 = vmatprep.mubr.bf16.mxu0 0
  %566 = vmatmul.mubr.bf16.gmra.mrb[0].mxu0 %v321
  %v567 = vpop.f32.mrb[0].mxu0
  %v568 = vadd.f32 %v86, %v567
  %v569 = vpop.f32.mrb[0].mxu0
  %v570 = vpop.f32.mrb[0].mxu0
  %v571 = vadd.f32 %v86, %v570
  %v572 = vpop.f32.mrb[0].mxu0
  %573 = vmatprep.mubr.bf16.mxu0 0
  %574 = vmatmul.mubr.bf16.gmra.mrb[0].mxu0 %v324
  %v575 = vpop.f32.mrb[0].mxu0
  %v576 = vadd.f32 %v86, %v575
  %v577 = vpop.f32.mrb[0].mxu0
  %v578 = vpop.f32.mrb[0].mxu0
  %v579 = vadd.f32 %v86, %v578
  %v580 = vpop.f32.mrb[0].mxu0
  %581 = vmatprep.mubr.bf16.mxu0 0
  %582 = vmatmul.mubr.bf16.gmra.mrb[0].mxu0 %v327
  %v583 = vpop.f32.mrb[0].mxu0
  %v584 = vadd.f32 %v86, %v583
  %v585 = vpop.f32.mrb[0].mxu0
  %v586 = vpop.f32.mrb[0].mxu0
  %v587 = vadd.f32 %v86, %v586
  %v588 = vpop.f32.mrb[0].mxu0
  %589 = vmatprep.mubr.bf16.mxu0 0
  %590 = vmatmul.mubr.bf16.gmra.mrb[0].mxu0 %v330
  %v591 = vpop.f32.mrb[0].mxu0
  %v592 = vadd.f32 %v86, %v591
  %v593 = vpop.f32.mrb[0].mxu0
  %v594 = vpop.f32.mrb[0].mxu0
  %v595 = vadd.f32 %v86, %v594
  %v596 = vpop.f32.mrb[0].mxu0
  %597 = vmatprep.mubr.bf16.mxu0 0
  %598 = vmatmul.mubr.bf16.gmra.mrb[0].mxu0 %v333
  %v599 = vpop.f32.mrb[0].mxu0
  %v600 = vadd.f32 %v86, %v599
  %v601 = vpop.f32.mrb[0].mxu0
  %v602 = vpop.f32.mrb[0].mxu0
  %v603 = vadd.f32 %v86, %v602
  %v604 = vpop.f32.mrb[0].mxu0
  %605 = vmatprep.mubr.bf16.mxu0 0
  %606 = vmatmul.mubr.bf16.gmra.mrb[0].mxu0 %v336
  %v607 = vpop.f32.mrb[0].mxu0
  %v608 = vadd.f32 %v86, %v607
  %v609 = vpop.f32.mrb[0].mxu0
  %v610 = vpop.f32.mrb[0].mxu0
  %v611 = vadd.f32 %v86, %v610
  %v612 = vpop.f32.mrb[0].mxu0
  %613 = vmatprep.mubr.bf16.mxu0 0
  %614 = vmatmul.mubr.bf16.gmra.mrb[0].mxu0 %v339
  %v615 = vpop.f32.mrb[0].mxu0
  %v616 = vadd.f32 %v86, %v615
  %v617 = vpop.f32.mrb[0].mxu0
  %v618 = vpop.f32.mrb[0].mxu0
  %v619 = vadd.f32 %v86, %v618
  %v620 = vpop.f32.mrb[0].mxu0
  %621 = vmatprep.mubr.bf16.mxu0 0
  %622 = vmatmul.mubr.bf16.gmra.mrb[0].mxu0 %v342
  %v623 = vpop.f32.mrb[0].mxu0
  %v624 = vadd.f32 %v86, %v623
  %v625 = vpop.f32.mrb[0].mxu0
  %v626 = vpop.f32.mrb[0].mxu0
  %v627 = vadd.f32 %v86, %v626
  %v628 = vpop.f32.mrb[0].mxu0
  %629 = vmatprep.mubr.bf16.mxu0 0
  %630 = vmatmul.mubr.bf16.gmra.mrb[0].mxu0 %v345
  %v631 = vpop.f32.mrb[0].mxu0
  %v632 = vadd.f32 %v86, %v631
  %v633 = vpop.f32.mrb[0].mxu0
  %v634 = vpop.f32.mrb[0].mxu0
  %v635 = vadd.f32 %v86, %v634
  %v636 = vpop.f32.mrb[0].mxu0
  %637 = vmatprep.mubr.bf16.mxu0 0
  %638 = vmatmul.mubr.bf16.gmra.mrb[0].mxu0 %v348
  %v639 = vpop.f32.mrb[0].mxu0
  %v640 = vadd.f32 %v86, %v639
  %v641 = vpop.f32.mrb[0].mxu0
  %v642 = vpop.f32.mrb[0].mxu0
  %v643 = vadd.f32 %v86, %v642
  %v644 = vpop.f32.mrb[0].mxu0
  %645 = vdwg.mxu0
  %v646 = vmax.f32 %v392, 0.0
  %v647 = vmax.f32 %v395, 0.0
  %v648 = vmax.f32 %v400, 0.0
  %v649 = vmax.f32 %v403, 0.0
  %v650 = vmax.f32 %v408, 0.0
  %v651 = vmax.f32 %v411, 0.0
  %v652 = vmax.f32 %v416, 0.0
  %v653 = vmax.f32 %v419, 0.0
  %v654 = vmax.f32 %v424, 0.0
  %v655 = vmax.f32 %v427, 0.0
  %v656 = vmax.f32 %v432, 0.0
  %v657 = vmax.f32 %v435, 0.0
  %v658 = vmax.f32 %v440, 0.0
  %v659 = vmax.f32 %v443, 0.0
  %v660 = vmax.f32 %v448, 0.0
  %v661 = vmax.f32 %v451, 0.0
  %v662 = vmax.f32 %v456, 0.0
  %v663 = vmax.f32 %v459, 0.0
  %v664 = vmax.f32 %v464, 0.0
  %v665 = vmax.f32 %v467, 0.0
  %v666 = vmax.f32 %v472, 0.0
  %v667 = vmax.f32 %v475, 0.0
  %v668 = vmax.f32 %v480, 0.0
  %v669 = vmax.f32 %v483, 0.0
  %v670 = vmax.f32 %v488, 0.0
  %v671 = vmax.f32 %v491, 0.0
  %v672 = vmax.f32 %v496, 0.0
  %v673 = vmax.f32 %v499, 0.0
  %v674 = vmax.f32 %v504, 0.0
  %v675 = vmax.f32 %v507, 0.0
  %v676 = vmax.f32 %v512, 0.0
  %v677 = vmax.f32 %v515, 0.0
  %v678 = vmax.f32 %v520, 0.0
  %v679 = vmax.f32 %v523, 0.0
  %v680 = vmax.f32 %v528, 0.0
  %v681 = vmax.f32 %v531, 0.0
  %v682 = vmax.f32 %v536, 0.0
  %v683 = vmax.f32 %v539, 0.0
  %v684 = vmax.f32 %v544, 0.0
  %v685 = vmax.f32 %v547, 0.0
  %v686 = vmax.f32 %v552, 0.0
  %v687 = vmax.f32 %v555, 0.0
  %v688 = vmax.f32 %v560, 0.0
  %v689 = vmax.f32 %v563, 0.0
  %v690 = vmax.f32 %v568, 0.0
  %v691 = vmax.f32 %v571, 0.0
  %v692 = vmax.f32 %v576, 0.0
  %v693 = vmax.f32 %v579, 0.0
  %v694 = vmax.f32 %v584, 0.0
  %v695 = vmax.f32 %v587, 0.0
  %v696 = vmax.f32 %v592, 0.0
  %v697 = vmax.f32 %v595, 0.0
  %v698 = vmax.f32 %v600, 0.0
  %v699 = vmax.f32 %v603, 0.0
  %v700 = vmax.f32 %v608, 0.0
  %v701 = vmax.f32 %v611, 0.0
  %v702 = vmax.f32 %v616, 0.0
  %v703 = vmax.f32 %v619, 0.0
  %v704 = vmax.f32 %v624, 0.0
  %v705 = vmax.f32 %v627, 0.0
  %v706 = vmax.f32 %v632, 0.0
  %v707 = vmax.f32 %v635, 0.0
  %v708 = vmax.f32 %v640, 0.0
  %v709 = vmax.f32 %v643, 0.0
  %v710 = vpack.c.bf16 %v647, %v646
  %v711 = vpack.c.bf16 %v649, %v648
  %v712 = vpack.c.bf16 %v651, %v650
  %v713 = vpack.c.bf16 %v653, %v652
  %v714 = vpack.c.bf16 %v655, %v654
  %v715 = vpack.c.bf16 %v657, %v656
  %v716 = vpack.c.bf16 %v659, %v658
  %v717 = vpack.c.bf16 %v661, %v660
  %v718 = vpack.c.bf16 %v663, %v662
  %v719 = vpack.c.bf16 %v665, %v664
  %v720 = vpack.c.bf16 %v667, %v666
  %v721 = vpack.c.bf16 %v669, %v668
  %v722 = vpack.c.bf16 %v671, %v670
  %v723 = vpack.c.bf16 %v673, %v672
  %v724 = vpack.c.bf16 %v675, %v674
  %v725 = vpack.c.bf16 %v677, %v676
  %v726 = vpack.c.bf16 %v679, %v678
  %v727 = vpack.c.bf16 %v681, %v680
  %v728 = vpack.c.bf16 %v683, %v682
  %v729 = vpack.c.bf16 %v685, %v684
  %v730 = vpack.c.bf16 %v687, %v686
  %v731 = vpack.c.bf16 %v689, %v688
  %v732 = vpack.c.bf16 %v691, %v690
  %v733 = vpack.c.bf16 %v693, %v692
  %v734 = vpack.c.bf16 %v695, %v694
  %v735 = vpack.c.bf16 %v697, %v696
  %v736 = vpack.c.bf16 %v699, %v698
  %v737 = vpack.c.bf16 %v701, %v700
  %v738 = vpack.c.bf16 %v703, %v702
  %v739 = vpack.c.bf16 %v705, %v704
  %v740 = vpack.c.bf16 %v707, %v706
  %v741 = vpack.c.bf16 %v709, %v708
  %v774 = vunpack.c.l.b16 %v710
  %v775 = vunpack.c.h.b16 %v710
  %v776 = vunpack.c.l.b16 %v711
  %v777 = vunpack.c.h.b16 %v711
  %v778 = vunpack.c.l.b16 %v712
  %v779 = vunpack.c.h.b16 %v712
  %v780 = vunpack.c.l.b16 %v713
  %v781 = vunpack.c.h.b16 %v713
  %v782 = vunpack.c.l.b16 %v714
  %v783 = vunpack.c.h.b16 %v714
  %v784 = vunpack.c.l.b16 %v715
  %v785 = vunpack.c.h.b16 %v715
  %v786 = vunpack.c.l.b16 %v716
  %v787 = vunpack.c.h.b16 %v716
  %v788 = vunpack.c.l.b16 %v717
  %v789 = vunpack.c.h.b16 %v717
  %v790 = vunpack.c.l.b16 %v718
  %v791 = vunpack.c.h.b16 %v718
  %v792 = vunpack.c.l.b16 %v719
  %v793 = vunpack.c.h.b16 %v719
  %v794 = vunpack.c.l.b16 %v720
  %v795 = vunpack.c.h.b16 %v720
  %v796 = vunpack.c.l.b16 %v721
  %v797 = vunpack.c.h.b16 %v721
  %v798 = vunpack.c.l.b16 %v722
  %v799 = vunpack.c.h.b16 %v722
  %v800 = vunpack.c.l.b16 %v723
  %v801 = vunpack.c.h.b16 %v723
  %v802 = vunpack.c.l.b16 %v724
  %v803 = vunpack.c.h.b16 %v724
  %v804 = vunpack.c.l.b16 %v725
  %v805 = vunpack.c.h.b16 %v725
  %v806 = vunpack.c.l.b16 %v726
  %v807 = vunpack.c.h.b16 %v726
  %v808 = vunpack.c.l.b16 %v727
  %v809 = vunpack.c.h.b16 %v727
  %v810 = vunpack.c.l.b16 %v728
  %v811 = vunpack.c.h.b16 %v728
  %v812 = vunpack.c.l.b16 %v729
  %v813 = vunpack.c.h.b16 %v729
  %v814 = vunpack.c.l.b16 %v730
  %v815 = vunpack.c.h.b16 %v730
  %v816 = vunpack.c.l.b16 %v731
  %v817 = vunpack.c.h.b16 %v731
  %v818 = vunpack.c.l.b16 %v732
  %v819 = vunpack.c.h.b16 %v732
  %v820 = vunpack.c.l.b16 %v733
  %v821 = vunpack.c.h.b16 %v733
  %v822 = vunpack.c.l.b16 %v734
  %v823 = vunpack.c.h.b16 %v734
  %v824 = vunpack.c.l.b16 %v735
  %v825 = vunpack.c.h.b16 %v735
  %v826 = vunpack.c.l.b16 %v736
  %v827 = vunpack.c.h.b16 %v736
  %v828 = vunpack.c.l.b16 %v737
  %v829 = vunpack.c.h.b16 %v737
  %v830 = vunpack.c.l.b16 %v738
  %v831 = vunpack.c.h.b16 %v738
  %v832 = vunpack.c.l.b16 %v739
  %v833 = vunpack.c.h.b16 %v739
  %v834 = vunpack.c.l.b16 %v740
  %v835 = vunpack.c.h.b16 %v740
  %v836 = vunpack.c.l.b16 %v741
  %v837 = vunpack.c.h.b16 %v741
  %v838 = vpack.c.b16 %v774, %v774
  %v839 = vpack.c.b16 %v775, %v775
  %v840 = vpack.c.b16 %v776, %v776
  %v841 = vpack.c.b16 %v777, %v777
  %v842 = vpack.c.b16 %v778, %v778
  %v843 = vpack.c.b16 %v779, %v779
  %v844 = vpack.c.b16 %v780, %v780
  %v845 = vpack.c.b16 %v781, %v781
  %v846 = vpack.c.b16 %v782, %v782
  %v847 = vpack.c.b16 %v783, %v783
  %v848 = vpack.c.b16 %v784, %v784
  %v849 = vpack.c.b16 %v785, %v785
  %v850 = vpack.c.b16 %v786, %v786
  %v851 = vpack.c.b16 %v787, %v787
  %v852 = vpack.c.b16 %v788, %v788
  %v853 = vpack.c.b16 %v789, %v789
  %v854 = vpack.c.b16 %v790, %v790
  %v855 = vpack.c.b16 %v791, %v791
  %v856 = vpack.c.b16 %v792, %v792
  %v857 = vpack.c.b16 %v793, %v793
  %v858 = vpack.c.b16 %v794, %v794
  %v859 = vpack.c.b16 %v795, %v795
  %v860 = vpack.c.b16 %v796, %v796
  %v861 = vpack.c.b16 %v797, %v797
  %v862 = vpack.c.b16 %v798, %v798
  %v863 = vpack.c.b16 %v799, %v799
  %v864 = vpack.c.b16 %v800, %v800
  %v865 = vpack.c.b16 %v801, %v801
  %v866 = vpack.c.b16 %v802, %v802
  %v867 = vpack.c.b16 %v803, %v803
  %v868 = vpack.c.b16 %v804, %v804
  %v869 = vpack.c.b16 %v805, %v805
  %v870 = vpack.c.b16 %v806, %v806
  %v871 = vpack.c.b16 %v807, %v807
  %v872 = vpack.c.b16 %v808, %v808
  %v873 = vpack.c.b16 %v809, %v809
  %v874 = vpack.c.b16 %v810, %v810
  %v875 = vpack.c.b16 %v811, %v811
  %v876 = vpack.c.b16 %v812, %v812
  %v877 = vpack.c.b16 %v813, %v813
  %v878 = vpack.c.b16 %v814, %v814
  %v879 = vpack.c.b16 %v815, %v815
  %v880 = vpack.c.b16 %v816, %v816
  %v881 = vpack.c.b16 %v817, %v817
  %v882 = vpack.c.b16 %v818, %v818
  %v883 = vpack.c.b16 %v819, %v819
  %v884 = vpack.c.b16 %v820, %v820
  %v885 = vpack.c.b16 %v821, %v821
  %v886 = vpack.c.b16 %v822, %v822
  %v887 = vpack.c.b16 %v823, %v823
  %v888 = vpack.c.b16 %v824, %v824
  %v889 = vpack.c.b16 %v825, %v825
  %v890 = vpack.c.b16 %v826, %v826
  %v891 = vpack.c.b16 %v827, %v827
  %v892 = vpack.c.b16 %v828, %v828
  %v893 = vpack.c.b16 %v829, %v829
  %v894 = vpack.c.b16 %v830, %v830
  %v895 = vpack.c.b16 %v831, %v831
  %v896 = vpack.c.b16 %v832, %v832
  %v897 = vpack.c.b16 %v833, %v833
  %v898 = vpack.c.b16 %v834, %v834
  %v899 = vpack.c.b16 %v835, %v835
  %v900 = vpack.c.b16 %v836, %v836
  %v901 = vpack.c.b16 %v837, %v837
  %vm966 = vcmask 125952
  %967 = vst.msk [vmem:[%s3] sm:$0xf] %vm966, %v838
  %968 = vst.msk [vmem:[%s3 + $0x4] sm:$0xf] %vm966, %v839
  %969 = vst.msk [vmem:[%s3 + $0x8] sm:$0xf] %vm966, %v840
  %970 = vst.msk [vmem:[%s3 + $0xc] sm:$0xf] %vm966, %v841
  %971 = vst.msk [vmem:[%s3 + $0x10] sm:$0xf] %vm966, %v842
  %972 = vst.msk [vmem:[%s3 + $0x14] sm:$0xf] %vm966, %v843
  %973 = vst.msk [vmem:[%s3 + $0x18] sm:$0xf] %vm966, %v844
  %974 = vst.msk [vmem:[%s3 + $0x1c] sm:$0xf] %vm966, %v845
  %975 = vst.msk [vmem:[%s3 + $0x20] sm:$0xf] %vm966, %v846
  %976 = vst.msk [vmem:[%s3 + $0x24] sm:$0xf] %vm966, %v847
  %977 = vst.msk [vmem:[%s3 + $0x28] sm:$0xf] %vm966, %v848
  %978 = vst.msk [vmem:[%s3 + $0x2c] sm:$0xf] %vm966, %v849
  %979 = vst.msk [vmem:[%s3 + $0x30] sm:$0xf] %vm966, %v850
  %980 = vst.msk [vmem:[%s3 + $0x34] sm:$0xf] %vm966, %v851
  %981 = vst.msk [vmem:[%s3 + $0x38] sm:$0xf] %vm966, %v852
  %982 = vst.msk [vmem:[%s3 + $0x3c] sm:$0xf] %vm966, %v853
  %983 = vst.msk [vmem:[%s3 + $0x40] sm:$0xf] %vm966, %v854
  %984 = vst.msk [vmem:[%s3 + $0x44] sm:$0xf] %vm966, %v855
  %985 = vst.msk [vmem:[%s3 + $0x48] sm:$0xf] %vm966, %v856
  %986 = vst.msk [vmem:[%s3 + $0x4c] sm:$0xf] %vm966, %v857
  %987 = vst.msk [vmem:[%s3 + $0x50] sm:$0xf] %vm966, %v858
  %988 = vst.msk [vmem:[%s3 + $0x54] sm:$0xf] %vm966, %v859
  %989 = vst.msk [vmem:[%s3 + $0x58] sm:$0xf] %vm966, %v860
  %990 = vst.msk [vmem:[%s3 + $0x5c] sm:$0xf] %vm966, %v861
  %991 = vst.msk [vmem:[%s3 + $0x60] sm:$0xf] %vm966, %v862
  %992 = vst.msk [vmem:[%s3 + $0x64] sm:$0xf] %vm966, %v863
  %993 = vst.msk [vmem:[%s3 + $0x68] sm:$0xf] %vm966, %v864
  %994 = vst.msk [vmem:[%s3 + $0x6c] sm:$0xf] %vm966, %v865
  %995 = vst.msk [vmem:[%s3 + $0x70] sm:$0xf] %vm966, %v866
  %996 = vst.msk [vmem:[%s3 + $0x74] sm:$0xf] %vm966, %v867
  %997 = vst.msk [vmem:[%s3 + $0x78] sm:$0xf] %vm966, %v868
  %998 = vst.msk [vmem:[%s3 + $0x7c] sm:$0xf] %vm966, %v869
  %999 = vst.msk [vmem:[%s3 + $0x80] sm:$0xf] %vm966, %v870
  %1000 = vst.msk [vmem:[%s3 + $0x84] sm:$0xf] %vm966, %v871
  %1001 = vst.msk [vmem:[%s3 + $0x88] sm:$0xf] %vm966, %v872
  %1002 = vst.msk [vmem:[%s3 + $0x8c] sm:$0xf] %vm966, %v873
  %1003 = vst.msk [vmem:[%s3 + $0x90] sm:$0xf] %vm966, %v874
  %1004 = vst.msk [vmem:[%s3 + $0x94] sm:$0xf] %vm966, %v875
  %1005 = vst.msk [vmem:[%s3 + $0x98] sm:$0xf] %vm966, %v876
  %1006 = vst.msk [vmem:[%s3 + $0x9c] sm:$0xf] %vm966, %v877
  %1007 = vst.msk [vmem:[%s3 + $0xa0] sm:$0xf] %vm966, %v878
  %1008 = vst.msk [vmem:[%s3 + $0xa4] sm:$0xf] %vm966, %v879
  %1009 = vst.msk [vmem:[%s3 + $0xa8] sm:$0xf] %vm966, %v880
  %1010 = vst.msk [vmem:[%s3 + $0xac] sm:$0xf] %vm966, %v881
  %1011 = vst.msk [vmem:[%s3 + $0xb0] sm:$0xf] %vm966, %v882
  %1012 = vst.msk [vmem:[%s3 + $0xb4] sm:$0xf] %vm966, %v883
  %1013 = vst.msk [vmem:[%s3 + $0xb8] sm:$0xf] %vm966, %v884
  %1014 = vst.msk [vmem:[%s3 + $0xbc] sm:$0xf] %vm966, %v885
  %1015 = vst.msk [vmem:[%s3 + $0xc0] sm:$0xf] %vm966, %v886
  %1016 = vst.msk [vmem:[%s3 + $0xc4] sm:$0xf] %vm966, %v887
  %1017 = vst.msk [vmem:[%s3 + $0xc8] sm:$0xf] %vm966, %v888
  %1018 = vst.msk [vmem:[%s3 + $0xcc] sm:$0xf] %vm966, %v889
  %1019 = vst.msk [vmem:[%s3 + $0xd0] sm:$0xf] %vm966, %v890
  %1020 = vst.msk [vmem:[%s3 + $0xd4] sm:$0xf] %vm966, %v891
  %1021 = vst.msk [vmem:[%s3 + $0xd8] sm:$0xf] %vm966, %v892
  %1022 = vst.msk [vmem:[%s3 + $0xdc] sm:$0xf] %vm966, %v893
  %1023 = vst.msk [vmem:[%s3 + $0xe0] sm:$0xf] %vm966, %v894
  %1024 = vst.msk [vmem:[%s3 + $0xe4] sm:$0xf] %vm966, %v895
  %1025 = vst.msk [vmem:[%s3 + $0xe8] sm:$0xf] %vm966, %v896
  %1026 = vst.msk [vmem:[%s3 + $0xec] sm:$0xf] %vm966, %v897
  %1027 = vst.msk [vmem:[%s3 + $0xf0] sm:$0xf] %vm966, %v898
  %1028 = vst.msk [vmem:[%s3 + $0xf4] sm:$0xf] %vm966, %v899
  %1029 = vst.msk [vmem:[%s3 + $0xf8] sm:$0xf] %vm966, %v900
  %1030 = vst.msk [vmem:[%s3 + $0xfc] sm:$0xf] %vm966, %v901
  // Predicated region
  $region14: #{cortical_column_net_v4.4} parent=0 // pred_check
    _
  $region15: #{cortical_column_net_v4.4} parent=0 // pred_check_branch
    %1032 = sbr.rel (0) target = $region17
  $region16: #{cortical_column_net_v4.4} parent=0 // pred_region
    _
  $region17: #{cortical_column_net_v4.4} parent=0 // pred_fallthru
    _
  // Predicated region
  $region18: #{cortical_column_net_v4.4} parent=0 // pred_check
    _
  $region19: #{cortical_column_net_v4.4} parent=0 // pred_check_branch
    %1034 = sbr.rel (0) target = $region21
  $region20: #{cortical_column_net_v4.4} parent=0 // pred_region
    _
  $region21: #{cortical_column_net_v4.4} parent=0 // pred_fallthru
    _

// kernel: cortical_column_net_v4.5
$region0: #{cortical_column_net_v4.5}
  #allocation0 [shape = 'u32[]', space=smem, size = 0x4, offset = 0x4, fixed_abs, tag = 'smem constant byte address 0x4 - core index']
  #allocation1 [shape = 'u32[144,128]{1,0:T(1,128)}', space=vmem, size = 0x12000, scoped, tag = 'internal scratch']
  %s0 = inlined_call_operand.vmem [shape: bf16[128,144], index: 0, kind: input, shape index: {}]
  %s1 = inlined_call_operand.vmem [shape: bf16[144,32], index: 1, kind: input, shape index: {}]
  %s2 = inlined_call_operand.vmem [shape: f32[1,32], index: 2, kind: input, shape index: {}]
  %s3 = inlined_call_operand.vmem [shape: bf16[128,32], index: 3, kind: output, shape index: {}]
  %s4 = sld [smem:[#allocation0]]
  $region22: #{cortical_column_net_v4.5} parent=0
    _
  %s6 = ssub.s32 1, %s4
  %s7 = scalar_select 0, %s6, %s4
  // Predicated region
  $region2: #{cortical_column_net_v4.5} parent=0 // pred_check
    _
  $region3: #{cortical_column_net_v4.5} parent=0 // pred_check_branch
    %9 = sbr.rel (0) target = $region5
  $region4: #{cortical_column_net_v4.5} parent=0 // pred_region
    _
  $region5: #{cortical_column_net_v4.5} parent=0 // pred_fallthru
    _
  // Predicated region
  $region6: #{cortical_column_net_v4.5} parent=0 // pred_check
    _
  $region7: #{cortical_column_net_v4.5} parent=0 // pred_check_branch
    %11 = sbr.rel (0) target = $region9
  $region8: #{cortical_column_net_v4.5} parent=0 // pred_region
    _
  $region9: #{cortical_column_net_v4.5} parent=0 // pred_fallthru
    _
  // Predicated region
  $region10: #{cortical_column_net_v4.5} parent=0 // pred_check
    _
  $region11: #{cortical_column_net_v4.5} parent=0 // pred_check_branch
    %13 = sbr.rel (0) target = $region13
  $region12: #{cortical_column_net_v4.5} parent=0 // pred_region
    _
  $region13: #{cortical_column_net_v4.5} parent=0 // pred_fallthru
    _
  %v15 = vld [vmem:[%s0] sm:$0xff]
  %v16 = vld [vmem:[%s0 + $0x8] sm:$0xff]
  %v17 = vld [vmem:[%s0 + $0x10] sm:$0xff]
  %v18 = vld [vmem:[%s0 + $0x18] sm:$0xff]
  %v19 = vld [vmem:[%s0 + $0x20] sm:$0xff]
  %v20 = vld [vmem:[%s0 + $0x28] sm:$0xff]
  %v21 = vld [vmem:[%s0 + $0x30] sm:$0xff]
  %v22 = vld [vmem:[%s0 + $0x38] sm:$0xff]
  %v23 = vld [vmem:[%s0 + $0x40] sm:$0xff]
  %v24 = vld [vmem:[%s0 + $0x48] sm:$0xff]
  %v25 = vld [vmem:[%s0 + $0x50] sm:$0xff]
  %v26 = vld [vmem:[%s0 + $0x58] sm:$0xff]
  %v27 = vld [vmem:[%s0 + $0x60] sm:$0xff]
  %v28 = vld [vmem:[%s0 + $0x68] sm:$0xff]
  %v29 = vld [vmem:[%s0 + $0x70] sm:$0xff]
  %v30 = vld [vmem:[%s0 + $0x78] sm:$0xff]
  %v31 = vld [vmem:[%s1] sm:$0xf]
  %v32 = vld [vmem:[%s1 + $0x4] sm:$0xf]
  %v33 = vld [vmem:[%s1 + $0x8] sm:$0xf]
  %v34 = vld [vmem:[%s1 + $0xc] sm:$0xf]
  %v35 = vld [vmem:[%s1 + $0x10] sm:$0xf]
  %v36 = vld [vmem:[%s1 + $0x14] sm:$0xf]
  %v37 = vld [vmem:[%s1 + $0x18] sm:$0xf]
  %v38 = vld [vmem:[%s1 + $0x1c] sm:$0xf]
  %v39 = vld [vmem:[%s1 + $0x20] sm:$0xf]
  %v40 = vld [vmem:[%s1 + $0x24] sm:$0xf]
  %v41 = vld [vmem:[%s1 + $0x28] sm:$0xf]
  %v42 = vld [vmem:[%s1 + $0x2c] sm:$0xf]
  %v43 = vld [vmem:[%s1 + $0x30] sm:$0xf]
  %v44 = vld [vmem:[%s1 + $0x34] sm:$0xf]
  %v45 = vld [vmem:[%s1 + $0x38] sm:$0xf]
  %v46 = vld [vmem:[%s1 + $0x3c] sm:$0xf]
  %v47 = vld [vmem:[%s1 + $0x40] sm:$0xf]
  %v48 = vld [vmem:[%s1 + $0x44] sm:$0xf]
  %v49 = vld [vmem:[%s2] sm:$0x1]
  %v51 = vlaneseq
  %v52 = vshrl.u32 %v51, 7
  %v53 = vsub.s32 0, %v52
  %v54 = vrot.slane %v49, %v53
  %v72 = vunpack.c.l.b16 %v15
  %v73 = vunpack.c.h.b16 %v15
  %v74 = vunpack.c.l.b16 %v16
  %v75 = vunpack.c.h.b16 %v16
  %v76 = vunpack.c.l.b16 %v17
  %v77 = vunpack.c.h.b16 %v17
  %v78 = vunpack.c.l.b16 %v18
  %v79 = vunpack.c.h.b16 %v18
  %v80 = vunpack.c.l.b16 %v19
  %v81 = vunpack.c.h.b16 %v19
  %v82 = vunpack.c.l.b16 %v20
  %v83 = vunpack.c.h.b16 %v20
  %v84 = vunpack.c.l.b16 %v21
  %v85 = vunpack.c.h.b16 %v21
  %v86 = vunpack.c.l.b16 %v22
  %v87 = vunpack.c.h.b16 %v22
  %v88 = vunpack.c.l.b16 %v23
  %v89 = vunpack.c.h.b16 %v23
  %v90 = vunpack.c.l.b16 %v24
  %v91 = vunpack.c.h.b16 %v24
  %v92 = vunpack.c.l.b16 %v25
  %v93 = vunpack.c.h.b16 %v25
  %v94 = vunpack.c.l.b16 %v26
  %v95 = vunpack.c.h.b16 %v26
  %v96 = vunpack.c.l.b16 %v27
  %v97 = vunpack.c.h.b16 %v27
  %v98 = vunpack.c.l.b16 %v28
  %v99 = vunpack.c.h.b16 %v28
  %v100 = vunpack.c.l.b16 %v29
  %v101 = vunpack.c.h.b16 %v29
  %v102 = vunpack.c.l.b16 %v30
  %v103 = vunpack.c.h.b16 %v30
  %v104 = vpack.c.b16 %v74, %v72
  %v105 = vpack.c.b16 %v75, %v73
  %v106 = vpack.c.b16 %v78, %v76
  %v107 = vpack.c.b16 %v79, %v77
  %v108 = vpack.c.b16 %v82, %v80
  %v109 = vpack.c.b16 %v83, %v81
  %v110 = vpack.c.b16 %v86, %v84
  %v111 = vpack.c.b16 %v87, %v85
  %v112 = vpack.c.b16 %v90, %v88
  %v113 = vpack.c.b16 %v91, %v89
  %v114 = vpack.c.b16 %v94, %v92
  %v115 = vpack.c.b16 %v95, %v93
  %v116 = vpack.c.b16 %v98, %v96
  %v117 = vpack.c.b16 %v99, %v97
  %v118 = vpack.c.b16 %v102, %v100
  %v119 = vpack.c.b16 %v103, %v101
  %v146 = vunpack.c.l.b16 %v31
  %v147 = vunpack.c.l.b16 %v32
  %v148 = vunpack.c.l.b16 %v33
  %v149 = vunpack.c.l.b16 %v34
  %v150 = vunpack.c.l.b16 %v35
  %v151 = vunpack.c.l.b16 %v36
  %v152 = vunpack.c.l.b16 %v37
  %v153 = vunpack.c.l.b16 %v38
  %v154 = vunpack.c.l.b16 %v39
  %v155 = vunpack.c.l.b16 %v40
  %v156 = vunpack.c.l.b16 %v41
  %v157 = vunpack.c.l.b16 %v42
  %v158 = vunpack.c.l.b16 %v43
  %v159 = vunpack.c.l.b16 %v44
  %v160 = vunpack.c.l.b16 %v45
  %v161 = vunpack.c.l.b16 %v46
  %v162 = vunpack.c.l.b16 %v47
  %v163 = vunpack.c.l.b16 %v48
  %v164 = vpack.c.b16 %v147, %v146
  %v165 = vpack.c.b16 %v149, %v148
  %v166 = vpack.c.b16 %v151, %v150
  %v167 = vpack.c.b16 %v153, %v152
  %v168 = vpack.c.b16 %v155, %v154
  %v169 = vpack.c.b16 %v157, %v156
  %v170 = vpack.c.b16 %v159, %v158
  %v171 = vpack.c.b16 %v161, %v160
  %v172 = vpack.c.b16 %v163, %v162
  %vm182 = vcmask 130048
  %v184 = vsel %vm182, %v105, 0
  %v187 = vsel %vm182, %v107, 0
  %v190 = vsel %vm182, %v109, 0
  %v193 = vsel %vm182, %v111, 0
  %v196 = vsel %vm182, %v113, 0
  %v199 = vsel %vm182, %v115, 0
  %v202 = vsel %vm182, %v117, 0
  %v205 = vsel %vm182, %v119, 0
  %207 = vmatprep.subr.bf16.mxu0 0
  %208 = vmatpush1.bf16.msra.mxu0 %v164
  %209 = vmatprep.subr.bf16.mxu0 0
  %210 = vmatpush1.bf16.msra.mxu0 %v165
  %211 = vmatprep.subr.bf16.mxu0 0
  %212 = vmatpush1.bf16.msra.mxu0 %v166
  %213 = vmatprep.subr.bf16.mxu0 0
  %214 = vmatpush1.bf16.msra.mxu0 %v167
  %215 = vmatprep.subr.bf16.mxu0 0
  %216 = vmatpush1.bf16.msra.mxu0 %v168
  %217 = vmatprep.subr.bf16.mxu0 0
  %218 = vmatpush1.bf16.msra.mxu0 %v169
  %219 = vmatprep.subr.bf16.mxu0 0
  %220 = vmatpush1.bf16.msra.mxu0 %v170
  %221 = vmatprep.subr.bf16.mxu0 0
  %222 = vmatpush1.bf16.msra.mxu0 %v171
  %223 = vmatprep.subr.bf16.mxu0 0
  %224 = vmatpush1.bf16.msra.mxu0 %v172
  %225 = vmatprep.subr.bf16.mxu0 0
  %226 = vmatpush1.bf16.msra.mxu0 0
  %227 = vmatprep.subr.bf16.mxu0 0
  %228 = vmatpush1.bf16.msra.mxu0 0
  %229 = vmatprep.subr.bf16.mxu0 0
  %230 = vmatpush1.bf16.msra.mxu0 0
  %231 = vmatprep.subr.bf16.mxu0 0
  %232 = vmatpush1.bf16.msra.mxu0 0
  %233 = vmatprep.subr.bf16.mxu0 0
  %234 = vmatpush1.bf16.msra.mxu0 0
  %235 = vmatprep.subr.bf16.mxu0 0
  %236 = vmatpush1.bf16.msra.mxu0 0
  %237 = vmatprep.subr.bf16.mxu0 0
  %238 = vmatpush1.bf16.msra.mxu0 0
  %239 = vmatprep.mubr.bf16.mxu0 %v184
  %240 = vmatmul.mubr.bf16.gmra.mrb[0].mxu0 %v104
  %v241 = vpop.f32.mrb[0].mxu0
  %v242 = vadd.f32 %v54, %v241
  %v243 = vpop.f32.mrb[0].mxu0
  %v244 = vpop.f32.mrb[0].mxu0
  %v245 = vadd.f32 %v54, %v244
  %v246 = vpop.f32.mrb[0].mxu0
  %247 = vmatprep.mubr.bf16.mxu0 %v187
  %248 = vmatmul.mubr.bf16.gmra.mrb[0].mxu0 %v106
  %v249 = vpop.f32.mrb[0].mxu0
  %v250 = vadd.f32 %v54, %v249
  %v251 = vpop.f32.mrb[0].mxu0
  %v252 = vpop.f32.mrb[0].mxu0
  %v253 = vadd.f32 %v54, %v252
  %v254 = vpop.f32.mrb[0].mxu0
  %255 = vmatprep.mubr.bf16.mxu0 %v190
  %256 = vmatmul.mubr.bf16.gmra.mrb[0].mxu0 %v108
  %v257 = vpop.f32.mrb[0].mxu0
  %v258 = vadd.f32 %v54, %v257
  %v259 = vpop.f32.mrb[0].mxu0
  %v260 = vpop.f32.mrb[0].mxu0
  %v261 = vadd.f32 %v54, %v260
  %v262 = vpop.f32.mrb[0].mxu0
  %263 = vmatprep.mubr.bf16.mxu0 %v193
  %264 = vmatmul.mubr.bf16.gmra.mrb[0].mxu0 %v110
  %v265 = vpop.f32.mrb[0].mxu0
  %v266 = vadd.f32 %v54, %v265
  %v267 = vpop.f32.mrb[0].mxu0
  %v268 = vpop.f32.mrb[0].mxu0
  %v269 = vadd.f32 %v54, %v268
  %v270 = vpop.f32.mrb[0].mxu0
  %271 = vmatprep.mubr.bf16.mxu0 %v196
  %272 = vmatmul.mubr.bf16.gmra.mrb[0].mxu0 %v112
  %v273 = vpop.f32.mrb[0].mxu0
  %v274 = vadd.f32 %v54, %v273
  %v275 = vpop.f32.mrb[0].mxu0
  %v276 = vpop.f32.mrb[0].mxu0
  %v277 = vadd.f32 %v54, %v276
  %v278 = vpop.f32.mrb[0].mxu0
  %279 = vmatprep.mubr.bf16.mxu0 %v199
  %280 = vmatmul.mubr.bf16.gmra.mrb[0].mxu0 %v114
  %v281 = vpop.f32.mrb[0].mxu0
  %v282 = vadd.f32 %v54, %v281
  %v283 = vpop.f32.mrb[0].mxu0
  %v284 = vpop.f32.mrb[0].mxu0
  %v285 = vadd.f32 %v54, %v284
  %v286 = vpop.f32.mrb[0].mxu0
  %287 = vmatprep.mubr.bf16.mxu0 %v202
  %288 = vmatmul.mubr.bf16.gmra.mrb[0].mxu0 %v116
  %v289 = vpop.f32.mrb[0].mxu0
  %v290 = vadd.f32 %v54, %v289
  %v291 = vpop.f32.mrb[0].mxu0
  %v292 = vpop.f32.mrb[0].mxu0
  %v293 = vadd.f32 %v54, %v292
  %v294 = vpop.f32.mrb[0].mxu0
  %295 = vmatprep.mubr.bf16.mxu0 %v205
  %296 = vmatmul.mubr.bf16.gmra.mrb[0].mxu0 %v118
  %v297 = vpop.f32.mrb[0].mxu0
  %v298 = vadd.f32 %v54, %v297
  %v299 = vpop.f32.mrb[0].mxu0
  %v300 = vpop.f32.mrb[0].mxu0
  %v301 = vadd.f32 %v54, %v300
  %v302 = vpop.f32.mrb[0].mxu0
  %303 = vdwg.mxu0
  %v304 = vmax.f32 %v242, 0.0
  %v305 = vmax.f32 %v245, 0.0
  %v306 = vmax.f32 %v250, 0.0
  %v307 = vmax.f32 %v253, 0.0
  %v308 = vmax.f32 %v258, 0.0
  %v309 = vmax.f32 %v261, 0.0
  %v310 = vmax.f32 %v266, 0.0
  %v311 = vmax.f32 %v269, 0.0
  %v312 = vmax.f32 %v274, 0.0
  %v313 = vmax.f32 %v277, 0.0
  %v314 = vmax.f32 %v282, 0.0
  %v315 = vmax.f32 %v285, 0.0
  %v316 = vmax.f32 %v290, 0.0
  %v317 = vmax.f32 %v293, 0.0
  %v318 = vmax.f32 %v298, 0.0
  %v319 = vmax.f32 %v301, 0.0
  %v320 = vpack.c.bf16 %v305, %v304
  %v321 = vpack.c.bf16 %v307, %v306
  %v322 = vpack.c.bf16 %v309, %v308
  %v323 = vpack.c.bf16 %v311, %v310
  %v324 = vpack.c.bf16 %v313, %v312
  %v325 = vpack.c.bf16 %v315, %v314
  %v326 = vpack.c.bf16 %v317, %v316
  %v327 = vpack.c.bf16 %v319, %v318
  %v336 = vunpack.c.l.b16 %v320
  %v337 = vunpack.c.h.b16 %v320
  %v338 = vunpack.c.l.b16 %v321
  %v339 = vunpack.c.h.b16 %v321
  %v340 = vunpack.c.l.b16 %v322
  %v341 = vunpack.c.h.b16 %v322
  %v342 = vunpack.c.l.b16 %v323
  %v343 = vunpack.c.h.b16 %v323
  %v344 = vunpack.c.l.b16 %v324
  %v345 = vunpack.c.h.b16 %v324
  %v346 = vunpack.c.l.b16 %v325
  %v347 = vunpack.c.h.b16 %v325
  %v348 = vunpack.c.l.b16 %v326
  %v349 = vunpack.c.h.b16 %v326
  %v350 = vunpack.c.l.b16 %v327
  %v351 = vunpack.c.h.b16 %v327
  %v352 = vpack.c.b16 %v336, %v336
  %v353 = vpack.c.b16 %v337, %v337
  %v354 = vpack.c.b16 %v338, %v338
  %v355 = vpack.c.b16 %v339, %v339
  %v356 = vpack.c.b16 %v340, %v340
  %v357 = vpack.c.b16 %v341, %v341
  %v358 = vpack.c.b16 %v342, %v342
  %v359 = vpack.c.b16 %v343, %v343
  %v360 = vpack.c.b16 %v344, %v344
  %v361 = vpack.c.b16 %v345, %v345
  %v362 = vpack.c.b16 %v346, %v346
  %v363 = vpack.c.b16 %v347, %v347
  %v364 = vpack.c.b16 %v348, %v348
  %v365 = vpack.c.b16 %v349, %v349
  %v366 = vpack.c.b16 %v350, %v350
  %v367 = vpack.c.b16 %v351, %v351
  %vm384 = vcmask 257024
  %385 = vst.msk [vmem:[%s3] sm:$0xf] %vm384, %v352
  %386 = vst.msk [vmem:[%s3 + $0x4] sm:$0xf] %vm384, %v353
  %387 = vst.msk [vmem:[%s3 + $0x8] sm:$0xf] %vm384, %v354
  %388 = vst.msk [vmem:[%s3 + $0xc] sm:$0xf] %vm384, %v355
  %389 = vst.msk [vmem:[%s3 + $0x10] sm:$0xf] %vm384, %v356
  %390 = vst.msk [vmem:[%s3 + $0x14] sm:$0xf] %vm384, %v357
  %391 = vst.msk [vmem:[%s3 + $0x18] sm:$0xf] %vm384, %v358
  %392 = vst.msk [vmem:[%s3 + $0x1c] sm:$0xf] %vm384, %v359
  %393 = vst.msk [vmem:[%s3 + $0x20] sm:$0xf] %vm384, %v360
  %394 = vst.msk [vmem:[%s3 + $0x24] sm:$0xf] %vm384, %v361
  %395 = vst.msk [vmem:[%s3 + $0x28] sm:$0xf] %vm384, %v362
  %396 = vst.msk [vmem:[%s3 + $0x2c] sm:$0xf] %vm384, %v363
  %397 = vst.msk [vmem:[%s3 + $0x30] sm:$0xf] %vm384, %v364
  %398 = vst.msk [vmem:[%s3 + $0x34] sm:$0xf] %vm384, %v365
  %399 = vst.msk [vmem:[%s3 + $0x38] sm:$0xf] %vm384, %v366
  %400 = vst.msk [vmem:[%s3 + $0x3c] sm:$0xf] %vm384, %v367
  // Predicated region
  $region14: #{cortical_column_net_v4.5} parent=0 // pred_check
    _
  $region15: #{cortical_column_net_v4.5} parent=0 // pred_check_branch
    %402 = sbr.rel (0) target = $region17
  $region16: #{cortical_column_net_v4.5} parent=0 // pred_region
    _
  $region17: #{cortical_column_net_v4.5} parent=0 // pred_fallthru
    _
  // Predicated region
  $region18: #{cortical_column_net_v4.5} parent=0 // pred_check
    _
  $region19: #{cortical_column_net_v4.5} parent=0 // pred_check_branch
    %404 = sbr.rel (0) target = $region21
  $region20: #{cortical_column_net_v4.5} parent=0 // pred_region
    _
  $region21: #{cortical_column_net_v4.5} parent=0 // pred_fallthru
    _

// kernel: cortical_column_net_v4.6
$region0: #{cortical_column_net_v4.6}
  #allocation0 [shape = 'u32[]', space=smem, size = 0x4, offset = 0x4, fixed_abs, tag = 'smem constant byte address 0x4 - core index']
  #allocation1 [shape = 'u32[144,128]{1,0:T(1,128)}', space=vmem, size = 0x12000, scoped, tag = 'internal scratch']
  #allocation2 [shape = 'f32[8,384]{1,0:T(8,128)}', space=vmem, size = 0x3000, scoped, tag = 'scratch operand']
  %s0 = inlined_call_operand.vmem [shape: bf16[8,512], index: 0, kind: input, shape index: {}]
  %s1 = inlined_call_operand.vmem [shape: bf16[512,384], index: 1, kind: input, shape index: {}]
  %s2 = inlined_call_operand.vmem [shape: f32[1,384], index: 2, kind: input, shape index: {}]
  %s3 = inlined_call_operand.vmem [shape: f32[8,384], index: 3, kind: output, shape index: {}]
  %s4 = sld [smem:[#allocation0]]
  $region30: #{cortical_column_net_v4.6} parent=0
    _
  %s6 = ssub.s32 1, %s4
  %s7 = scalar_select 0, %s6, %s4
  // Predicated region
  $region2: #{cortical_column_net_v4.6} parent=0 // pred_check
    _
  $region3: #{cortical_column_net_v4.6} parent=0 // pred_check_branch
    %9 = sbr.rel (0) target = $region5
  $region4: #{cortical_column_net_v4.6} parent=0 // pred_region
    _
  $region5: #{cortical_column_net_v4.6} parent=0 // pred_fallthru
    _
  // Predicated region
  $region6: #{cortical_column_net_v4.6} parent=0 // pred_check
    _
  $region7: #{cortical_column_net_v4.6} parent=0 // pred_check_branch
    %11 = sbr.rel (0) target = $region9
  $region8: #{cortical_column_net_v4.6} parent=0 // pred_region
    _
  $region9: #{cortical_column_net_v4.6} parent=0 // pred_fallthru
    _
  // Predicated region
  $region10: #{cortical_column_net_v4.6} parent=0 // pred_check
    _
  $region11: #{cortical_column_net_v4.6} parent=0 // pred_check_branch
    %13 = sbr.rel (0) target = $region13
  $region12: #{cortical_column_net_v4.6} parent=0 // pred_region
    _
  $region13: #{cortical_column_net_v4.6} parent=0 // pred_fallthru
    _
  %p15 = scmp.eq.s32.totalorder 0, 0
  // Predicated region
  $region14: #{cortical_column_net_v4.6} parent=0 // pred_check
    %p16 = pneg %p15
  $region15: #{cortical_column_net_v4.6} parent=0 // pred_check_branch
    %18 = sbr.rel (%p16) target = $region17
  $region16: #{cortical_column_net_v4.6} parent=0 // pred_region
    %19 = vst [vmem:[#allocation2] sm:$0xff] 0.0
    %20 = vst [vmem:[#allocation2 + $0x8] sm:$0xff] 0.0
    %21 = vst [vmem:[#allocation2 + $0x10] sm:$0xff] 0.0
  $region17: #{cortical_column_net_v4.6} parent=0 // pred_fallthru
    _
  %v22 = vld [vmem:[#allocation2] sm:$0xff]
  %v23 = vld [vmem:[#allocation2 + $0x8] sm:$0xff]
  %v24 = vld [vmem:[#allocation2 + $0x10] sm:$0xff]
  %v25 = vld [vmem:[%s0] sm:$0xff]
  %v26 = vld [vmem:[%s0 + $0x8] sm:$0xff]
  %v27 = vld [vmem:[%s1] sm:$0xff]
  %v28 = vld [vmem:[%s1 + $0x8] sm:$0xf]
  %v29 = vld [vmem:[%s1 + $0xc] sm:$0xff]
  %v30 = vld [vmem:[%s1 + $0x14] sm:$0xf]
  %v31 = vld [vmem:[%s1 + $0x18] sm:$0xff]
  %v32 = vld [vmem:[%s1 + $0x20] sm:$0xf]
  %v33 = vld [vmem:[%s1 + $0x24] sm:$0xff]
  %v34 = vld [vmem:[%s1 + $0x2c] sm:$0xf]
  %v35 = vld [vmem:[%s1 + $0x30] sm:$0xff]
  %v36 = vld [vmem:[%s1 + $0x38] sm:$0xf]
  %v37 = vld [vmem:[%s1 + $0x3c] sm:$0xff]
  %v38 = vld [vmem:[%s1 + $0x44] sm:$0xf]
  %v39 = vld [vmem:[%s1 + $0x48] sm:$0xff]
  %v40 = vld [vmem:[%s1 + $0x50] sm:$0xf]
  %v41 = vld [vmem:[%s1 + $0x54] sm:$0xff]
  %v42 = vld [vmem:[%s1 + $0x5c] sm:$0xf]
  %v43 = vld [vmem:[%s1 + $0x60] sm:$0xff]
  %v44 = vld [vmem:[%s1 + $0x68] sm:$0xf]
  %v45 = vld [vmem:[%s1 + $0x6c] sm:$0xff]
  %v46 = vld [vmem:[%s1 + $0x74] sm:$0xf]
  %v47 = vld [vmem:[%s1 + $0x78] sm:$0xff]
  %v48 = vld [vmem:[%s1 + $0x80] sm:$0xf]
  %v49 = vld [vmem:[%s1 + $0x84] sm:$0xff]
  %v50 = vld [vmem:[%s1 + $0x8c] sm:$0xf]
  %v51 = vld [vmem:[%s1 + $0x90] sm:$0xff]
  %v52 = vld [vmem:[%s1 + $0x98] sm:$0xf]
  %v53 = vld [vmem:[%s1 + $0x9c] sm:$0xff]
  %v54 = vld [vmem:[%s1 + $0xa4] sm:$0xf]
  %v55 = vld [vmem:[%s1 + $0xa8] sm:$0xff]
  %v56 = vld [vmem:[%s1 + $0xb0] sm:$0xf]
  %v57 = vld [vmem:[%s1 + $0xb4] sm:$0xff]
  %v58 = vld [vmem:[%s1 + $0xbc] sm:$0xf]
  %v59 = vld [vmem:[%s1 + $0xc0] sm:$0xff]
  %v60 = vld [vmem:[%s1 + $0xc8] sm:$0xf]
  %v61 = vld [vmem:[%s1 + $0xcc] sm:$0xff]
  %v62 = vld [vmem:[%s1 + $0xd4] sm:$0xf]
  %v63 = vld [vmem:[%s1 + $0xd8] sm:$0xff]
  %v64 = vld [vmem:[%s1 + $0xe0] sm:$0xf]
  %v65 = vld [vmem:[%s1 + $0xe4] sm:$0xff]
  %v66 = vld [vmem:[%s1 + $0xec] sm:$0xf]
  %v67 = vld [vmem:[%s1 + $0xf0] sm:$0xff]
  %v68 = vld [vmem:[%s1 + $0xf8] sm:$0xf]
  %v69 = vld [vmem:[%s1 + $0xfc] sm:$0xff]
  %v70 = vld [vmem:[%s1 + $0x104] sm:$0xf]
  %v71 = vld [vmem:[%s1 + $0x108] sm:$0xff]
  %v72 = vld [vmem:[%s1 + $0x110] sm:$0xf]
  %v73 = vld [vmem:[%s1 + $0x114] sm:$0xff]
  %v74 = vld [vmem:[%s1 + $0x11c] sm:$0xf]
  %v75 = vld [vmem:[%s1 + $0x120] sm:$0xff]
  %v76 = vld [vmem:[%s1 + $0x128] sm:$0xf]
  %v77 = vld [vmem:[%s1 + $0x12c] sm:$0xff]
  %v78 = vld [vmem:[%s1 + $0x134] sm:$0xf]
  %v79 = vld [vmem:[%s1 + $0x138] sm:$0xff]
  %v80 = vld [vmem:[%s1 + $0x140] sm:$0xf]
  %v81 = vld [vmem:[%s1 + $0x144] sm:$0xff]
  %v82 = vld [vmem:[%s1 + $0x14c] sm:$0xf]
  %v83 = vld [vmem:[%s1 + $0x150] sm:$0xff]
  %v84 = vld [vmem:[%s1 + $0x158] sm:$0xf]
  %v85 = vld [vmem:[%s1 + $0x15c] sm:$0xff]
  %v86 = vld [vmem:[%s1 + $0x164] sm:$0xf]
  %v87 = vld [vmem:[%s1 + $0x168] sm:$0xff]
  %v88 = vld [vmem:[%s1 + $0x170] sm:$0xf]
  %v89 = vld [vmem:[%s1 + $0x174] sm:$0xff]
  %v90 = vld [vmem:[%s1 + $0x17c] sm:$0xf]
  %v91 = vld [vmem:[%s1 + $0x180] sm:$0xff]
  %v92 = vld [vmem:[%s1 + $0x188] sm:$0xf]
  %v93 = vld [vmem:[%s1 + $0x18c] sm:$0xff]
  %v94 = vld [vmem:[%s1 + $0x194] sm:$0xf]
  %v95 = vld [vmem:[%s1 + $0x198] sm:$0xff]
  %v96 = vld [vmem:[%s1 + $0x1a0] sm:$0xf]
  %v97 = vld [vmem:[%s1 + $0x1a4] sm:$0xff]
  %v98 = vld [vmem:[%s1 + $0x1ac] sm:$0xf]
  %v99 = vld [vmem:[%s1 + $0x1b0] sm:$0xff]
  %v100 = vld [vmem:[%s1 + $0x1b8] sm:$0xf]
  %v101 = vld [vmem:[%s1 + $0x1bc] sm:$0xff]
  %v102 = vld [vmem:[%s1 + $0x1c4] sm:$0xf]
  %v103 = vld [vmem:[%s1 + $0x1c8] sm:$0xff]
  %v104 = vld [vmem:[%s1 + $0x1d0] sm:$0xf]
  %v105 = vld [vmem:[%s1 + $0x1d4] sm:$0xff]
  %v106 = vld [vmem:[%s1 + $0x1dc] sm:$0xf]
  %v107 = vld [vmem:[%s1 + $0x1e0] sm:$0xff]
  %v108 = vld [vmem:[%s1 + $0x1e8] sm:$0xf]
  %v109 = vld [vmem:[%s1 + $0x1ec] sm:$0xff]
  %v110 = vld [vmem:[%s1 + $0x1f4] sm:$0xf]
  %v111 = vld [vmem:[%s1 + $0x1f8] sm:$0xff]
  %v112 = vld [vmem:[%s1 + $0x200] sm:$0xf]
  %v113 = vld [vmem:[%s1 + $0x204] sm:$0xff]
  %v114 = vld [vmem:[%s1 + $0x20c] sm:$0xf]
  %v115 = vld [vmem:[%s1 + $0x210] sm:$0xff]
  %v116 = vld [vmem:[%s1 + $0x218] sm:$0xf]
  %v117 = vld [vmem:[%s1 + $0x21c] sm:$0xff]
  %v118 = vld [vmem:[%s1 + $0x224] sm:$0xf]
  %v119 = vld [vmem:[%s1 + $0x228] sm:$0xff]
  %v120 = vld [vmem:[%s1 + $0x230] sm:$0xf]
  %v121 = vld [vmem:[%s1 + $0x234] sm:$0xff]
  %v122 = vld [vmem:[%s1 + $0x23c] sm:$0xf]
  %v123 = vld [vmem:[%s1 + $0x240] sm:$0xff]
  %v124 = vld [vmem:[%s1 + $0x248] sm:$0xf]
  %v125 = vld [vmem:[%s1 + $0x24c] sm:$0xff]
  %v126 = vld [vmem:[%s1 + $0x254] sm:$0xf]
  %v127 = vld [vmem:[%s1 + $0x258] sm:$0xff]
  %v128 = vld [vmem:[%s1 + $0x260] sm:$0xf]
  %v129 = vld [vmem:[%s1 + $0x264] sm:$0xff]
  %v130 = vld [vmem:[%s1 + $0x26c] sm:$0xf]
  %v131 = vld [vmem:[%s1 + $0x270] sm:$0xff]
  %v132 = vld [vmem:[%s1 + $0x278] sm:$0xf]
  %v133 = vld [vmem:[%s1 + $0x27c] sm:$0xff]
  %v134 = vld [vmem:[%s1 + $0x284] sm:$0xf]
  %v135 = vld [vmem:[%s1 + $0x288] sm:$0xff]
  %v136 = vld [vmem:[%s1 + $0x290] sm:$0xf]
  %v137 = vld [vmem:[%s1 + $0x294] sm:$0xff]
  %v138 = vld [vmem:[%s1 + $0x29c] sm:$0xf]
  %v139 = vld [vmem:[%s1 + $0x2a0] sm:$0xff]
  %v140 = vld [vmem:[%s1 + $0x2a8] sm:$0xf]
  %v141 = vld [vmem:[%s1 + $0x2ac] sm:$0xff]
  %v142 = vld [vmem:[%s1 + $0x2b4] sm:$0xf]
  %v143 = vld [vmem:[%s1 + $0x2b8] sm:$0xff]
  %v144 = vld [vmem:[%s1 + $0x2c0] sm:$0xf]
  %v145 = vld [vmem:[%s1 + $0x2c4] sm:$0xff]
  %v146 = vld [vmem:[%s1 + $0x2cc] sm:$0xf]
  %v147 = vld [vmem:[%s1 + $0x2d0] sm:$0xff]
  %v148 = vld [vmem:[%s1 + $0x2d8] sm:$0xf]
  %v149 = vld [vmem:[%s1 + $0x2dc] sm:$0xff]
  %v150 = vld [vmem:[%s1 + $0x2e4] sm:$0xf]
  %v151 = vld [vmem:[%s1 + $0x2e8] sm:$0xff]
  %v152 = vld [vmem:[%s1 + $0x2f0] sm:$0xf]
  %v153 = vld [vmem:[%s1 + $0x2f4] sm:$0xff]
  %v154 = vld [vmem:[%s1 + $0x2fc] sm:$0xf]
  %v157 = vunpack.c.l.b16 %v25
  %v158 = vunpack.c.h.b16 %v25
  %v159 = vunpack.c.l.b16 %v26
  %v160 = vunpack.c.h.b16 %v26
  %v161 = vpack.c.b16 %v157, %v157
  %v162 = vpack.c.b16 %v158, %v158
  %v163 = vpack.c.b16 %v159, %v159
  %v164 = vpack.c.b16 %v160, %v160
  %v297 = vunpack.c.l.b16 %v27
  %v298 = vunpack.c.h.b16 %v27
  %v299 = vunpack.c.l.b16 %v28
  %v300 = vunpack.c.l.b16 %v29
  %v301 = vunpack.c.h.b16 %v29
  %v302 = vunpack.c.l.b16 %v30
  %v303 = vunpack.c.l.b16 %v31
  %v304 = vunpack.c.h.b16 %v31
  %v305 = vunpack.c.l.b16 %v32
  %v306 = vunpack.c.l.b16 %v33
  %v307 = vunpack.c.h.b16 %v33
  %v308 = vunpack.c.l.b16 %v34
  %v309 = vunpack.c.l.b16 %v35
  %v310 = vunpack.c.h.b16 %v35
  %v311 = vunpack.c.l.b16 %v36
  %v312 = vunpack.c.l.b16 %v37
  %v313 = vunpack.c.h.b16 %v37
  %v314 = vunpack.c.l.b16 %v38
  %v315 = vunpack.c.l.b16 %v39
  %v316 = vunpack.c.h.b16 %v39
  %v317 = vunpack.c.l.b16 %v40
  %v318 = vunpack.c.l.b16 %v41
  %v319 = vunpack.c.h.b16 %v41
  %v320 = vunpack.c.l.b16 %v42
  %v321 = vunpack.c.l.b16 %v43
  %v322 = vunpack.c.h.b16 %v43
  %v323 = vunpack.c.l.b16 %v44
  %v324 = vunpack.c.l.b16 %v45
  %v325 = vunpack.c.h.b16 %v45
  %v326 = vunpack.c.l.b16 %v46
  %v327 = vunpack.c.l.b16 %v47
  %v328 = vunpack.c.h.b16 %v47
  %v329 = vunpack.c.l.b16 %v48
  %v330 = vunpack.c.l.b16 %v49
  %v331 = vunpack.c.h.b16 %v49
  %v332 = vunpack.c.l.b16 %v50
  %v333 = vunpack.c.l.b16 %v51
  %v334 = vunpack.c.h.b16 %v51
  %v335 = vunpack.c.l.b16 %v52
  %v336 = vunpack.c.l.b16 %v53
  %v337 = vunpack.c.h.b16 %v53
  %v338 = vunpack.c.l.b16 %v54
  %v339 = vunpack.c.l.b16 %v55
  %v340 = vunpack.c.h.b16 %v55
  %v341 = vunpack.c.l.b16 %v56
  %v342 = vunpack.c.l.b16 %v57
  %v343 = vunpack.c.h.b16 %v57
  %v344 = vunpack.c.l.b16 %v58
  %v345 = vunpack.c.l.b16 %v59
  %v346 = vunpack.c.h.b16 %v59
  %v347 = vunpack.c.l.b16 %v60
  %v348 = vunpack.c.l.b16 %v61
  %v349 = vunpack.c.h.b16 %v61
  %v350 = vunpack.c.l.b16 %v62
  %v351 = vunpack.c.l.b16 %v63
  %v352 = vunpack.c.h.b16 %v63
  %v353 = vunpack.c.l.b16 %v64
  %v354 = vunpack.c.l.b16 %v65
  %v355 = vunpack.c.h.b16 %v65
  %v356 = vunpack.c.l.b16 %v66
  %v357 = vunpack.c.l.b16 %v67
  %v358 = vunpack.c.h.b16 %v67
  %v359 = vunpack.c.l.b16 %v68
  %v360 = vunpack.c.l.b16 %v69
  %v361 = vunpack.c.h.b16 %v69
  %v362 = vunpack.c.l.b16 %v70
  %v363 = vunpack.c.l.b16 %v71
  %v364 = vunpack.c.h.b16 %v71
  %v365 = vunpack.c.l.b16 %v72
  %v366 = vunpack.c.l.b16 %v73
  %v367 = vunpack.c.h.b16 %v73
  %v368 = vunpack.c.l.b16 %v74
  %v369 = vunpack.c.l.b16 %v75
  %v370 = vunpack.c.h.b16 %v75
  %v371 = vunpack.c.l.b16 %v76
  %v372 = vunpack.c.l.b16 %v77
  %v373 = vunpack.c.h.b16 %v77
  %v374 = vunpack.c.l.b16 %v78
  %v375 = vunpack.c.l.b16 %v79
  %v376 = vunpack.c.h.b16 %v79
  %v377 = vunpack.c.l.b16 %v80
  %v378 = vunpack.c.l.b16 %v81
  %v379 = vunpack.c.h.b16 %v81
  %v380 = vunpack.c.l.b16 %v82
  %v381 = vunpack.c.l.b16 %v83
  %v382 = vunpack.c.h.b16 %v83
  %v383 = vunpack.c.l.b16 %v84
  %v384 = vunpack.c.l.b16 %v85
  %v385 = vunpack.c.h.b16 %v85
  %v386 = vunpack.c.l.b16 %v86
  %v387 = vunpack.c.l.b16 %v87
  %v388 = vunpack.c.h.b16 %v87
  %v389 = vunpack.c.l.b16 %v88
  %v390 = vunpack.c.l.b16 %v89
  %v391 = vunpack.c.h.b16 %v89
  %v392 = vunpack.c.l.b16 %v90
  %v393 = vunpack.c.l.b16 %v91
  %v394 = vunpack.c.h.b16 %v91
  %v395 = vunpack.c.l.b16 %v92
  %v396 = vunpack.c.l.b16 %v93
  %v397 = vunpack.c.h.b16 %v93
  %v398 = vunpack.c.l.b16 %v94
  %v399 = vunpack.c.l.b16 %v95
  %v400 = vunpack.c.h.b16 %v95
  %v401 = vunpack.c.l.b16 %v96
  %v402 = vunpack.c.l.b16 %v97
  %v403 = vunpack.c.h.b16 %v97
  %v404 = vunpack.c.l.b16 %v98
  %v405 = vunpack.c.l.b16 %v99
  %v406 = vunpack.c.h.b16 %v99
  %v407 = vunpack.c.l.b16 %v100
  %v408 = vunpack.c.l.b16 %v101
  %v409 = vunpack.c.h.b16 %v101
  %v410 = vunpack.c.l.b16 %v102
  %v411 = vunpack.c.l.b16 %v103
  %v412 = vunpack.c.h.b16 %v103
  %v413 = vunpack.c.l.b16 %v104
  %v414 = vunpack.c.l.b16 %v105
  %v415 = vunpack.c.h.b16 %v105
  %v416 = vunpack.c.l.b16 %v106
  %v417 = vunpack.c.l.b16 %v107
  %v418 = vunpack.c.h.b16 %v107
  %v419 = vunpack.c.l.b16 %v108
  %v420 = vunpack.c.l.b16 %v109
  %v421 = vunpack.c.h.b16 %v109
  %v422 = vunpack.c.l.b16 %v110
  %v423 = vunpack.c.l.b16 %v111
  %v424 = vunpack.c.h.b16 %v111
  %v425 = vunpack.c.l.b16 %v112
  %v426 = vunpack.c.l.b16 %v113
  %v427 = vunpack.c.h.b16 %v113
  %v428 = vunpack.c.l.b16 %v114
  %v429 = vunpack.c.l.b16 %v115
  %v430 = vunpack.c.h.b16 %v115
  %v431 = vunpack.c.l.b16 %v116
  %v432 = vunpack.c.l.b16 %v117
  %v433 = vunpack.c.h.b16 %v117
  %v434 = vunpack.c.l.b16 %v118
  %v435 = vunpack.c.l.b16 %v119
  %v436 = vunpack.c.h.b16 %v119
  %v437 = vunpack.c.l.b16 %v120
  %v438 = vunpack.c.l.b16 %v121
  %v439 = vunpack.c.h.b16 %v121
  %v440 = vunpack.c.l.b16 %v122
  %v441 = vunpack.c.l.b16 %v123
  %v442 = vunpack.c.h.b16 %v123
  %v443 = vunpack.c.l.b16 %v124
  %v444 = vunpack.c.l.b16 %v125
  %v445 = vunpack.c.h.b16 %v125
  %v446 = vunpack.c.l.b16 %v126
  %v447 = vunpack.c.l.b16 %v127
  %v448 = vunpack.c.h.b16 %v127
  %v449 = vunpack.c.l.b16 %v128
  %v450 = vunpack.c.l.b16 %v129
  %v451 = vunpack.c.h.b16 %v129
  %v452 = vunpack.c.l.b16 %v130
  %v453 = vunpack.c.l.b16 %v131
  %v454 = vunpack.c.h.b16 %v131
  %v455 = vunpack.c.l.b16 %v132
  %v456 = vunpack.c.l.b16 %v133
  %v457 = vunpack.c.h.b16 %v133
  %v458 = vunpack.c.l.b16 %v134
  %v459 = vunpack.c.l.b16 %v135
  %v460 = vunpack.c.h.b16 %v135
  %v461 = vunpack.c.l.b16 %v136
  %v462 = vunpack.c.l.b16 %v137
  %v463 = vunpack.c.h.b16 %v137
  %v464 = vunpack.c.l.b16 %v138
  %v465 = vunpack.c.l.b16 %v139
  %v466 = vunpack.c.h.b16 %v139
  %v467 = vunpack.c.l.b16 %v140
  %v468 = vunpack.c.l.b16 %v141
  %v469 = vunpack.c.h.b16 %v141
  %v470 = vunpack.c.l.b16 %v142
  %v471 = vunpack.c.l.b16 %v143
  %v472 = vunpack.c.h.b16 %v143
  %v473 = vunpack.c.l.b16 %v144
  %v474 = vunpack.c.l.b16 %v145
  %v475 = vunpack.c.h.b16 %v145
  %v476 = vunpack.c.l.b16 %v146
  %v477 = vunpack.c.l.b16 %v147
  %v478 = vunpack.c.h.b16 %v147
  %v479 = vunpack.c.l.b16 %v148
  %v480 = vunpack.c.l.b16 %v149
  %v481 = vunpack.c.h.b16 %v149
  %v482 = vunpack.c.l.b16 %v150
  %v483 = vunpack.c.l.b16 %v151
  %v484 = vunpack.c.h.b16 %v151
  %v485 = vunpack.c.l.b16 %v152
  %v486 = vunpack.c.l.b16 %v153
  %v487 = vunpack.c.h.b16 %v153
  %v488 = vunpack.c.l.b16 %v154
  %v489 = vpack.c.b16 %v300, %v297
  %v490 = vpack.c.b16 %v301, %v298
  %v491 = vpack.c.b16 %v302, %v299
  %v492 = vpack.c.b16 %v306, %v303
  %v493 = vpack.c.b16 %v307, %v304
  %v494 = vpack.c.b16 %v308, %v305
  %v495 = vpack.c.b16 %v312, %v309
  %v496 = vpack.c.b16 %v313, %v310
  %v497 = vpack.c.b16 %v314, %v311
  %v498 = vpack.c.b16 %v318, %v315
  %v499 = vpack.c.b16 %v319, %v316
  %v500 = vpack.c.b16 %v320, %v317
  %v501 = vpack.c.b16 %v324, %v321
  %v502 = vpack.c.b16 %v325, %v322
  %v503 = vpack.c.b16 %v326, %v323
  %v504 = vpack.c.b16 %v330, %v327
  %v505 = vpack.c.b16 %v331, %v328
  %v506 = vpack.c.b16 %v332, %v329
  %v507 = vpack.c.b16 %v336, %v333
  %v508 = vpack.c.b16 %v337, %v334
  %v509 = vpack.c.b16 %v338, %v335
  %v510 = vpack.c.b16 %v342, %v339
  %v511 = vpack.c.b16 %v343, %v340
  %v512 = vpack.c.b16 %v344, %v341
  %v513 = vpack.c.b16 %v348, %v345
  %v514 = vpack.c.b16 %v349, %v346
  %v515 = vpack.c.b16 %v350, %v347
  %v516 = vpack.c.b16 %v354, %v351
  %v517 = vpack.c.b16 %v355, %v352
  %v518 = vpack.c.b16 %v356, %v353
  %v519 = vpack.c.b16 %v360, %v357
  %v520 = vpack.c.b16 %v361, %v358
  %v521 = vpack.c.b16 %v362, %v359
  %v522 = vpack.c.b16 %v366, %v363
  %v523 = vpack.c.b16 %v367, %v364
  %v524 = vpack.c.b16 %v368, %v365
  %v525 = vpack.c.b16 %v372, %v369
  %v526 = vpack.c.b16 %v373, %v370
  %v527 = vpack.c.b16 %v374, %v371
  %v528 = vpack.c.b16 %v378, %v375
  %v529 = vpack.c.b16 %v379, %v376
  %v530 = vpack.c.b16 %v380, %v377
  %v531 = vpack.c.b16 %v384, %v381
  %v532 = vpack.c.b16 %v385, %v382
  %v533 = vpack.c.b16 %v386, %v383
  %v534 = vpack.c.b16 %v390, %v387
  %v535 = vpack.c.b16 %v391, %v388
  %v536 = vpack.c.b16 %v392, %v389
  %v537 = vpack.c.b16 %v396, %v393
  %v538 = vpack.c.b16 %v397, %v394
  %v539 = vpack.c.b16 %v398, %v395
  %v540 = vpack.c.b16 %v402, %v399
  %v541 = vpack.c.b16 %v403, %v400
  %v542 = vpack.c.b16 %v404, %v401
  %v543 = vpack.c.b16 %v408, %v405
  %v544 = vpack.c.b16 %v409, %v406
  %v545 = vpack.c.b16 %v410, %v407
  %v546 = vpack.c.b16 %v414, %v411
  %v547 = vpack.c.b16 %v415, %v412
  %v548 = vpack.c.b16 %v416, %v413
  %v549 = vpack.c.b16 %v420, %v417
  %v550 = vpack.c.b16 %v421, %v418
  %v551 = vpack.c.b16 %v422, %v419
  %v552 = vpack.c.b16 %v426, %v423
  %v553 = vpack.c.b16 %v427, %v424
  %v554 = vpack.c.b16 %v428, %v425
  %v555 = vpack.c.b16 %v432, %v429
  %v556 = vpack.c.b16 %v433, %v430
  %v557 = vpack.c.b16 %v434, %v431
  %v558 = vpack.c.b16 %v438, %v435
  %v559 = vpack.c.b16 %v439, %v436
  %v560 = vpack.c.b16 %v440, %v437
  %v561 = vpack.c.b16 %v444, %v441
  %v562 = vpack.c.b16 %v445, %v442
  %v563 = vpack.c.b16 %v446, %v443
  %v564 = vpack.c.b16 %v450, %v447
  %v565 = vpack.c.b16 %v451, %v448
  %v566 = vpack.c.b16 %v452, %v449
  %v567 = vpack.c.b16 %v456, %v453
  %v568 = vpack.c.b16 %v457, %v454
  %v569 = vpack.c.b16 %v458, %v455
  %v570 = vpack.c.b16 %v462, %v459
  %v571 = vpack.c.b16 %v463, %v460
  %v572 = vpack.c.b16 %v464, %v461
  %v573 = vpack.c.b16 %v468, %v465
  %v574 = vpack.c.b16 %v469, %v466
  %v575 = vpack.c.b16 %v470, %v467
  %v576 = vpack.c.b16 %v474, %v471
  %v577 = vpack.c.b16 %v475, %v472
  %v578 = vpack.c.b16 %v476, %v473
  %v579 = vpack.c.b16 %v480, %v477
  %v580 = vpack.c.b16 %v481, %v478
  %v581 = vpack.c.b16 %v482, %v479
  %v582 = vpack.c.b16 %v486, %v483
  %v583 = vpack.c.b16 %v487, %v484
  %v584 = vpack.c.b16 %v488, %v485
  %681 = vmatprep.subr.bf16.mxu0 %v490
  %682 = vmatpush1.bf16.msra.mxu0 %v489
  %683 = vmatprep.subr.bf16.mxu0 %v493
  %684 = vmatpush1.bf16.msra.mxu0 %v492
  %685 = vmatprep.subr.bf16.mxu0 %v496
  %686 = vmatpush1.bf16.msra.mxu0 %v495
  %687 = vmatprep.subr.bf16.mxu0 %v499
  %688 = vmatpush1.bf16.msra.mxu0 %v498
  %689 = vmatprep.subr.bf16.mxu0 %v502
  %690 = vmatpush1.bf16.msra.mxu0 %v501
  %691 = vmatprep.subr.bf16.mxu0 %v505
  %692 = vmatpush1.bf16.msra.mxu0 %v504
  %693 = vmatprep.subr.bf16.mxu0 %v508
  %694 = vmatpush1.bf16.msra.mxu0 %v507
  %695 = vmatprep.subr.bf16.mxu0 %v511
  %696 = vmatpush1.bf16.msra.mxu0 %v510
  %697 = vmatprep.subr.bf16.mxu0 %v514
  %698 = vmatpush1.bf16.msra.mxu0 %v513
  %699 = vmatprep.subr.bf16.mxu0 %v517
  %700 = vmatpush1.bf16.msra.mxu0 %v516
  %701 = vmatprep.subr.bf16.mxu0 %v520
  %702 = vmatpush1.bf16.msra.mxu0 %v519
  %703 = vmatprep.subr.bf16.mxu0 %v523
  %704 = vmatpush1.bf16.msra.mxu0 %v522
  %705 = vmatprep.subr.bf16.mxu0 %v526
  %706 = vmatpush1.bf16.msra.mxu0 %v525
  %707 = vmatprep.subr.bf16.mxu0 %v529
  %708 = vmatpush1.bf16.msra.mxu0 %v528
  %709 = vmatprep.subr.bf16.mxu0 %v532
  %710 = vmatpush1.bf16.msra.mxu0 %v531
  %711 = vmatprep.subr.bf16.mxu0 %v535
  %712 = vmatpush1.bf16.msra.mxu0 %v534
  %713 = vmatprep.mubr.bf16.mxu0 %v162
  %714 = vmatmul.mubr.bf16.gmra.mrb[0].mxu0 %v161
  %v715 = vpop.f32.mrb[0].mxu0
  %v716 = vadd.f32 0.0, %v715
  %v717 = vpop.f32.mrb[0].mxu0
  %v718 = vadd.f32 0.0, %v717
  %v719 = vpop.f32.mrb[0].mxu0
  %v720 = vpop.f32.mrb[0].mxu0
  %721 = vdwg.mxu0
  %722 = vmatprep.subr.bf16.mxu0 %v538
  %723 = vmatpush1.bf16.msra.mxu0 %v537
  %724 = vmatprep.subr.bf16.mxu0 %v541
  %725 = vmatpush1.bf16.msra.mxu0 %v540
  %726 = vmatprep.subr.bf16.mxu0 %v544
  %727 = vmatpush1.bf16.msra.mxu0 %v543
  %728 = vmatprep.subr.bf16.mxu0 %v547
  %729 = vmatpush1.bf16.msra.mxu0 %v546
  %730 = vmatprep.subr.bf16.mxu0 %v550
  %731 = vmatpush1.bf16.msra.mxu0 %v549
  %732 = vmatprep.subr.bf16.mxu0 %v553
  %733 = vmatpush1.bf16.msra.mxu0 %v552
  %734 = vmatprep.subr.bf16.mxu0 %v556
  %735 = vmatpush1.bf16.msra.mxu0 %v555
  %736 = vmatprep.subr.bf16.mxu0 %v559
  %737 = vmatpush1.bf16.msra.mxu0 %v558
  %738 = vmatprep.subr.bf16.mxu0 %v562
  %739 = vmatpush1.bf16.msra.mxu0 %v561
  %740 = vmatprep.subr.bf16.mxu0 %v565
  %741 = vmatpush1.bf16.msra.mxu0 %v564
  %742 = vmatprep.subr.bf16.mxu0 %v568
  %743 = vmatpush1.bf16.msra.mxu0 %v567
  %744 = vmatprep.subr.bf16.mxu0 %v571
  %745 = vmatpush1.bf16.msra.mxu0 %v570
  %746 = vmatprep.subr.bf16.mxu0 %v574
  %747 = vmatpush1.bf16.msra.mxu0 %v573
  %748 = vmatprep.subr.bf16.mxu0 %v577
  %749 = vmatpush1.bf16.msra.mxu0 %v576
  %750 = vmatprep.subr.bf16.mxu0 %v580
  %751 = vmatpush1.bf16.msra.mxu0 %v579
  %752 = vmatprep.subr.bf16.mxu0 %v583
  %753 = vmatpush1.bf16.msra.mxu0 %v582
  %754 = vmatprep.mubr.bf16.mxu0 %v164
  %755 = vmatmul.mubr.bf16.gmra.mrb[0].mxu0 %v163
  %v756 = vpop.f32.mrb[0].mxu0
  %v757 = vadd.f32 %v716, %v756
  %v758 = vpop.f32.mrb[0].mxu0
  %v759 = vadd.f32 %v718, %v758
  %v760 = vpop.f32.mrb[0].mxu0
  %v761 = vpop.f32.mrb[0].mxu0
  %762 = vdwg.mxu0
  %763 = vmatprep.subr.bf16.mxu0 0
  %764 = vmatpush1.bf16.msra.mxu0 %v491
  %765 = vmatprep.subr.bf16.mxu0 0
  %766 = vmatpush1.bf16.msra.mxu0 %v494
  %767 = vmatprep.subr.bf16.mxu0 0
  %768 = vmatpush1.bf16.msra.mxu0 %v497
  %769 = vmatprep.subr.bf16.mxu0 0
  %770 = vmatpush1.bf16.msra.mxu0 %v500
  %771 = vmatprep.subr.bf16.mxu0 0
  %772 = vmatpush1.bf16.msra.mxu0 %v503
  %773 = vmatprep.subr.bf16.mxu0 0
  %774 = vmatpush1.bf16.msra.mxu0 %v506
  %775 = vmatprep.subr.bf16.mxu0 0
  %776 = vmatpush1.bf16.msra.mxu0 %v509
  %777 = vmatprep.subr.bf16.mxu0 0
  %778 = vmatpush1.bf16.msra.mxu0 %v512
  %779 = vmatprep.subr.bf16.mxu0 0
  %780 = vmatpush1.bf16.msra.mxu0 %v515
  %781 = vmatprep.subr.bf16.mxu0 0
  %782 = vmatpush1.bf16.msra.mxu0 %v518
  %783 = vmatprep.subr.bf16.mxu0 0
  %784 = vmatpush1.bf16.msra.mxu0 %v521
  %785 = vmatprep.subr.bf16.mxu0 0
  %786 = vmatpush1.bf16.msra.mxu0 %v524
  %787 = vmatprep.subr.bf16.mxu0 0
  %788 = vmatpush1.bf16.msra.mxu0 %v527
  %789 = vmatprep.subr.bf16.mxu0 0
  %790 = vmatpush1.bf16.msra.mxu0 %v530
  %791 = vmatprep.subr.bf16.mxu0 0
  %792 = vmatpush1.bf16.msra.mxu0 %v533
  %793 = vmatprep.subr.bf16.mxu0 0
  %794 = vmatpush1.bf16.msra.mxu0 %v536
  %795 = vmatprep.mubr.bf16.mxu0 %v162
  %796 = vmatmul.mubr.bf16.gmra.mrb[0].mxu0 %v161
  %v797 = vpop.f32.mrb[0].mxu0
  %v798 = vadd.f32 0.0, %v797
  %v799 = vpop.f32.mrb[0].mxu0
  %v800 = vpop.f32.mrb[0].mxu0
  %v801 = vpop.f32.mrb[0].mxu0
  %802 = vdwg.mxu0
  %803 = vmatprep.subr.bf16.mxu0 0
  %804 = vmatpush1.bf16.msra.mxu0 %v539
  %805 = vmatprep.subr.bf16.mxu0 0
  %806 = vmatpush1.bf16.msra.mxu0 %v542
  %807 = vmatprep.subr.bf16.mxu0 0
  %808 = vmatpush1.bf16.msra.mxu0 %v545
  %809 = vmatprep.subr.bf16.mxu0 0
  %810 = vmatpush1.bf16.msra.mxu0 %v548
  %811 = vmatprep.subr.bf16.mxu0 0
  %812 = vmatpush1.bf16.msra.mxu0 %v551
  %813 = vmatprep.subr.bf16.mxu0 0
  %814 = vmatpush1.bf16.msra.mxu0 %v554
  %815 = vmatprep.subr.bf16.mxu0 0
  %816 = vmatpush1.bf16.msra.mxu0 %v557
  %817 = vmatprep.subr.bf16.mxu0 0
  %818 = vmatpush1.bf16.msra.mxu0 %v560
  %819 = vmatprep.subr.bf16.mxu0 0
  %820 = vmatpush1.bf16.msra.mxu0 %v563
  %821 = vmatprep.subr.bf16.mxu0 0
  %822 = vmatpush1.bf16.msra.mxu0 %v566
  %823 = vmatprep.subr.bf16.mxu0 0
  %824 = vmatpush1.bf16.msra.mxu0 %v569
  %825 = vmatprep.subr.bf16.mxu0 0
  %826 = vmatpush1.bf16.msra.mxu0 %v572
  %827 = vmatprep.subr.bf16.mxu0 0
  %828 = vmatpush1.bf16.msra.mxu0 %v575
  %829 = vmatprep.subr.bf16.mxu0 0
  %830 = vmatpush1.bf16.msra.mxu0 %v578
  %831 = vmatprep.subr.bf16.mxu0 0
  %832 = vmatpush1.bf16.msra.mxu0 %v581
  %833 = vmatprep.subr.bf16.mxu0 0
  %834 = vmatpush1.bf16.msra.mxu0 %v584
  %835 = vmatprep.mubr.bf16.mxu0 %v164
  %836 = vmatmul.mubr.bf16.gmra.mrb[0].mxu0 %v163
  %v837 = vpop.f32.mrb[0].mxu0
  %v838 = vadd.f32 %v798, %v837
  %v839 = vpop.f32.mrb[0].mxu0
  %v840 = vpop.f32.mrb[0].mxu0
  %v841 = vpop.f32.mrb[0].mxu0
  %842 = vdwg.mxu0
  %v843 = vadd.f32 %v22, %v757
  %v844 = vadd.f32 %v23, %v759
  %v845 = vadd.f32 %v24, %v838
  %846 = vst [vmem:[#allocation2] sm:$0xff] %v843
  %847 = vst [vmem:[#allocation2 + $0x8] sm:$0xff] %v844
  %848 = vst [vmem:[#allocation2 + $0x10] sm:$0xff] %v845
  // Predicated region
  $region18: #{cortical_column_net_v4.6} parent=0 // pred_check
    %p849 = pneg %p15
  $region19: #{cortical_column_net_v4.6} parent=0 // pred_check_branch
    %851 = sbr.rel (%p849) target = $region21
  $region20: #{cortical_column_net_v4.6} parent=0 // pred_region
    %v852 = vld [vmem:[#allocation2] sm:$0xff]
    %v853 = vld [vmem:[#allocation2 + $0x8] sm:$0xff]
    %v854 = vld [vmem:[#allocation2 + $0x10] sm:$0xff]
    %v855 = vld [vmem:[%s2] sm:$0x7]
    %v857 = vlaneseq
    %v858 = vshrl.u32 %v857, 7
    %v859 = vsub.s32 0, %v858
    %v860 = vrot.slane %v855, %v859
    %v861 = vlaneseq
    %v862 = vshrl.u32 %v861, 7
    %v863 = vsub.s32 1, %v862
    %v864 = vrot.slane %v855, %v863
    %v865 = vlaneseq
    %v866 = vshrl.u32 %v865, 7
    %v867 = vsub.s32 2, %v866
    %v868 = vrot.slane %v855, %v867
    %v872 = vadd.f32 %v852, %v860
    %v873 = vadd.f32 %v853, %v864
    %v874 = vadd.f32 %v854, %v868
    %875 = vst [vmem:[%s3] sm:$0xff] %v872
    %876 = vst [vmem:[%s3 + $0x8] sm:$0xff] %v873
    %877 = vst [vmem:[%s3 + $0x10] sm:$0xff] %v874
  $region21: #{cortical_column_net_v4.6} parent=0 // pred_fallthru
    _
  // Predicated region
  $region22: #{cortical_column_net_v4.6} parent=0 // pred_check
    _
  $region23: #{cortical_column_net_v4.6} parent=0 // pred_check_branch
    %879 = sbr.rel (0) target = $region25
  $region24: #{cortical_column_net_v4.6} parent=0 // pred_region
    _
  $region25: #{cortical_column_net_v4.6} parent=0 // pred_fallthru
    _
  // Predicated region
  $region26: #{cortical_column_net_v4.6} parent=0 // pred_check
    _
  $region27: #{cortical_column_net_v4.6} parent=0 // pred_check_branch
    %881 = sbr.rel (0) target = $region29
  $region28: #{cortical_column_net_v4.6} parent=0 // pred_region
    _
  $region29: #{cortical_column_net_v4.6} parent=0 // pred_fallthru
    _

// kernel: cortical_column_net_v4.7
$region0: #{cortical_column_net_v4.7}
  #allocation0 [shape = 'u32[]', space=smem, size = 0x4, offset = 0x4, fixed_abs, tag = 'smem constant byte address 0x4 - core index']
  #allocation1 [shape = 'u32[144,128]{1,0:T(1,128)}', space=vmem, size = 0x12000, scoped, tag = 'internal scratch']
  #allocation2 [shape = 'f32[2,128]{1,0:T(2,128)}', space=vmem, size = 0x400, scoped, tag = 'scratch operand']
  #allocation3 [shape = 'f32[2,128]{1,0:T(2,128)}', space=vmem, size = 0x400, scoped, tag = 'scratch operand']
  %s0 = inlined_call_operand.vmem [shape: f32[4,2,384], index: 0, kind: input, shape index: {}]
  %s1 = inlined_call_operand.vmem [shape: bf16[128,384], index: 1, kind: input, shape index: {}]
  %s2 = inlined_call_operand.vmem [shape: f32[1,384], index: 2, kind: input, shape index: {}]
  %s3 = inlined_call_operand.vmem [shape: bf16[128,384], index: 3, kind: input, shape index: {}]
  %s4 = inlined_call_operand.vmem [shape: f32[1,384], index: 4, kind: input, shape index: {}]
  %s5 = inlined_call_operand.vmem [shape: bf16[128,384], index: 5, kind: input, shape index: {}]
  %s6 = inlined_call_operand.vmem [shape: f32[1,384], index: 6, kind: input, shape index: {}]
  %s7 = inlined_call_operand.vmem [shape: bf16[128,64], index: 7, kind: input, shape index: {}]
  %s8 = inlined_call_operand.vmem [shape: f32[1,64], index: 8, kind: input, shape index: {}]
  %s9 = inlined_call_operand.vmem [shape: bf16[64,32], index: 9, kind: input, shape index: {}]
  %s10 = inlined_call_operand.vmem [shape: f32[1,32], index: 10, kind: input, shape index: {}]
  %s11 = inlined_call_operand.vmem [shape: bf16[32,10], index: 11, kind: input, shape index: {}]
  %s12 = inlined_call_operand.vmem [shape: f32[1,10], index: 12, kind: input, shape index: {}]
  %s13 = inlined_call_operand.hbm [shape: f32[2,10], index: 13, kind: output, shape index: {}]
  %s14 = sld [smem:[#allocation0]]
  $region93: #{cortical_column_net_v4.7} parent=0
    _
  %s16 = ssub.s32 1, %s14
  %s17 = scalar_select 0, %s16, %s14
  $region1: #{cortical_column_net_v4.7} parent=0
    #allocation4 [shape = 'u8[1024]{0}', space=vmem, size = 0x400, scoped, tag = 'output window, operand 0, single buffered']
    #allocation5 [shape = 's32[2]{0}', space=sflag, size = 0x8, scoped, tag = 'scoped memory for cortical_column_net_v4.7']
    %18 = vsyncpa [#allocation5], 0
    loop: start=0, step=1, limit=6
    $region2: #{cortical_column_net_v4.7} parent=1 // loop_pre_header
      _
    $region3: #{cortical_column_net_v4.7} parent=1 // loop_header
      %s20 = sphi 0, %s24
      %p21 = scmp.ge.s32.totalorder %s20, 6
      %s30 = sphi 0, %s32
      %s33 = sphi 0, %s30
      %s34 = sphi 0, %s33
      %s50 = sphi 0, %s34
      %s54 = sphi 0, %s54
      %s56 = sphi 0, %s54
      %s57 = sphi 0, %s56
      %s71 = sphi 0, %s57
      %s75 = sphi 0, %s75
      %s77 = sphi 0, %s75
      %s78 = sphi 0, %s77
      %s92 = sphi 0, %s78
      %s96 = sphi 0, %s96
      %s98 = sphi 0, %s96
      %s99 = sphi 0, %s98
      %s113 = sphi 0, %s99
      %s117 = sphi 0, %s117
      %s119 = sphi 0, %s117
      %s120 = sphi 0, %s119
      %s134 = sphi 0, %s120
      %s138 = sphi 0, %s138
      %s140 = sphi 0, %s138
      %s141 = sphi 0, %s140
      %s155 = sphi 0, %s141
      %s159 = sphi 0, %s159
      %s161 = sphi 0, %s159
      %s162 = sphi 0, %s161
      %s176 = sphi 0, %s162
      %s180 = sphi 0, %s180
      %s182 = sphi 0, %s180
      %s183 = sphi 0, %s182
      %s197 = sphi 0, %s183
      %s201 = sphi 0, %s201
      %s203 = sphi 0, %s201
      %s204 = sphi 0, %s203
      %s218 = sphi 0, %s204
      %s222 = sphi 0, %s222
      %s224 = sphi 0, %s222
      %s225 = sphi 0, %s224
      %s239 = sphi 0, %s225
      %s243 = sphi 0, %s243
      %s245 = sphi 0, %s243
      %s246 = sphi 0, %s245
      %s260 = sphi 0, %s246
      %s264 = sphi 0, %s264
      %s266 = sphi 0, %s264
      %s267 = sphi 0, %s266
      %s281 = sphi 0, %s267
      %s285 = sphi 0, %s285
      %s287 = sphi 0, %s285
      %s288 = sphi 0, %s287
      %s302 = sphi 0, %s288
      %s306 = sphi 0, %s306
      %s308 = sphi 0, %s306
      %s309 = sphi 0, %s308
      %s323 = sphi 0, %s309
    $region4: #{cortical_column_net_v4.7} parent=1 // loop_header_branch
      %23 = sbr.rel (%p21) target = $region8
    $region5: #{cortical_column_net_v4.7} parent=1 // loop_body
      %s25 = ssub.s32 %s20, 1
      %s26 = ssub.s32 %s20, 2
      %s27 = sadd.s32 %s20, 1
      %s28 = ssub.s32 %s20, %s27
      %p29 = scmp.eq.s32.totalorder %s28, 0
      %s31 = sadd.s32 %s30, 1
      %s32 = scalar_select %p29, %s30, %s31
      %p35 = pneg %p29
      %p36 = scmp.eq.s32.totalorder %s20, 3
      %p37 = por %p35, %p36
      %p38 = scmp.ne.s32.totalorder %s30, %s33
      %p39 = scmp.eq.s32.totalorder %s20, 0
      %p40 = por %p38, %p39
      %p41 = scmp.ne.s32.totalorder %s30, %s33
      %p42 = scmp.eq.s32.totalorder %s25, 3
      %p43 = por %p41, %p42
      %p44 = scmp.ne.s32.totalorder %s33, %s34
      %p45 = scmp.eq.s32.totalorder %s25, 0
      %p46 = por %p44, %p45
      %p47 = scmp.ne.s32.totalorder %s33, %s34
      %p48 = scmp.eq.s32.totalorder %s26, 3
      %p49 = por %p47, %p48
      %p51 = scmp.ne.s32.totalorder %s34, %s50
      %p52 = scmp.eq.s32.totalorder %s26, 0
      %p53 = por %p51, %p52
      %s55 = sadd.s32 %s54, 1
      %p58 = scmp.eq.s32.totalorder %s20, 3
      %p59 = scmp.ne.s32.totalorder %s54, %s56
      %p60 = scmp.eq.s32.totalorder %s20, 0
      %p61 = por %p59, %p60
      %p62 = scmp.ne.s32.totalorder %s54, %s56
      %p63 = scmp.eq.s32.totalorder %s25, 3
      %p64 = por %p62, %p63
      %p65 = scmp.ne.s32.totalorder %s56, %s57
      %p66 = scmp.eq.s32.totalorder %s25, 0
      %p67 = por %p65, %p66
      %p68 = scmp.ne.s32.totalorder %s56, %s57
      %p69 = scmp.eq.s32.totalorder %s26, 3
      %p70 = por %p68, %p69
      %p72 = scmp.ne.s32.totalorder %s57, %s71
      %p73 = scmp.eq.s32.totalorder %s26, 0
      %p74 = por %p72, %p73
      %s76 = sadd.s32 %s75, 1
      %p79 = scmp.eq.s32.totalorder %s20, 3
      %p80 = scmp.ne.s32.totalorder %s75, %s77
      %p81 = scmp.eq.s32.totalorder %s20, 0
      %p82 = por %p80, %p81
      %p83 = scmp.ne.s32.totalorder %s75, %s77
      %p84 = scmp.eq.s32.totalorder %s25, 3
      %p85 = por %p83, %p84
      %p86 = scmp.ne.s32.totalorder %s77, %s78
      %p87 = scmp.eq.s32.totalorder %s25, 0
      %p88 = por %p86, %p87
      %p89 = scmp.ne.s32.totalorder %s77, %s78
      %p90 = scmp.eq.s32.totalorder %s26, 3
      %p91 = por %p89, %p90
      %p93 = scmp.ne.s32.totalorder %s78, %s92
      %p94 = scmp.eq.s32.totalorder %s26, 0
      %p95 = por %p93, %p94
      %s97 = sadd.s32 %s96, 1
      %p100 = scmp.eq.s32.totalorder %s20, 3
      %p101 = scmp.ne.s32.totalorder %s96, %s98
      %p102 = scmp.eq.s32.totalorder %s20, 0
      %p103 = por %p101, %p102
      %p104 = scmp.ne.s32.totalorder %s96, %s98
      %p105 = scmp.eq.s32.totalorder %s25, 3
      %p106 = por %p104, %p105
      %p107 = scmp.ne.s32.totalorder %s98, %s99
      %p108 = scmp.eq.s32.totalorder %s25, 0
      %p109 = por %p107, %p108
      %p110 = scmp.ne.s32.totalorder %s98, %s99
      %p111 = scmp.eq.s32.totalorder %s26, 3
      %p112 = por %p110, %p111
      %p114 = scmp.ne.s32.totalorder %s99, %s113
      %p115 = scmp.eq.s32.totalorder %s26, 0
      %p116 = por %p114, %p115
      %s118 = sadd.s32 %s117, 1
      %p121 = scmp.eq.s32.totalorder %s20, 3
      %p122 = scmp.ne.s32.totalorder %s117, %s119
      %p123 = scmp.eq.s32.totalorder %s20, 0
      %p124 = por %p122, %p123
      %p125 = scmp.ne.s32.totalorder %s117, %s119
      %p126 = scmp.eq.s32.totalorder %s25, 3
      %p127 = por %p125, %p126
      %p128 = scmp.ne.s32.totalorder %s119, %s120
      %p129 = scmp.eq.s32.totalorder %s25, 0
      %p130 = por %p128, %p129
      %p131 = scmp.ne.s32.totalorder %s119, %s120
      %p132 = scmp.eq.s32.totalorder %s26, 3
      %p133 = por %p131, %p132
      %p135 = scmp.ne.s32.totalorder %s120, %s134
      %p136 = scmp.eq.s32.totalorder %s26, 0
      %p137 = por %p135, %p136
      %s139 = sadd.s32 %s138, 1
      %p142 = scmp.eq.s32.totalorder %s20, 3
      %p143 = scmp.ne.s32.totalorder %s138, %s140
      %p144 = scmp.eq.s32.totalorder %s20, 0
      %p145 = por %p143, %p144
      %p146 = scmp.ne.s32.totalorder %s138, %s140
      %p147 = scmp.eq.s32.totalorder %s25, 3
      %p148 = por %p146, %p147
      %p149 = scmp.ne.s32.totalorder %s140, %s141
      %p150 = scmp.eq.s32.totalorder %s25, 0
      %p151 = por %p149, %p150
      %p152 = scmp.ne.s32.totalorder %s140, %s141
      %p153 = scmp.eq.s32.totalorder %s26, 3
      %p154 = por %p152, %p153
      %p156 = scmp.ne.s32.totalorder %s141, %s155
      %p157 = scmp.eq.s32.totalorder %s26, 0
      %p158 = por %p156, %p157
      %s160 = sadd.s32 %s159, 1
      %p163 = scmp.eq.s32.totalorder %s20, 3
      %p164 = scmp.ne.s32.totalorder %s159, %s161
      %p165 = scmp.eq.s32.totalorder %s20, 0
      %p166 = por %p164, %p165
      %p167 = scmp.ne.s32.totalorder %s159, %s161
      %p168 = scmp.eq.s32.totalorder %s25, 3
      %p169 = por %p167, %p168
      %p170 = scmp.ne.s32.totalorder %s161, %s162
      %p171 = scmp.eq.s32.totalorder %s25, 0
      %p172 = por %p170, %p171
      %p173 = scmp.ne.s32.totalorder %s161, %s162
      %p174 = scmp.eq.s32.totalorder %s26, 3
      %p175 = por %p173, %p174
      %p177 = scmp.ne.s32.totalorder %s162, %s176
      %p178 = scmp.eq.s32.totalorder %s26, 0
      %p179 = por %p177, %p178
      %s181 = sadd.s32 %s180, 1
      %p184 = scmp.eq.s32.totalorder %s20, 3
      %p185 = scmp.ne.s32.totalorder %s180, %s182
      %p186 = scmp.eq.s32.totalorder %s20, 0
      %p187 = por %p185, %p186
      %p188 = scmp.ne.s32.totalorder %s180, %s182
      %p189 = scmp.eq.s32.totalorder %s25, 3
      %p190 = por %p188, %p189
      %p191 = scmp.ne.s32.totalorder %s182, %s183
      %p192 = scmp.eq.s32.totalorder %s25, 0
      %p193 = por %p191, %p192
      %p194 = scmp.ne.s32.totalorder %s182, %s183
      %p195 = scmp.eq.s32.totalorder %s26, 3
      %p196 = por %p194, %p195
      %p198 = scmp.ne.s32.totalorder %s183, %s197
      %p199 = scmp.eq.s32.totalorder %s26, 0
      %p200 = por %p198, %p199
      %s202 = sadd.s32 %s201, 1
      %p205 = scmp.eq.s32.totalorder %s20, 3
      %p206 = scmp.ne.s32.totalorder %s201, %s203
      %p207 = scmp.eq.s32.totalorder %s20, 0
      %p208 = por %p206, %p207
      %p209 = scmp.ne.s32.totalorder %s201, %s203
      %p210 = scmp.eq.s32.totalorder %s25, 3
      %p211 = por %p209, %p210
      %p212 = scmp.ne.s32.totalorder %s203, %s204
      %p213 = scmp.eq.s32.totalorder %s25, 0
      %p214 = por %p212, %p213
      %p215 = scmp.ne.s32.totalorder %s203, %s204
      %p216 = scmp.eq.s32.totalorder %s26, 3
      %p217 = por %p215, %p216
      %p219 = scmp.ne.s32.totalorder %s204, %s218
      %p220 = scmp.eq.s32.totalorder %s26, 0
      %p221 = por %p219, %p220
      %s223 = sadd.s32 %s222, 1
      %p226 = scmp.eq.s32.totalorder %s20, 3
      %p227 = scmp.ne.s32.totalorder %s222, %s224
      %p228 = scmp.eq.s32.totalorder %s20, 0
      %p229 = por %p227, %p228
      %p230 = scmp.ne.s32.totalorder %s222, %s224
      %p231 = scmp.eq.s32.totalorder %s25, 3
      %p232 = por %p230, %p231
      %p233 = scmp.ne.s32.totalorder %s224, %s225
      %p234 = scmp.eq.s32.totalorder %s25, 0
      %p235 = por %p233, %p234
      %p236 = scmp.ne.s32.totalorder %s224, %s225
      %p237 = scmp.eq.s32.totalorder %s26, 3
      %p238 = por %p236, %p237
      %p240 = scmp.ne.s32.totalorder %s225, %s239
      %p241 = scmp.eq.s32.totalorder %s26, 0
      %p242 = por %p240, %p241
      %s244 = sadd.s32 %s243, 1
      %p247 = scmp.eq.s32.totalorder %s20, 3
      %p248 = scmp.ne.s32.totalorder %s243, %s245
      %p249 = scmp.eq.s32.totalorder %s20, 0
      %p250 = por %p248, %p249
      %p251 = scmp.ne.s32.totalorder %s243, %s245
      %p252 = scmp.eq.s32.totalorder %s25, 3
      %p253 = por %p251, %p252
      %p254 = scmp.ne.s32.totalorder %s245, %s246
      %p255 = scmp.eq.s32.totalorder %s25, 0
      %p256 = por %p254, %p255
      %p257 = scmp.ne.s32.totalorder %s245, %s246
      %p258 = scmp.eq.s32.totalorder %s26, 3
      %p259 = por %p257, %p258
      %p261 = scmp.ne.s32.totalorder %s246, %s260
      %p262 = scmp.eq.s32.totalorder %s26, 0
      %p263 = por %p261, %p262
      %s265 = sadd.s32 %s264, 1
      %p268 = scmp.eq.s32.totalorder %s20, 3
      %p269 = scmp.ne.s32.totalorder %s264, %s266
      %p270 = scmp.eq.s32.totalorder %s20, 0
      %p271 = por %p269, %p270
      %p272 = scmp.ne.s32.totalorder %s264, %s266
      %p273 = scmp.eq.s32.totalorder %s25, 3
      %p274 = por %p272, %p273
      %p275 = scmp.ne.s32.totalorder %s266, %s267
      %p276 = scmp.eq.s32.totalorder %s25, 0
      %p277 = por %p275, %p276
      %p278 = scmp.ne.s32.totalorder %s266, %s267
      %p279 = scmp.eq.s32.totalorder %s26, 3
      %p280 = por %p278, %p279
      %p282 = scmp.ne.s32.totalorder %s267, %s281
      %p283 = scmp.eq.s32.totalorder %s26, 0
      %p284 = por %p282, %p283
      %s286 = sadd.s32 %s285, 1
      %p289 = scmp.eq.s32.totalorder %s20, 3
      %p290 = scmp.ne.s32.totalorder %s285, %s287
      %p291 = scmp.eq.s32.totalorder %s20, 0
      %p292 = por %p290, %p291
      %p293 = scmp.ne.s32.totalorder %s285, %s287
      %p294 = scmp.eq.s32.totalorder %s25, 3
      %p295 = por %p293, %p294
      %p296 = scmp.ne.s32.totalorder %s287, %s288
      %p297 = scmp.eq.s32.totalorder %s25, 0
      %p298 = por %p296, %p297
      %p299 = scmp.ne.s32.totalorder %s287, %s288
      %p300 = scmp.eq.s32.totalorder %s26, 3
      %p301 = por %p299, %p300
      %p303 = scmp.ne.s32.totalorder %s288, %s302
      %p304 = scmp.eq.s32.totalorder %s26, 0
      %p305 = por %p303, %p304
      %s307 = sadd.s32 %s306, 1
      %p310 = scmp.eq.s32.totalorder %s20, 3
      %p311 = scmp.ne.s32.totalorder %s306, %s308
      %p312 = scmp.eq.s32.totalorder %s20, 0
      %p313 = por %p311, %p312
      %p314 = scmp.ne.s32.totalorder %s306, %s308
      %p315 = scmp.eq.s32.totalorder %s25, 3
      %p316 = por %p314, %p315
      %p317 = scmp.ne.s32.totalorder %s308, %s309
      %p318 = scmp.eq.s32.totalorder %s25, 0
      %p319 = por %p317, %p318
      %p320 = scmp.ne.s32.totalorder %s308, %s309
      %p321 = scmp.eq.s32.totalorder %s26, 3
      %p322 = por %p320, %p321
      %p324 = scmp.ne.s32.totalorder %s309, %s323
      %p325 = scmp.eq.s32.totalorder %s26, 0
      %p326 = por %p324, %p325
      %p327 = scmp.le.s32.totalorder 1, %s20
      %p328 = scmp.lt.s32.totalorder %s20, 5
      %p329 = pnand %p327, %p328
      %p330 = pneg %p329
      // Predicated region
      $region9: #{cortical_column_net_v4.7} parent=5 // pred_check
        _
      $region10: #{cortical_column_net_v4.7} parent=5 // pred_check_branch
        %332 = sbr.rel (%p329) target = $region12
      $region11: #{cortical_column_net_v4.7} parent=5 // pred_region
        %s333 = ssub.s32 %s20, 1
        // Predicated region
        $region13: #{cortical_column_net_v4.7} parent=11 // pred_check
          %p334 = pneg %p67
        $region14: #{cortical_column_net_v4.7} parent=11 // pred_check_branch
          %336 = sbr.rel (%p334) target = $region16
        $region15: #{cortical_column_net_v4.7} parent=11 // pred_region
          _
        $region16: #{cortical_column_net_v4.7} parent=11 // pred_fallthru
          _
        // Predicated region
        $region17: #{cortical_column_net_v4.7} parent=11 // pred_check
          %p337 = pneg %p88
        $region18: #{cortical_column_net_v4.7} parent=11 // pred_check_branch
          %339 = sbr.rel (%p337) target = $region20
        $region19: #{cortical_column_net_v4.7} parent=11 // pred_region
          _
        $region20: #{cortical_column_net_v4.7} parent=11 // pred_fallthru
          _
        // Predicated region
        $region21: #{cortical_column_net_v4.7} parent=11 // pred_check
          %p340 = pneg %p109
        $region22: #{cortical_column_net_v4.7} parent=11 // pred_check_branch
          %342 = sbr.rel (%p340) target = $region24
        $region23: #{cortical_column_net_v4.7} parent=11 // pred_region
          _
        $region24: #{cortical_column_net_v4.7} parent=11 // pred_fallthru
          _
        // Predicated region
        $region25: #{cortical_column_net_v4.7} parent=11 // pred_check
          %p343 = pneg %p130
        $region26: #{cortical_column_net_v4.7} parent=11 // pred_check_branch
          %345 = sbr.rel (%p343) target = $region28
        $region27: #{cortical_column_net_v4.7} parent=11 // pred_region
          _
        $region28: #{cortical_column_net_v4.7} parent=11 // pred_fallthru
          _
        // Predicated region
        $region29: #{cortical_column_net_v4.7} parent=11 // pred_check
          %p346 = pneg %p151
        $region30: #{cortical_column_net_v4.7} parent=11 // pred_check_branch
          %348 = sbr.rel (%p346) target = $region32
        $region31: #{cortical_column_net_v4.7} parent=11 // pred_region
          _
        $region32: #{cortical_column_net_v4.7} parent=11 // pred_fallthru
          _
        // Predicated region
        $region33: #{cortical_column_net_v4.7} parent=11 // pred_check
          %p349 = pneg %p172
        $region34: #{cortical_column_net_v4.7} parent=11 // pred_check_branch
          %351 = sbr.rel (%p349) target = $region36
        $region35: #{cortical_column_net_v4.7} parent=11 // pred_region
          _
        $region36: #{cortical_column_net_v4.7} parent=11 // pred_fallthru
          _
        // Predicated region
        $region37: #{cortical_column_net_v4.7} parent=11 // pred_check
          %p352 = pneg %p193
        $region38: #{cortical_column_net_v4.7} parent=11 // pred_check_branch
          %354 = sbr.rel (%p352) target = $region40
        $region39: #{cortical_column_net_v4.7} parent=11 // pred_region
          _
        $region40: #{cortical_column_net_v4.7} parent=11 // pred_fallthru
          _
        // Predicated region
        $region41: #{cortical_column_net_v4.7} parent=11 // pred_check
          %p355 = pneg %p214
        $region42: #{cortical_column_net_v4.7} parent=11 // pred_check_branch
          %357 = sbr.rel (%p355) target = $region44
        $region43: #{cortical_column_net_v4.7} parent=11 // pred_region
          _
        $region44: #{cortical_column_net_v4.7} parent=11 // pred_fallthru
          _
        // Predicated region
        $region45: #{cortical_column_net_v4.7} parent=11 // pred_check
          %p358 = pneg %p235
        $region46: #{cortical_column_net_v4.7} parent=11 // pred_check_branch
          %360 = sbr.rel (%p358) target = $region48
        $region47: #{cortical_column_net_v4.7} parent=11 // pred_region
          _
        $region48: #{cortical_column_net_v4.7} parent=11 // pred_fallthru
          _
        // Predicated region
        $region49: #{cortical_column_net_v4.7} parent=11 // pred_check
          %p361 = pneg %p256
        $region50: #{cortical_column_net_v4.7} parent=11 // pred_check_branch
          %363 = sbr.rel (%p361) target = $region52
        $region51: #{cortical_column_net_v4.7} parent=11 // pred_region
          _
        $region52: #{cortical_column_net_v4.7} parent=11 // pred_fallthru
          _
        // Predicated region
        $region53: #{cortical_column_net_v4.7} parent=11 // pred_check
          %p364 = pneg %p277
        $region54: #{cortical_column_net_v4.7} parent=11 // pred_check_branch
          %366 = sbr.rel (%p364) target = $region56
        $region55: #{cortical_column_net_v4.7} parent=11 // pred_region
          _
        $region56: #{cortical_column_net_v4.7} parent=11 // pred_fallthru
          _
        // Predicated region
        $region57: #{cortical_column_net_v4.7} parent=11 // pred_check
          %p367 = pneg %p298
        $region58: #{cortical_column_net_v4.7} parent=11 // pred_check_branch
          %369 = sbr.rel (%p367) target = $region60
        $region59: #{cortical_column_net_v4.7} parent=11 // pred_region
          _
        $region60: #{cortical_column_net_v4.7} parent=11 // pred_fallthru
          _
      $region12: #{cortical_column_net_v4.7} parent=5 // pred_fallthru
        _
      %p370 = scmp.lt.s32.totalorder %s20, 4
      // Predicated region
      $region61: #{cortical_column_net_v4.7} parent=5 // pred_check
        %p371 = pneg %p370
      $region62: #{cortical_column_net_v4.7} parent=5 // pred_check_branch
        %373 = sbr.rel (%p371) target = $region64
      $region63: #{cortical_column_net_v4.7} parent=5 // pred_region
        // Predicated region
        $region65: #{cortical_column_net_v4.7} parent=63 // pred_check
          %p374 = pneg %p40
        $region66: #{cortical_column_net_v4.7} parent=63 // pred_check_branch
          %376 = sbr.rel (%p374) target = $region68
        $region67: #{cortical_column_net_v4.7} parent=63 // pred_region
          %p377 = scmp.lt.s32.totalorder %s20, 3
          %s378 = scalar_select %p377, %s20, 3
          %s379 = smul.addr %s378, 3
          %s380 = smul.addr %s379, 2
          %s381 = scalar_lea.vmem %s0, %s380
        $region68: #{cortical_column_net_v4.7} parent=63 // pred_fallthru
          _
      $region64: #{cortical_column_net_v4.7} parent=5 // pred_fallthru
        _
      %p382 = scmp.le.s32.totalorder 1, %s20
      %p383 = scmp.lt.s32.totalorder %s20, 5
      %p384 = pnand %p382, %p383
      %p385 = pneg %p384
      // Predicated region
      $region69: #{cortical_column_net_v4.7} parent=5 // pred_check
        _
      $region70: #{cortical_column_net_v4.7} parent=5 // pred_check_branch
        %387 = sbr.rel (%p384) target = $region72
      $region71: #{cortical_column_net_v4.7} parent=5 // pred_region
        %s388 = ssub.s32 %s20, 1
        %p389 = scmp.lt.s32.totalorder %s25, 3
        %s390 = scalar_select %p389, %s25, 3
        %s391 = smul.addr %s390, 3
        %s392 = smul.addr %s391, 2
        %s393 = scalar_lea.vmem %s0, %s392
        %p394 = pneg %p46
        %p395 = pneg %p43
        %p396 = pneg %p67
        %p397 = pneg %p64
        %p398 = pneg %p88
        %p399 = pneg %p85
        %p400 = pneg %p109
        %p401 = pneg %p106
        %p402 = pneg %p130
        %p403 = pneg %p127
        %p404 = pneg %p151
        %p405 = pneg %p148
        %p406 = pneg %p172
        %p407 = pneg %p169
        %p408 = pneg %p193
        %p409 = pneg %p190
        %p410 = pneg %p214
        %p411 = pneg %p211
        %p412 = pneg %p235
        %p413 = pneg %p232
        %p414 = pneg %p256
        %p415 = pneg %p253
        %p416 = pneg %p277
        %p417 = pneg %p274
        %p418 = pneg %p298
        %p419 = pneg %p295
        %p420 = pneg %p319
        %p421 = pneg %p316
        %p422 = scmp.lt.s32.totalorder %s25, 3
        %s423 = scalar_select %p422, %s25, 3
        %s424 = smul.addr %s423, 3
        %s425 = smul.addr %s424, 2
        %s426 = scalar_lea.vmem %s0, %s425
        %p428 = scmp.eq.s32.totalorder %s25, 0
        // Predicated region
        $region73: #{cortical_column_net_v4.7} parent=71 // pred_check
          %p429 = pneg %p428
        $region74: #{cortical_column_net_v4.7} parent=71 // pred_check_branch
          %431 = sbr.rel (%p429) target = $region76
        $region75: #{cortical_column_net_v4.7} parent=71 // pred_region
          %432 = vst [vmem:[#allocation2] sm:$0x3] 0.0
          %433 = vst [vmem:[#allocation3] sm:$0x3] 0.0
        $region76: #{cortical_column_net_v4.7} parent=71 // pred_fallthru
          _
        %v434 = vld [vmem:[%s426] sm:$0x3f]
        %v435 = vld [vmem:[#allocation2] sm:$0x3]
        %v436 = vpack.c.bf16 %v435, %v435
        %v437 = vld [vmem:[%s1] sm:$0xff]
        %v438 = vld [vmem:[%s1 + $0x8] sm:$0xf]
        %v439 = vld [vmem:[%s1 + $0xc] sm:$0xff]
        %v440 = vld [vmem:[%s1 + $0x14] sm:$0xf]
        %v441 = vld [vmem:[%s1 + $0x18] sm:$0xff]
        %v442 = vld [vmem:[%s1 + $0x20] sm:$0xf]
        %v443 = vld [vmem:[%s1 + $0x24] sm:$0xff]
        %v444 = vld [vmem:[%s1 + $0x2c] sm:$0xf]
        %v445 = vld [vmem:[%s1 + $0x30] sm:$0xff]
        %v446 = vld [vmem:[%s1 + $0x38] sm:$0xf]
        %v447 = vld [vmem:[%s1 + $0x3c] sm:$0xff]
        %v448 = vld [vmem:[%s1 + $0x44] sm:$0xf]
        %v449 = vld [vmem:[%s1 + $0x48] sm:$0xff]
        %v450 = vld [vmem:[%s1 + $0x50] sm:$0xf]
        %v451 = vld [vmem:[%s1 + $0x54] sm:$0xff]
        %v452 = vld [vmem:[%s1 + $0x5c] sm:$0xf]
        %v453 = vld [vmem:[%s1 + $0x60] sm:$0xff]
        %v454 = vld [vmem:[%s1 + $0x68] sm:$0xf]
        %v455 = vld [vmem:[%s1 + $0x6c] sm:$0xff]
        %v456 = vld [vmem:[%s1 + $0x74] sm:$0xf]
        %v457 = vld [vmem:[%s1 + $0x78] sm:$0xff]
        %v458 = vld [vmem:[%s1 + $0x80] sm:$0xf]
        %v459 = vld [vmem:[%s1 + $0x84] sm:$0xff]
        %v460 = vld [vmem:[%s1 + $0x8c] sm:$0xf]
        %v461 = vld [vmem:[%s1 + $0x90] sm:$0xff]
        %v462 = vld [vmem:[%s1 + $0x98] sm:$0xf]
        %v463 = vld [vmem:[%s1 + $0x9c] sm:$0xff]
        %v464 = vld [vmem:[%s1 + $0xa4] sm:$0xf]
        %v465 = vld [vmem:[%s1 + $0xa8] sm:$0xff]
        %v466 = vld [vmem:[%s1 + $0xb0] sm:$0xf]
        %v467 = vld [vmem:[%s1 + $0xb4] sm:$0xff]
        %v468 = vld [vmem:[%s1 + $0xbc] sm:$0xf]
        %v469 = vld [vmem:[%s2] sm:$0x7]
        %v471 = vlaneseq
        %v472 = vshrl.u32 %v471, 7
        %v473 = vsub.s32 0, %v472
        %v474 = vrot.slane %v469, %v473
        %v475 = vlaneseq
        %v476 = vshrl.u32 %v475, 7
        %v477 = vsub.s32 1, %v476
        %v478 = vrot.slane %v469, %v477
        %v479 = vlaneseq
        %v480 = vshrl.u32 %v479, 7
        %v481 = vsub.s32 2, %v480
        %v482 = vrot.slane %v469, %v481
        %v518 = vunpack.c.l.b16 %v437
        %v519 = vunpack.c.h.b16 %v437
        %v520 = vunpack.c.l.b16 %v438
        %v521 = vunpack.c.l.b16 %v439
        %v522 = vunpack.c.h.b16 %v439
        %v523 = vunpack.c.l.b16 %v440
        %v524 = vunpack.c.l.b16 %v441
        %v525 = vunpack.c.h.b16 %v441
        %v526 = vunpack.c.l.b16 %v442
        %v527 = vunpack.c.l.b16 %v443
        %v528 = vunpack.c.h.b16 %v443
        %v529 = vunpack.c.l.b16 %v444
        %v530 = vunpack.c.l.b16 %v445
        %v531 = vunpack.c.h.b16 %v445
        %v532 = vunpack.c.l.b16 %v446
        %v533 = vunpack.c.l.b16 %v447
        %v534 = vunpack.c.h.b16 %v447
        %v535 = vunpack.c.l.b16 %v448
        %v536 = vunpack.c.l.b16 %v449
        %v537 = vunpack.c.h.b16 %v449
        %v538 = vunpack.c.l.b16 %v450
        %v539 = vunpack.c.l.b16 %v451
        %v540 = vunpack.c.h.b16 %v451
        %v541 = vunpack.c.l.b16 %v452
        %v542 = vunpack.c.l.b16 %v453
        %v543 = vunpack.c.h.b16 %v453
        %v544 = vunpack.c.l.b16 %v454
        %v545 = vunpack.c.l.b16 %v455
        %v546 = vunpack.c.h.b16 %v455
        %v547 = vunpack.c.l.b16 %v456
        %v548 = vunpack.c.l.b16 %v457
        %v549 = vunpack.c.h.b16 %v457
        %v550 = vunpack.c.l.b16 %v458
        %v551 = vunpack.c.l.b16 %v459
        %v552 = vunpack.c.h.b16 %v459
        %v553 = vunpack.c.l.b16 %v460
        %v554 = vunpack.c.l.b16 %v461
        %v555 = vunpack.c.h.b16 %v461
        %v556 = vunpack.c.l.b16 %v462
        %v557 = vunpack.c.l.b16 %v463
        %v558 = vunpack.c.h.b16 %v463
        %v559 = vunpack.c.l.b16 %v464
        %v560 = vunpack.c.l.b16 %v465
        %v561 = vunpack.c.h.b16 %v465
        %v562 = vunpack.c.l.b16 %v466
        %v563 = vunpack.c.l.b16 %v467
        %v564 = vunpack.c.h.b16 %v467
        %v565 = vunpack.c.l.b16 %v468
        %v566 = vpack.c.b16 %v521, %v518
        %v567 = vpack.c.b16 %v522, %v519
        %v568 = vpack.c.b16 %v523, %v520
        %v569 = vpack.c.b16 %v527, %v524
        %v570 = vpack.c.b16 %v528, %v525
        %v571 = vpack.c.b16 %v529, %v526
        %v572 = vpack.c.b16 %v533, %v530
        %v573 = vpack.c.b16 %v534, %v531
        %v574 = vpack.c.b16 %v535, %v532
        %v575 = vpack.c.b16 %v539, %v536
        %v576 = vpack.c.b16 %v540, %v537
        %v577 = vpack.c.b16 %v541, %v538
        %v578 = vpack.c.b16 %v545, %v542
        %v579 = vpack.c.b16 %v546, %v543
        %v580 = vpack.c.b16 %v547, %v544
        %v581 = vpack.c.b16 %v551, %v548
        %v582 = vpack.c.b16 %v552, %v549
        %v583 = vpack.c.b16 %v553, %v550
        %v584 = vpack.c.b16 %v557, %v554
        %v585 = vpack.c.b16 %v558, %v555
        %v586 = vpack.c.b16 %v559, %v556
        %v587 = vpack.c.b16 %v563, %v560
        %v588 = vpack.c.b16 %v564, %v561
        %v589 = vpack.c.b16 %v565, %v562
        %614 = vmatprep.subr.bf16.mxu0 %v567
        %615 = vmatpush1.bf16.msra.mxu0 %v566
        %616 = vmatprep.subr.bf16.mxu0 %v570
        %617 = vmatpush1.bf16.msra.mxu0 %v569
        %618 = vmatprep.subr.bf16.mxu0 %v573
        %619 = vmatpush1.bf16.msra.mxu0 %v572
        %620 = vmatprep.subr.bf16.mxu0 %v576
        %621 = vmatpush1.bf16.msra.mxu0 %v575
        %622 = vmatprep.subr.bf16.mxu0 %v579
        %623 = vmatpush1.bf16.msra.mxu0 %v578
        %624 = vmatprep.subr.bf16.mxu0 %v582
        %625 = vmatpush1.bf16.msra.mxu0 %v581
        %626 = vmatprep.subr.bf16.mxu0 %v585
        %627 = vmatpush1.bf16.msra.mxu0 %v584
        %628 = vmatprep.subr.bf16.mxu0 %v588
        %629 = vmatpush1.bf16.msra.mxu0 %v587
        %630 = vmatprep.subr.bf16.mxu0 0
        %631 = vmatpush1.bf16.msra.mxu0 0
        %632 = vmatprep.subr.bf16.mxu0 0
        %633 = vmatpush1.bf16.msra.mxu0 0
        %634 = vmatprep.subr.bf16.mxu0 0
        %635 = vmatpush1.bf16.msra.mxu0 0
        %636 = vmatprep.subr.bf16.mxu0 0
        %637 = vmatpush1.bf16.msra.mxu0 0
        %638 = vmatprep.subr.bf16.mxu0 0
        %639 = vmatpush1.bf16.msra.mxu0 0
        %640 = vmatprep.subr.bf16.mxu0 0
        %641 = vmatpush1.bf16.msra.mxu0 0
        %642 = vmatprep.subr.bf16.mxu0 0
        %643 = vmatpush1.bf16.msra.mxu0 0
        %644 = vmatprep.subr.bf16.mxu0 0
        %645 = vmatpush1.bf16.msra.mxu0 0
        %646 = vmatprep.mubr.bf16.mxu0 0
        %647 = vmatmul.mubr.bf16.gmra.mrb[0].mxu0 %v436
        %v648 = vpop.f32.mrb[0].mxu0
        %v649 = vadd.f32 %v474, %v648
        %v650 = vpop.f32.mrb[0].mxu0
        %v651 = vadd.f32 %v478, %v650
        %v652 = vpop.f32.mrb[0].mxu0
        %v653 = vpop.f32.mrb[0].mxu0
        %654 = vdwg.mxu0
        %655 = vmatprep.subr.bf16.mxu0 0
        %656 = vmatpush1.bf16.msra.mxu0 %v568
        %657 = vmatprep.subr.bf16.mxu0 0
        %658 = vmatpush1.bf16.msra.mxu0 %v571
        %659 = vmatprep.subr.bf16.mxu0 0
        %660 = vmatpush1.bf16.msra.mxu0 %v574
        %661 = vmatprep.subr.bf16.mxu0 0
        %662 = vmatpush1.bf16.msra.mxu0 %v577
        %663 = vmatprep.subr.bf16.mxu0 0
        %664 = vmatpush1.bf16.msra.mxu0 %v580
        %665 = vmatprep.subr.bf16.mxu0 0
        %666 = vmatpush1.bf16.msra.mxu0 %v583
        %667 = vmatprep.subr.bf16.mxu0 0
        %668 = vmatpush1.bf16.msra.mxu0 %v586
        %669 = vmatprep.subr.bf16.mxu0 0
        %670 = vmatpush1.bf16.msra.mxu0 %v589
        %671 = vmatprep.subr.bf16.mxu0 0
        %672 = vmatpush1.bf16.msra.mxu0 0
        %673 = vmatprep.subr.bf16.mxu0 0
        %674 = vmatpush1.bf16.msra.mxu0 0
        %675 = vmatprep.subr.bf16.mxu0 0
        %676 = vmatpush1.bf16.msra.mxu0 0
        %677 = vmatprep.subr.bf16.mxu0 0
        %678 = vmatpush1.bf16.msra.mxu0 0
        %679 = vmatprep.subr.bf16.mxu0 0
        %680 = vmatpush1.bf16.msra.mxu0 0
        %681 = vmatprep.subr.bf16.mxu0 0
        %682 = vmatpush1.bf16.msra.mxu0 0
        %683 = vmatprep.subr.bf16.mxu0 0
        %684 = vmatpush1.bf16.msra.mxu0 0
        %685 = vmatprep.subr.bf16.mxu0 0
        %686 = vmatpush1.bf16.msra.mxu0 0
        %687 = vmatprep.mubr.bf16.mxu0 0
        %688 = vmatmul.mubr.bf16.gmra.mrb[0].mxu0 %v436
        %v689 = vpop.f32.mrb[0].mxu0
        %v690 = vadd.f32 %v482, %v689
        %v691 = vpop.f32.mrb[0].mxu0
        %v692 = vpop.f32.mrb[0].mxu0
        %v693 = vpop.f32.mrb[0].mxu0
        %694 = vdwg.mxu0
        %v695 = vadd.f32 %v434, %v649
        %v696 = vxor.u32 %v695, 2147483648
        %v697 = vmul.f32 %v696, 1.442695
        %v698 = vpow.pop %v697
        %v699 = vadd.f32 %v698, 1.0
        %v700 = vrcp.pop %v699
        %v701 = vmul.f32 1.0, %v700
        %v703 = vrot.slane %v434, 2
        %v705 = vadd.f32 %v703, %v651
        %v706 = vxor.u32 %v705, 2147483648
        %v707 = vmul.f32 %v706, 1.442695
        %v708 = vpow.pop %v707
        %v709 = vadd.f32 %v708, 1.0
        %v710 = vrcp.pop %v709
        %v711 = vmul.f32 1.0, %v710
        %v712 = vmul.f32 %v701, %v690
        %v713 = vrot.slane %v434, 4
        %v715 = vadd.f32 %v713, %v712
        %v716 = vtanh.pop %v715
        %v717 = vsub.f32 1.0, %v711
        %v718 = vmul.f32 %v717, %v716
        %v719 = vmul.f32 %v711, %v435
        %v720 = vadd.f32 %v718, %v719
        %v721 = vpack.c.bf16 %v720, %v720
        %v722 = vld [vmem:[%s3] sm:$0xff]
        %v723 = vld [vmem:[%s3 + $0x8] sm:$0xf]
        %v724 = vld [vmem:[%s3 + $0xc] sm:$0xff]
        %v725 = vld [vmem:[%s3 + $0x14] sm:$0xf]
        %v726 = vld [vmem:[%s3 + $0x18] sm:$0xff]
        %v727 = vld [vmem:[%s3 + $0x20] sm:$0xf]
        %v728 = vld [vmem:[%s3 + $0x24] sm:$0xff]
        %v729 = vld [vmem:[%s3 + $0x2c] sm:$0xf]
        %v730 = vld [vmem:[%s3 + $0x30] sm:$0xff]
        %v731 = vld [vmem:[%s3 + $0x38] sm:$0xf]
        %v732 = vld [vmem:[%s3 + $0x3c] sm:$0xff]
        %v733 = vld [vmem:[%s3 + $0x44] sm:$0xf]
        %v734 = vld [vmem:[%s3 + $0x48] sm:$0xff]
        %v735 = vld [vmem:[%s3 + $0x50] sm:$0xf]
        %v736 = vld [vmem:[%s3 + $0x54] sm:$0xff]
        %v737 = vld [vmem:[%s3 + $0x5c] sm:$0xf]
        %v738 = vld [vmem:[%s3 + $0x60] sm:$0xff]
        %v739 = vld [vmem:[%s3 + $0x68] sm:$0xf]
        %v740 = vld [vmem:[%s3 + $0x6c] sm:$0xff]
        %v741 = vld [vmem:[%s3 + $0x74] sm:$0xf]
        %v742 = vld [vmem:[%s3 + $0x78] sm:$0xff]
        %v743 = vld [vmem:[%s3 + $0x80] sm:$0xf]
        %v744 = vld [vmem:[%s3 + $0x84] sm:$0xff]
        %v745 = vld [vmem:[%s3 + $0x8c] sm:$0xf]
        %v746 = vld [vmem:[%s3 + $0x90] sm:$0xff]
        %v747 = vld [vmem:[%s3 + $0x98] sm:$0xf]
        %v748 = vld [vmem:[%s3 + $0x9c] sm:$0xff]
        %v749 = vld [vmem:[%s3 + $0xa4] sm:$0xf]
        %v750 = vld [vmem:[%s3 + $0xa8] sm:$0xff]
        %v751 = vld [vmem:[%s3 + $0xb0] sm:$0xf]
        %v752 = vld [vmem:[%s3 + $0xb4] sm:$0xff]
        %v753 = vld [vmem:[%s3 + $0xbc] sm:$0xf]
        %v754 = vld [vmem:[%s4] sm:$0x7]
        %v756 = vlaneseq
        %v757 = vshrl.u32 %v756, 7
        %v758 = vsub.s32 0, %v757
        %v759 = vrot.slane %v754, %v758
        %v760 = vlaneseq
        %v761 = vshrl.u32 %v760, 7
        %v762 = vsub.s32 1, %v761
        %v763 = vrot.slane %v754, %v762
        %v764 = vlaneseq
        %v765 = vshrl.u32 %v764, 7
        %v766 = vsub.s32 2, %v765
        %v767 = vrot.slane %v754, %v766
        %v803 = vunpack.c.l.b16 %v722
        %v804 = vunpack.c.h.b16 %v722
        %v805 = vunpack.c.l.b16 %v723
        %v806 = vunpack.c.l.b16 %v724
        %v807 = vunpack.c.h.b16 %v724
        %v808 = vunpack.c.l.b16 %v725
        %v809 = vunpack.c.l.b16 %v726
        %v810 = vunpack.c.h.b16 %v726
        %v811 = vunpack.c.l.b16 %v727
        %v812 = vunpack.c.l.b16 %v728
        %v813 = vunpack.c.h.b16 %v728
        %v814 = vunpack.c.l.b16 %v729
        %v815 = vunpack.c.l.b16 %v730
        %v816 = vunpack.c.h.b16 %v730
        %v817 = vunpack.c.l.b16 %v731
        %v818 = vunpack.c.l.b16 %v732
        %v819 = vunpack.c.h.b16 %v732
        %v820 = vunpack.c.l.b16 %v733
        %v821 = vunpack.c.l.b16 %v734
        %v822 = vunpack.c.h.b16 %v734
        %v823 = vunpack.c.l.b16 %v735
        %v824 = vunpack.c.l.b16 %v736
        %v825 = vunpack.c.h.b16 %v736
        %v826 = vunpack.c.l.b16 %v737
        %v827 = vunpack.c.l.b16 %v738
        %v828 = vunpack.c.h.b16 %v738
        %v829 = vunpack.c.l.b16 %v739
        %v830 = vunpack.c.l.b16 %v740
        %v831 = vunpack.c.h.b16 %v740
        %v832 = vunpack.c.l.b16 %v741
        %v833 = vunpack.c.l.b16 %v742
        %v834 = vunpack.c.h.b16 %v742
        %v835 = vunpack.c.l.b16 %v743
        %v836 = vunpack.c.l.b16 %v744
        %v837 = vunpack.c.h.b16 %v744
        %v838 = vunpack.c.l.b16 %v745
        %v839 = vunpack.c.l.b16 %v746
        %v840 = vunpack.c.h.b16 %v746
        %v841 = vunpack.c.l.b16 %v747
        %v842 = vunpack.c.l.b16 %v748
        %v843 = vunpack.c.h.b16 %v748
        %v844 = vunpack.c.l.b16 %v749
        %v845 = vunpack.c.l.b16 %v750
        %v846 = vunpack.c.h.b16 %v750
        %v847 = vunpack.c.l.b16 %v751
        %v848 = vunpack.c.l.b16 %v752
        %v849 = vunpack.c.h.b16 %v752
        %v850 = vunpack.c.l.b16 %v753
        %v851 = vpack.c.b16 %v806, %v803
        %v852 = vpack.c.b16 %v807, %v804
        %v853 = vpack.c.b16 %v808, %v805
        %v854 = vpack.c.b16 %v812, %v809
        %v855 = vpack.c.b16 %v813, %v810
        %v856 = vpack.c.b16 %v814, %v811
        %v857 = vpack.c.b16 %v818, %v815
        %v858 = vpack.c.b16 %v819, %v816
        %v859 = vpack.c.b16 %v820, %v817
        %v860 = vpack.c.b16 %v824, %v821
        %v861 = vpack.c.b16 %v825, %v822
        %v862 = vpack.c.b16 %v826, %v823
        %v863 = vpack.c.b16 %v830, %v827
        %v864 = vpack.c.b16 %v831, %v828
        %v865 = vpack.c.b16 %v832, %v829
        %v866 = vpack.c.b16 %v836, %v833
        %v867 = vpack.c.b16 %v837, %v834
        %v868 = vpack.c.b16 %v838, %v835
        %v869 = vpack.c.b16 %v842, %v839
        %v870 = vpack.c.b16 %v843, %v840
        %v871 = vpack.c.b16 %v844, %v841
        %v872 = vpack.c.b16 %v848, %v845
        %v873 = vpack.c.b16 %v849, %v846
        %v874 = vpack.c.b16 %v850, %v847
        %899 = vmatprep.subr.bf16.mxu0 %v852
        %900 = vmatpush1.bf16.msra.mxu0 %v851
        %901 = vmatprep.subr.bf16.mxu0 %v855
        %902 = vmatpush1.bf16.msra.mxu0 %v854
        %903 = vmatprep.subr.bf16.mxu0 %v858
        %904 = vmatpush1.bf16.msra.mxu0 %v857
        %905 = vmatprep.subr.bf16.mxu0 %v861
        %906 = vmatpush1.bf16.msra.mxu0 %v860
        %907 = vmatprep.subr.bf16.mxu0 %v864
        %908 = vmatpush1.bf16.msra.mxu0 %v863
        %909 = vmatprep.subr.bf16.mxu0 %v867
        %910 = vmatpush1.bf16.msra.mxu0 %v866
        %911 = vmatprep.subr.bf16.mxu0 %v870
        %912 = vmatpush1.bf16.msra.mxu0 %v869
        %913 = vmatprep.subr.bf16.mxu0 %v873
        %914 = vmatpush1.bf16.msra.mxu0 %v872
        %915 = vmatprep.subr.bf16.mxu0 0
        %916 = vmatpush1.bf16.msra.mxu0 0
        %917 = vmatprep.subr.bf16.mxu0 0
        %918 = vmatpush1.bf16.msra.mxu0 0
        %919 = vmatprep.subr.bf16.mxu0 0
        %920 = vmatpush1.bf16.msra.mxu0 0
        %921 = vmatprep.subr.bf16.mxu0 0
        %922 = vmatpush1.bf16.msra.mxu0 0
        %923 = vmatprep.subr.bf16.mxu0 0
        %924 = vmatpush1.bf16.msra.mxu0 0
        %925 = vmatprep.subr.bf16.mxu0 0
        %926 = vmatpush1.bf16.msra.mxu0 0
        %927 = vmatprep.subr.bf16.mxu0 0
        %928 = vmatpush1.bf16.msra.mxu0 0
        %929 = vmatprep.subr.bf16.mxu0 0
        %930 = vmatpush1.bf16.msra.mxu0 0
        %931 = vmatprep.mubr.bf16.mxu0 0
        %932 = vmatmul.mubr.bf16.gmra.mrb[0].mxu0 %v721
        %v933 = vpop.f32.mrb[0].mxu0
        %v934 = vadd.f32 %v759, %v933
        %v935 = vpop.f32.mrb[0].mxu0
        %v936 = vadd.f32 %v763, %v935
        %v937 = vpop.f32.mrb[0].mxu0
        %v938 = vpop.f32.mrb[0].mxu0
        %939 = vdwg.mxu0
        %940 = vmatprep.subr.bf16.mxu0 0
        %941 = vmatpush1.bf16.msra.mxu0 %v853
        %942 = vmatprep.subr.bf16.mxu0 0
        %943 = vmatpush1.bf16.msra.mxu0 %v856
        %944 = vmatprep.subr.bf16.mxu0 0
        %945 = vmatpush1.bf16.msra.mxu0 %v859
        %946 = vmatprep.subr.bf16.mxu0 0
        %947 = vmatpush1.bf16.msra.mxu0 %v862
        %948 = vmatprep.subr.bf16.mxu0 0
        %949 = vmatpush1.bf16.msra.mxu0 %v865
        %950 = vmatprep.subr.bf16.mxu0 0
        %951 = vmatpush1.bf16.msra.mxu0 %v868
        %952 = vmatprep.subr.bf16.mxu0 0
        %953 = vmatpush1.bf16.msra.mxu0 %v871
        %954 = vmatprep.subr.bf16.mxu0 0
        %955 = vmatpush1.bf16.msra.mxu0 %v874
        %956 = vmatprep.subr.bf16.mxu0 0
        %957 = vmatpush1.bf16.msra.mxu0 0
        %958 = vmatprep.subr.bf16.mxu0 0
        %959 = vmatpush1.bf16.msra.mxu0 0
        %960 = vmatprep.subr.bf16.mxu0 0
        %961 = vmatpush1.bf16.msra.mxu0 0
        %962 = vmatprep.subr.bf16.mxu0 0
        %963 = vmatpush1.bf16.msra.mxu0 0
        %964 = vmatprep.subr.bf16.mxu0 0
        %965 = vmatpush1.bf16.msra.mxu0 0
        %966 = vmatprep.subr.bf16.mxu0 0
        %967 = vmatpush1.bf16.msra.mxu0 0
        %968 = vmatprep.subr.bf16.mxu0 0
        %969 = vmatpush1.bf16.msra.mxu0 0
        %970 = vmatprep.subr.bf16.mxu0 0
        %971 = vmatpush1.bf16.msra.mxu0 0
        %972 = vmatprep.mubr.bf16.mxu0 0
        %973 = vmatmul.mubr.bf16.gmra.mrb[0].mxu0 %v721
        %v974 = vpop.f32.mrb[0].mxu0
        %v975 = vadd.f32 %v767, %v974
        %v976 = vpop.f32.mrb[0].mxu0
        %v977 = vpop.f32.mrb[0].mxu0
        %v978 = vpop.f32.mrb[0].mxu0
        %979 = vdwg.mxu0
        %v980 = vld [vmem:[#allocation3] sm:$0x3]
        %v981 = vpack.c.bf16 %v980, %v980
        %v982 = vld [vmem:[%s5] sm:$0xff]
        %v983 = vld [vmem:[%s5 + $0x8] sm:$0xf]
        %v984 = vld [vmem:[%s5 + $0xc] sm:$0xff]
        %v985 = vld [vmem:[%s5 + $0x14] sm:$0xf]
        %v986 = vld [vmem:[%s5 + $0x18] sm:$0xff]
        %v987 = vld [vmem:[%s5 + $0x20] sm:$0xf]
        %v988 = vld [vmem:[%s5 + $0x24] sm:$0xff]
        %v989 = vld [vmem:[%s5 + $0x2c] sm:$0xf]
        %v990 = vld [vmem:[%s5 + $0x30] sm:$0xff]
        %v991 = vld [vmem:[%s5 + $0x38] sm:$0xf]
        %v992 = vld [vmem:[%s5 + $0x3c] sm:$0xff]
        %v993 = vld [vmem:[%s5 + $0x44] sm:$0xf]
        %v994 = vld [vmem:[%s5 + $0x48] sm:$0xff]
        %v995 = vld [vmem:[%s5 + $0x50] sm:$0xf]
        %v996 = vld [vmem:[%s5 + $0x54] sm:$0xff]
        %v997 = vld [vmem:[%s5 + $0x5c] sm:$0xf]
        %v998 = vld [vmem:[%s5 + $0x60] sm:$0xff]
        %v999 = vld [vmem:[%s5 + $0x68] sm:$0xf]
        %v1000 = vld [vmem:[%s5 + $0x6c] sm:$0xff]
        %v1001 = vld [vmem:[%s5 + $0x74] sm:$0xf]
        %v1002 = vld [vmem:[%s5 + $0x78] sm:$0xff]
        %v1003 = vld [vmem:[%s5 + $0x80] sm:$0xf]
        %v1004 = vld [vmem:[%s5 + $0x84] sm:$0xff]
        %v1005 = vld [vmem:[%s5 + $0x8c] sm:$0xf]
        %v1006 = vld [vmem:[%s5 + $0x90] sm:$0xff]
        %v1007 = vld [vmem:[%s5 + $0x98] sm:$0xf]
        %v1008 = vld [vmem:[%s5 + $0x9c] sm:$0xff]
        %v1009 = vld [vmem:[%s5 + $0xa4] sm:$0xf]
        %v1010 = vld [vmem:[%s5 + $0xa8] sm:$0xff]
        %v1011 = vld [vmem:[%s5 + $0xb0] sm:$0xf]
        %v1012 = vld [vmem:[%s5 + $0xb4] sm:$0xff]
        %v1013 = vld [vmem:[%s5 + $0xbc] sm:$0xf]
        %v1014 = vld [vmem:[%s6] sm:$0x7]
        %v1016 = vlaneseq
        %v1017 = vshrl.u32 %v1016, 7
        %v1018 = vsub.s32 0, %v1017
        %v1019 = vrot.slane %v1014, %v1018
        %v1020 = vlaneseq
        %v1021 = vshrl.u32 %v1020, 7
        %v1022 = vsub.s32 1, %v1021
        %v1023 = vrot.slane %v1014, %v1022
        %v1024 = vlaneseq
        %v1025 = vshrl.u32 %v1024, 7
        %v1026 = vsub.s32 2, %v1025
        %v1027 = vrot.slane %v1014, %v1026
        %v1063 = vunpack.c.l.b16 %v982
        %v1064 = vunpack.c.h.b16 %v982
        %v1065 = vunpack.c.l.b16 %v983
        %v1066 = vunpack.c.l.b16 %v984
        %v1067 = vunpack.c.h.b16 %v984
        %v1068 = vunpack.c.l.b16 %v985
        %v1069 = vunpack.c.l.b16 %v986
        %v1070 = vunpack.c.h.b16 %v986
        %v1071 = vunpack.c.l.b16 %v987
        %v1072 = vunpack.c.l.b16 %v988
        %v1073 = vunpack.c.h.b16 %v988
        %v1074 = vunpack.c.l.b16 %v989
        %v1075 = vunpack.c.l.b16 %v990
        %v1076 = vunpack.c.h.b16 %v990
        %v1077 = vunpack.c.l.b16 %v991
        %v1078 = vunpack.c.l.b16 %v992
        %v1079 = vunpack.c.h.b16 %v992
        %v1080 = vunpack.c.l.b16 %v993
        %v1081 = vunpack.c.l.b16 %v994
        %v1082 = vunpack.c.h.b16 %v994
        %v1083 = vunpack.c.l.b16 %v995
        %v1084 = vunpack.c.l.b16 %v996
        %v1085 = vunpack.c.h.b16 %v996
        %v1086 = vunpack.c.l.b16 %v997
        %v1087 = vunpack.c.l.b16 %v998
        %v1088 = vunpack.c.h.b16 %v998
        %v1089 = vunpack.c.l.b16 %v999
        %v1090 = vunpack.c.l.b16 %v1000
        %v1091 = vunpack.c.h.b16 %v1000
        %v1092 = vunpack.c.l.b16 %v1001
        %v1093 = vunpack.c.l.b16 %v1002
        %v1094 = vunpack.c.h.b16 %v1002
        %v1095 = vunpack.c.l.b16 %v1003
        %v1096 = vunpack.c.l.b16 %v1004
        %v1097 = vunpack.c.h.b16 %v1004
        %v1098 = vunpack.c.l.b16 %v1005
        %v1099 = vunpack.c.l.b16 %v1006
        %v1100 = vunpack.c.h.b16 %v1006
        %v1101 = vunpack.c.l.b16 %v1007
        %v1102 = vunpack.c.l.b16 %v1008
        %v1103 = vunpack.c.h.b16 %v1008
        %v1104 = vunpack.c.l.b16 %v1009
        %v1105 = vunpack.c.l.b16 %v1010
        %v1106 = vunpack.c.h.b16 %v1010
        %v1107 = vunpack.c.l.b16 %v1011
        %v1108 = vunpack.c.l.b16 %v1012
        %v1109 = vunpack.c.h.b16 %v1012
        %v1110 = vunpack.c.l.b16 %v1013
        %v1111 = vpack.c.b16 %v1066, %v1063
        %v1112 = vpack.c.b16 %v1067, %v1064
        %v1113 = vpack.c.b16 %v1068, %v1065
        %v1114 = vpack.c.b16 %v1072, %v1069
        %v1115 = vpack.c.b16 %v1073, %v1070
        %v1116 = vpack.c.b16 %v1074, %v1071
        %v1117 = vpack.c.b16 %v1078, %v1075
        %v1118 = vpack.c.b16 %v1079, %v1076
        %v1119 = vpack.c.b16 %v1080, %v1077
        %v1120 = vpack.c.b16 %v1084, %v1081
        %v1121 = vpack.c.b16 %v1085, %v1082
        %v1122 = vpack.c.b16 %v1086, %v1083
        %v1123 = vpack.c.b16 %v1090, %v1087
        %v1124 = vpack.c.b16 %v1091, %v1088
        %v1125 = vpack.c.b16 %v1092, %v1089
        %v1126 = vpack.c.b16 %v1096, %v1093
        %v1127 = vpack.c.b16 %v1097, %v1094
        %v1128 = vpack.c.b16 %v1098, %v1095
        %v1129 = vpack.c.b16 %v1102, %v1099
        %v1130 = vpack.c.b16 %v1103, %v1100
        %v1131 = vpack.c.b16 %v1104, %v1101
        %v1132 = vpack.c.b16 %v1108, %v1105
        %v1133 = vpack.c.b16 %v1109, %v1106
        %v1134 = vpack.c.b16 %v1110, %v1107
        %1159 = vmatprep.subr.bf16.mxu0 %v1112
        %1160 = vmatpush1.bf16.msra.mxu0 %v1111
        %1161 = vmatprep.subr.bf16.mxu0 %v1115
        %1162 = vmatpush1.bf16.msra.mxu0 %v1114
        %1163 = vmatprep.subr.bf16.mxu0 %v1118
        %1164 = vmatpush1.bf16.msra.mxu0 %v1117
        %1165 = vmatprep.subr.bf16.mxu0 %v1121
        %1166 = vmatpush1.bf16.msra.mxu0 %v1120
        %1167 = vmatprep.subr.bf16.mxu0 %v1124
        %1168 = vmatpush1.bf16.msra.mxu0 %v1123
        %1169 = vmatprep.subr.bf16.mxu0 %v1127
        %1170 = vmatpush1.bf16.msra.mxu0 %v1126
        %1171 = vmatprep.subr.bf16.mxu0 %v1130
        %1172 = vmatpush1.bf16.msra.mxu0 %v1129
        %1173 = vmatprep.subr.bf16.mxu0 %v1133
        %1174 = vmatpush1.bf16.msra.mxu0 %v1132
        %1175 = vmatprep.subr.bf16.mxu0 0
        %1176 = vmatpush1.bf16.msra.mxu0 0
        %1177 = vmatprep.subr.bf16.mxu0 0
        %1178 = vmatpush1.bf16.msra.mxu0 0
        %1179 = vmatprep.subr.bf16.mxu0 0
        %1180 = vmatpush1.bf16.msra.mxu0 0
        %1181 = vmatprep.subr.bf16.mxu0 0
        %1182 = vmatpush1.bf16.msra.mxu0 0
        %1183 = vmatprep.subr.bf16.mxu0 0
        %1184 = vmatpush1.bf16.msra.mxu0 0
        %1185 = vmatprep.subr.bf16.mxu0 0
        %1186 = vmatpush1.bf16.msra.mxu0 0
        %1187 = vmatprep.subr.bf16.mxu0 0
        %1188 = vmatpush1.bf16.msra.mxu0 0
        %1189 = vmatprep.subr.bf16.mxu0 0
        %1190 = vmatpush1.bf16.msra.mxu0 0
        %1191 = vmatprep.mubr.bf16.mxu0 0
        %1192 = vmatmul.mubr.bf16.gmra.mrb[0].mxu0 %v981
        %v1193 = vpop.f32.mrb[0].mxu0
        %v1194 = vadd.f32 %v1019, %v1193
        %v1195 = vpop.f32.mrb[0].mxu0
        %v1196 = vadd.f32 %v1023, %v1195
        %v1197 = vpop.f32.mrb[0].mxu0
        %v1198 = vpop.f32.mrb[0].mxu0
        %1199 = vdwg.mxu0
        %1200 = vmatprep.subr.bf16.mxu0 0
        %1201 = vmatpush1.bf16.msra.mxu0 %v1113
        %1202 = vmatprep.subr.bf16.mxu0 0
        %1203 = vmatpush1.bf16.msra.mxu0 %v1116
        %1204 = vmatprep.subr.bf16.mxu0 0
        %1205 = vmatpush1.bf16.msra.mxu0 %v1119
        %1206 = vmatprep.subr.bf16.mxu0 0
        %1207 = vmatpush1.bf16.msra.mxu0 %v1122
        %1208 = vmatprep.subr.bf16.mxu0 0
        %1209 = vmatpush1.bf16.msra.mxu0 %v1125
        %1210 = vmatprep.subr.bf16.mxu0 0
        %1211 = vmatpush1.bf16.msra.mxu0 %v1128
        %1212 = vmatprep.subr.bf16.mxu0 0
        %1213 = vmatpush1.bf16.msra.mxu0 %v1131
        %1214 = vmatprep.subr.bf16.mxu0 0
        %1215 = vmatpush1.bf16.msra.mxu0 %v1134
        %1216 = vmatprep.subr.bf16.mxu0 0
        %1217 = vmatpush1.bf16.msra.mxu0 0
        %1218 = vmatprep.subr.bf16.mxu0 0
        %1219 = vmatpush1.bf16.msra.mxu0 0
        %1220 = vmatprep.subr.bf16.mxu0 0
        %1221 = vmatpush1.bf16.msra.mxu0 0
        %1222 = vmatprep.subr.bf16.mxu0 0
        %1223 = vmatpush1.bf16.msra.mxu0 0
        %1224 = vmatprep.subr.bf16.mxu0 0
        %1225 = vmatpush1.bf16.msra.mxu0 0
        %1226 = vmatprep.subr.bf16.mxu0 0
        %1227 = vmatpush1.bf16.msra.mxu0 0
        %1228 = vmatprep.subr.bf16.mxu0 0
        %1229 = vmatpush1.bf16.msra.mxu0 0
        %1230 = vmatprep.subr.bf16.mxu0 0
        %1231 = vmatpush1.bf16.msra.mxu0 0
        %1232 = vmatprep.mubr.bf16.mxu0 0
        %1233 = vmatmul.mubr.bf16.gmra.mrb[0].mxu0 %v981
        %v1234 = vpop.f32.mrb[0].mxu0
        %v1235 = vadd.f32 %v1027, %v1234
        %v1236 = vpop.f32.mrb[0].mxu0
        %v1237 = vpop.f32.mrb[0].mxu0
        %v1238 = vpop.f32.mrb[0].mxu0
        %1239 = vdwg.mxu0
        %v1240 = vadd.f32 %v934, %v1194
        %v1241 = vxor.u32 %v1240, 2147483648
        %v1242 = vmul.f32 %v1241, 1.442695
        %v1243 = vpow.pop %v1242
        %v1244 = vadd.f32 %v1243, 1.0
        %v1245 = vrcp.pop %v1244
        %v1246 = vmul.f32 1.0, %v1245
        %v1247 = vadd.f32 %v936, %v1196
        %v1248 = vxor.u32 %v1247, 2147483648
        %v1249 = vmul.f32 %v1248, 1.442695
        %v1250 = vpow.pop %v1249
        %v1251 = vadd.f32 %v1250, 1.0
        %v1252 = vrcp.pop %v1251
        %v1253 = vmul.f32 1.0, %v1252
        %v1254 = vmul.f32 %v1246, %v1235
        %v1255 = vadd.f32 %v975, %v1254
        %v1256 = vtanh.pop %v1255
        %v1257 = vsub.f32 1.0, %v1253
        %v1258 = vmul.f32 %v1257, %v1256
        %v1259 = vmul.f32 %v1253, %v980
        %v1260 = vadd.f32 %v1258, %v1259
        %1261 = vst [vmem:[#allocation2] sm:$0x3] %v720
        %1262 = vst [vmem:[#allocation3] sm:$0x3] %v1260
        %p1263 = scmp.eq.s32.totalorder %s25, 3
        // Predicated region
        $region77: #{cortical_column_net_v4.7} parent=71 // pred_check
          %p1264 = pneg %p1263
        $region78: #{cortical_column_net_v4.7} parent=71 // pred_check_branch
          %1266 = sbr.rel (%p1264) target = $region80
        $region79: #{cortical_column_net_v4.7} parent=71 // pred_region
          %v1267 = vpack.c.bf16 %v1260, %v1260
          %v1268 = vld [vmem:[%s7] sm:$0xf]
          %v1269 = vld [vmem:[%s7 + $0x4] sm:$0xf]
          %v1270 = vld [vmem:[%s7 + $0x8] sm:$0xf]
          %v1271 = vld [vmem:[%s7 + $0xc] sm:$0xf]
          %v1272 = vld [vmem:[%s7 + $0x10] sm:$0xf]
          %v1273 = vld [vmem:[%s7 + $0x14] sm:$0xf]
          %v1274 = vld [vmem:[%s7 + $0x18] sm:$0xf]
          %v1275 = vld [vmem:[%s7 + $0x1c] sm:$0xf]
          %v1276 = vld [vmem:[%s7 + $0x20] sm:$0xf]
          %v1277 = vld [vmem:[%s7 + $0x24] sm:$0xf]
          %v1278 = vld [vmem:[%s7 + $0x28] sm:$0xf]
          %v1279 = vld [vmem:[%s7 + $0x2c] sm:$0xf]
          %v1280 = vld [vmem:[%s7 + $0x30] sm:$0xf]
          %v1281 = vld [vmem:[%s7 + $0x34] sm:$0xf]
          %v1282 = vld [vmem:[%s7 + $0x38] sm:$0xf]
          %v1283 = vld [vmem:[%s7 + $0x3c] sm:$0xf]
          %v1284 = vld [vmem:[%s8] sm:$0x1]
          %v1286 = vlaneseq
          %v1287 = vshrl.u32 %v1286, 7
          %v1288 = vsub.s32 0, %v1287
          %v1289 = vrot.slane %v1284, %v1288
          %v1307 = vunpack.c.l.b16 %v1268
          %v1308 = vunpack.c.l.b16 %v1269
          %v1309 = vunpack.c.l.b16 %v1270
          %v1310 = vunpack.c.l.b16 %v1271
          %v1311 = vunpack.c.l.b16 %v1272
          %v1312 = vunpack.c.l.b16 %v1273
          %v1313 = vunpack.c.l.b16 %v1274
          %v1314 = vunpack.c.l.b16 %v1275
          %v1315 = vunpack.c.l.b16 %v1276
          %v1316 = vunpack.c.l.b16 %v1277
          %v1317 = vunpack.c.l.b16 %v1278
          %v1318 = vunpack.c.l.b16 %v1279
          %v1319 = vunpack.c.l.b16 %v1280
          %v1320 = vunpack.c.l.b16 %v1281
          %v1321 = vunpack.c.l.b16 %v1282
          %v1322 = vunpack.c.l.b16 %v1283
          %v1323 = vpack.c.b16 %v1308, %v1307
          %v1324 = vpack.c.b16 %v1310, %v1309
          %v1325 = vpack.c.b16 %v1312, %v1311
          %v1326 = vpack.c.b16 %v1314, %v1313
          %v1327 = vpack.c.b16 %v1316, %v1315
          %v1328 = vpack.c.b16 %v1318, %v1317
          %v1329 = vpack.c.b16 %v1320, %v1319
          %v1330 = vpack.c.b16 %v1322, %v1321
          %1339 = vmatprep.subr.bf16.mxu0 0
          %1340 = vmatpush1.bf16.msra.mxu0 %v1323
          %1341 = vmatprep.subr.bf16.mxu0 0
          %1342 = vmatpush1.bf16.msra.mxu0 %v1324
          %1343 = vmatprep.subr.bf16.mxu0 0
          %1344 = vmatpush1.bf16.msra.mxu0 %v1325
          %1345 = vmatprep.subr.bf16.mxu0 0
          %1346 = vmatpush1.bf16.msra.mxu0 %v1326
          %1347 = vmatprep.subr.bf16.mxu0 0
          %1348 = vmatpush1.bf16.msra.mxu0 %v1327
          %1349 = vmatprep.subr.bf16.mxu0 0
          %1350 = vmatpush1.bf16.msra.mxu0 %v1328
          %1351 = vmatprep.subr.bf16.mxu0 0
          %1352 = vmatpush1.bf16.msra.mxu0 %v1329
          %1353 = vmatprep.subr.bf16.mxu0 0
          %1354 = vmatpush1.bf16.msra.mxu0 %v1330
          %1355 = vmatprep.subr.bf16.mxu0 0
          %1356 = vmatpush1.bf16.msra.mxu0 0
          %1357 = vmatprep.subr.bf16.mxu0 0
          %1358 = vmatpush1.bf16.msra.mxu0 0
          %1359 = vmatprep.subr.bf16.mxu0 0
          %1360 = vmatpush1.bf16.msra.mxu0 0
          %1361 = vmatprep.subr.bf16.mxu0 0
          %1362 = vmatpush1.bf16.msra.mxu0 0
          %1363 = vmatprep.subr.bf16.mxu0 0
          %1364 = vmatpush1.bf16.msra.mxu0 0
          %1365 = vmatprep.subr.bf16.mxu0 0
          %1366 = vmatpush1.bf16.msra.mxu0 0
          %1367 = vmatprep.subr.bf16.mxu0 0
          %1368 = vmatpush1.bf16.msra.mxu0 0
          %1369 = vmatprep.subr.bf16.mxu0 0
          %1370 = vmatpush1.bf16.msra.mxu0 0
          %1371 = vmatprep.mubr.bf16.mxu0 0
          %1372 = vmatmul.mubr.bf16.gmra.mrb[0].mxu0 %v1267
          %v1373 = vpop.f32.mrb[0].mxu0
          %v1374 = vadd.f32 %v1289, %v1373
          %v1375 = vpop.f32.mrb[0].mxu0
          %v1376 = vpop.f32.mrb[0].mxu0
          %v1377 = vpop.f32.mrb[0].mxu0
          %1378 = vdwg.mxu0
          %v1379 = vmax.f32 %v1374, 0.0
          %v1380 = vpack.c.bf16 %v1379, %v1379
          %v1381 = vld [vmem:[%s9] sm:$0xf]
          %v1382 = vld [vmem:[%s9 + $0x4] sm:$0xf]
          %v1383 = vld [vmem:[%s9 + $0x8] sm:$0xf]
          %v1384 = vld [vmem:[%s9 + $0xc] sm:$0xf]
          %v1385 = vld [vmem:[%s9 + $0x10] sm:$0xf]
          %v1386 = vld [vmem:[%s9 + $0x14] sm:$0xf]
          %v1387 = vld [vmem:[%s9 + $0x18] sm:$0xf]
          %v1388 = vld [vmem:[%s9 + $0x1c] sm:$0xf]
          %v1389 = vld [vmem:[%s10] sm:$0x1]
          %v1391 = vlaneseq
          %v1392 = vshrl.u32 %v1391, 7
          %v1393 = vsub.s32 0, %v1392
          %v1394 = vrot.slane %v1389, %v1393
          %v1404 = vunpack.c.l.b16 %v1381
          %v1405 = vunpack.c.l.b16 %v1382
          %v1406 = vunpack.c.l.b16 %v1383
          %v1407 = vunpack.c.l.b16 %v1384
          %v1408 = vunpack.c.l.b16 %v1385
          %v1409 = vunpack.c.l.b16 %v1386
          %v1410 = vunpack.c.l.b16 %v1387
          %v1411 = vunpack.c.l.b16 %v1388
          %v1412 = vpack.c.b16 %v1405, %v1404
          %v1413 = vpack.c.b16 %v1407, %v1406
          %v1414 = vpack.c.b16 %v1409, %v1408
          %v1415 = vpack.c.b16 %v1411, %v1410
          %vm1420 = vcmask 523264
          %v1422 = vsel %vm1420, %v1380, 0
          %1424 = vmatprep.subr.bf16.mxu0 0
          %1425 = vmatpush1.bf16.msra.mxu0 %v1412
          %1426 = vmatprep.subr.bf16.mxu0 0
          %1427 = vmatpush1.bf16.msra.mxu0 %v1413
          %1428 = vmatprep.subr.bf16.mxu0 0
          %1429 = vmatpush1.bf16.msra.mxu0 %v1414
          %1430 = vmatprep.subr.bf16.mxu0 0
          %1431 = vmatpush1.bf16.msra.mxu0 %v1415
          %1432 = vmatprep.subr.bf16.mxu0 0
          %1433 = vmatpush1.bf16.msra.mxu0 0
          %1434 = vmatprep.subr.bf16.mxu0 0
          %1435 = vmatpush1.bf16.msra.mxu0 0
          %1436 = vmatprep.subr.bf16.mxu0 0
          %1437 = vmatpush1.bf16.msra.mxu0 0
          %1438 = vmatprep.subr.bf16.mxu0 0
          %1439 = vmatpush1.bf16.msra.mxu0 0
          %1440 = vmatprep.subr.bf16.mxu0 0
          %1441 = vmatpush1.bf16.msra.mxu0 0
          %1442 = vmatprep.subr.bf16.mxu0 0
          %1443 = vmatpush1.bf16.msra.mxu0 0
          %1444 = vmatprep.subr.bf16.mxu0 0
          %1445 = vmatpush1.bf16.msra.mxu0 0
          %1446 = vmatprep.subr.bf16.mxu0 0
          %1447 = vmatpush1.bf16.msra.mxu0 0
          %1448 = vmatprep.subr.bf16.mxu0 0
          %1449 = vmatpush1.bf16.msra.mxu0 0
          %1450 = vmatprep.subr.bf16.mxu0 0
          %1451 = vmatpush1.bf16.msra.mxu0 0
          %1452 = vmatprep.subr.bf16.mxu0 0
          %1453 = vmatpush1.bf16.msra.mxu0 0
          %1454 = vmatprep.subr.bf16.mxu0 0
          %1455 = vmatpush1.bf16.msra.mxu0 0
          %1456 = vmatprep.mubr.bf16.mxu0 0
          %1457 = vmatmul.mubr.bf16.gmra.mrb[0].mxu0 %v1422
          %v1458 = vpop.f32.mrb[0].mxu0
          %v1459 = vadd.f32 %v1394, %v1458
          %v1460 = vpop.f32.mrb[0].mxu0
          %v1461 = vpop.f32.mrb[0].mxu0
          %v1462 = vpop.f32.mrb[0].mxu0
          %1463 = vdwg.mxu0
          %v1464 = vmax.f32 %v1459, 0.0
          %v1465 = vpack.c.bf16 %v1464, %v1464
          %v1466 = vld [vmem:[%s11] sm:$0xf]
          %v1467 = vld [vmem:[%s11 + $0x4] sm:$0xf]
          %v1468 = vld [vmem:[%s11 + $0x8] sm:$0xf]
          %v1469 = vld [vmem:[%s11 + $0xc] sm:$0xf]
          %v1470 = vld [vmem:[%s12] sm:$0x1]
          %v1472 = vlaneseq
          %v1473 = vshrl.u32 %v1472, 7
          %v1474 = vsub.s32 0, %v1473
          %v1475 = vrot.slane %v1470, %v1474
          %v1481 = vunpack.c.l.b16 %v1466
          %v1482 = vunpack.c.l.b16 %v1467
          %v1483 = vunpack.c.l.b16 %v1468
          %v1484 = vunpack.c.l.b16 %v1469
          %v1485 = vpack.c.b16 %v1482, %v1481
          %v1486 = vpack.c.b16 %v1484, %v1483
          %vm1489 = vcmask 261120
          %v1491 = vsel %vm1489, %v1465, 0
          %1493 = vmatprep.subr.bf16.mxu0 0
          %1494 = vmatpush1.bf16.msra.mxu0 %v1485
          %1495 = vmatprep.subr.bf16.mxu0 0
          %1496 = vmatpush1.bf16.msra.mxu0 %v1486
          %1497 = vmatprep.subr.bf16.mxu0 0
          %1498 = vmatpush1.bf16.msra.mxu0 0
          %1499 = vmatprep.subr.bf16.mxu0 0
          %1500 = vmatpush1.bf16.msra.mxu0 0
          %1501 = vmatprep.subr.bf16.mxu0 0
          %1502 = vmatpush1.bf16.msra.mxu0 0
          %1503 = vmatprep.subr.bf16.mxu0 0
          %1504 = vmatpush1.bf16.msra.mxu0 0
          %1505 = vmatprep.subr.bf16.mxu0 0
          %1506 = vmatpush1.bf16.msra.mxu0 0
          %1507 = vmatprep.subr.bf16.mxu0 0
          %1508 = vmatpush1.bf16.msra.mxu0 0
          %1509 = vmatprep.subr.bf16.mxu0 0
          %1510 = vmatpush1.bf16.msra.mxu0 0
          %1511 = vmatprep.subr.bf16.mxu0 0
          %1512 = vmatpush1.bf16.msra.mxu0 0
          %1513 = vmatprep.subr.bf16.mxu0 0
          %1514 = vmatpush1.bf16.msra.mxu0 0
          %1515 = vmatprep.subr.bf16.mxu0 0
          %1516 = vmatpush1.bf16.msra.mxu0 0
          %1517 = vmatprep.subr.bf16.mxu0 0
          %1518 = vmatpush1.bf16.msra.mxu0 0
          %1519 = vmatprep.subr.bf16.mxu0 0
          %1520 = vmatpush1.bf16.msra.mxu0 0
          %1521 = vmatprep.subr.bf16.mxu0 0
          %1522 = vmatpush1.bf16.msra.mxu0 0
          %1523 = vmatprep.subr.bf16.mxu0 0
          %1524 = vmatpush1.bf16.msra.mxu0 0
          %1525 = vmatprep.mubr.bf16.mxu0 0
          %1526 = vmatmul.mubr.bf16.gmra.mrb[0].mxu0 %v1491
          %v1527 = vpop.f32.mrb[0].mxu0
          %v1528 = vadd.f32 %v1475, %v1527
          %v1529 = vpop.f32.mrb[0].mxu0
          %v1530 = vpop.f32.mrb[0].mxu0
          %v1531 = vpop.f32.mrb[0].mxu0
          %1532 = vdwg.mxu0
          %vm1533 = vcmask 74752
          %1534 = vst.msk [vmem:[#allocation4] sm:$0x3] %vm1533, %v1528
        $region80: #{cortical_column_net_v4.7} parent=71 // pred_fallthru
          _
        // Predicated region
        $region81: #{cortical_column_net_v4.7} parent=71 // pred_check
          %p1535 = pneg %p316
        $region82: #{cortical_column_net_v4.7} parent=71 // pred_check_branch
          %1537 = sbr.rel (%p1535) target = $region84
        $region83: #{cortical_column_net_v4.7} parent=71 // pred_region
          %s1539 = ssub.s32 32, 32
          %1540 = vsyncadd [#allocation5], %s1539
          %s1542 = sshll.u32 [#allocation4], 4
          %s1543 = int_to_ptr.vmem [resolvable:$true] %s1542
          %1545 = dma.vmem_to_hbm [thread:$0]  %s1543, 32, %s13, [#allocation5]
        $region84: #{cortical_column_net_v4.7} parent=71 // pred_fallthru
          _
        // Predicated region
        $region85: #{cortical_column_net_v4.7} parent=71 // pred_check
          %p1546 = pneg %p316
        $region86: #{cortical_column_net_v4.7} parent=71 // pred_check_branch
          %1548 = sbr.rel (%p1546) target = $region88
        $region87: #{cortical_column_net_v4.7} parent=71 // pred_region
          %1549 = dma.done [#allocation5], 32
        $region88: #{cortical_column_net_v4.7} parent=71 // pred_fallthru
          _
      $region72: #{cortical_column_net_v4.7} parent=5 // pred_fallthru
        _
      %p1550 = scmp.le.s32.totalorder 2, %s20
      // Predicated region
      $region89: #{cortical_column_net_v4.7} parent=5 // pred_check
        %p1551 = pneg %p1550
      $region90: #{cortical_column_net_v4.7} parent=5 // pred_check_branch
        %1553 = sbr.rel (%p1551) target = $region92
      $region91: #{cortical_column_net_v4.7} parent=5 // pred_region
        %s1554 = ssub.s32 %s20, 2
      $region92: #{cortical_column_net_v4.7} parent=5 // pred_fallthru
        _
    $region6: #{cortical_column_net_v4.7} parent=1 // loop_footer
      %s24 = sadd.s32 1, %s20
    $region7: #{cortical_column_net_v4.7} parent=1 // loop_footer_branch
      %19 = sbr.rel target = $region3
    $region8: #{cortical_column_net_v4.7} parent=1 // loop_exit
      _
    %1555 = vsyncpa [#allocation5], 1
    %s1556 = scalar_lea.sflag [#allocation5], 1
    %1557 = vsyncpa %s1556, 1

</llo_original>
